<compile_context>
chip_gen: v6e
topology: v6e:2x2x1
jax: 0.10.0
libtpu: 0.0.40
codegen_flags: <defaults>
</compile_context>

<pallas_src>
import jax
import jax.numpy as jnp
from jax import lax
from jax.experimental import pallas as pl
from jax.experimental.pallas import tpu as pltpu

EPS = 1e-5


def _make_kernel(N, H, W, C):
    """Builds the fused ResidualBlock kernel for fixed (N, H, W, C)."""
    R = N * H          # slab rows  : one row per (n, h)
    L = W * C          # slab lanes : w major, c minor
    inv_count = 1.0 / float(N * H * W)

    def kernel(x_ref, w1_ref, g1_ref, be1_ref, w2_ref, g2_ref, be2_ref, out_ref):
        # x_ref   : (R, L)  f32  lane-dense input slab (also the residual)
        # w*_ref  : (3L, L) bf16 block-banded conv weights, rows (kh, w_in, ci)
        # g*/be*  : (1, L)  f32  BN gamma/beta pre-tiled to lane layout
        # out_ref : (R, L)  f32  lane-dense output slab
        x = x_ref[...]
        zrow = jnp.zeros((1, L), jnp.float32)
        row = lax.broadcasted_iota(jnp.int32, (R, 1), 0)
        h_idx = row % H
        top_ok = h_idx > 0          # a row above exists inside the same image
        bot_ok = h_idx < (H - 1)    # a row below exists inside the same image

        def conv3x3_bn(a, w_ref, g_ref, be_ref):
            # kh = -1 / 0 / +1 row-shifted slabs; cross-image rows masked to zero.
            up = jnp.where(top_ok, jnp.concatenate([zrow, a[:R - 1]], axis=0), 0.0)
            dn = jnp.where(bot_ok, jnp.concatenate([a[1:], zrow], axis=0), 0.0)
            # 128-aligned lane concat -> single (R, 3L) bf16 MXU operand.
            lhs = jnp.concatenate([up.astype(jnp.bfloat16),
                                   a.astype(jnp.bfloat16),
                                   dn.astype(jnp.bfloat16)], axis=-1)
            o = jnp.dot(lhs, w_ref[...],
                        preferred_element_type=jnp.float32)          # (R, L) f32

            # One-pass BatchNorm batch statistics (biased variance), f32.
            s = jnp.concatenate([jnp.sum(o, axis=0, keepdims=True),
                                 jnp.sum(o * o, axis=0, keepdims=True)], axis=0)
            shift = C
            while shift < L:        # log2(W) rotate-adds: per-channel totals,
                s = s + pltpu.roll(s, shift=shift, axis=1)  # already lane-broadcast
                shift *= 2
            mean = s[0:1, :] * inv_count
            var = s[1:2, :] * inv_count - mean * mean
            scale = g_ref[...] * lax.rsqrt(var + EPS)
            shift_v = be_ref[...] - mean * scale
            return o * scale + shift_v

        # stage 1: conv -> BN -> ReLU        (conv bias cancelled by batch-mean sub)
        h1 = jnp.maximum(conv3x3_bn(x, w1_ref, g1_ref, be1_ref), 0.0)
        # stage 2: conv -> BN -> + residual  (same lane-dense slab, no relayout)
        y = conv3x3_bn(h1, w2_ref, g2_ref, be2_ref) + x
        out_ref[...] = y.astype(out_ref.dtype)

    return kernel


def _banded_weight(w_hwio, W):
    """(3,3,Cin,Cout) HWIO -> (3*W*Cin, W*Cout) block-banded bf16 matrix.

    Folds the kw taps and the width-axis zero padding into the contraction so the
    kernel needs a single matmul per stage against lane-dense (N*H, W*C) slabs.
    Row index = kh*W*Cin + w_in*Cin + ci, col index = w_out*Cout + co, with
    nonzeros only where |w_in - w_out| <= 1.
    """
    C_in, C_out = w_hwio.shape[2], w_hwio.shape[3]
    eyes = jnp.stack([jnp.eye(W, W, k=1 - dw, dtype=w_hwio.dtype) for dw in range(3)])
    band = jnp.einsum('kab,dkio->daibo', eyes, w_hwio)    # (3, W, Cin, W, Cout)
    return band.reshape(3 * W * C_in, W * C_out).astype(jnp.bfloat16)


@jax.jit
def residual_block(x_nchw, params):
    """Pallas implementation of the PyTorch ResidualBlock.forward (NCHW in/out)."""
    N, C, H, W = x_nchw.shape
    assert W & (W - 1) == 0, "lane rotate-reduce assumes W is a power of two"
    R, L = N * H, W * C

    # NCHW -> lane-dense (N*H, W*C) slab (channel fastest inside each row).
    x_slab = jnp.transpose(x_nchw, (0, 2, 3, 1)).reshape(R, L).astype(jnp.float32)

    w1b = _banded_weight(params["w1"], W)
    w2b = _banded_weight(params["w2"], W)
    # BN gamma/beta pre-tiled to the lane layout (lane = w*C + c  ->  channel c).
    g1 = jnp.tile(params["g1"].reshape(1, C), (1, W)).astype(jnp.float32)
    be1 = jnp.tile(params["be1"].reshape(1, C), (1, W)).astype(jnp.float32)
    g2 = jnp.tile(params["g2"].reshape(1, C), (1, W)).astype(jnp.float32)
    be2 = jnp.tile(params["be2"].reshape(1, C), (1, W)).astype(jnp.float32)

    vspec = pl.BlockSpec(memory_space=pltpu.MemorySpace.VMEM)
    out_slab = pl.pallas_call(
        _make_kernel(N, H, W, C),
        out_shape=jax.ShapeDtypeStruct((R, L), jnp.float32),
        in_specs=[vspec] * 7,
        out_specs=vspec,
        compiler_params=pltpu.CompilerParams(
            vmem_limit_bytes=32 * 1024 * 1024),
    )(x_slab, w1b, g1, be1, w2b, g2, be2)

    out = out_slab.reshape(N, H, W, C)
    return jnp.transpose(out, (0, 3, 1, 2)).astype(x_nchw.dtype)   # back to NCHW


# ---------------------------- pure-JAX reference ----------------------------
def _reference(x_nchw, params):
    """Reference forward; conv operands rounded to bf16 (kernel's numeric policy),
    accumulation and everything else in f32.  Keeps the conv bias (the kernel drops
    it because training-mode BN cancels it exactly)."""
    x = jnp.transpose(x_nchw, (0, 2, 3, 1))

    def conv(t, w, b):
        t16 = t.astype(jnp.bfloat16).astype(jnp.float32)
        w16 = w.astype(jnp.bfloat16).astype(jnp.float32)
        y = lax.conv_general_dilated(
            t16, w16, (1, 1), "SAME",
            dimension_numbers=("NHWC", "HWIO", "NHWC"),
            precision=lax.Precision.HIGHEST)
        return y + b.reshape(1, 1, 1, -1)

    def bn(t, g, be):
        m = jnp.mean(t, axis=(0, 1, 2), keepdims=True)
        v = jnp.mean((t - m) ** 2, axis=(0, 1, 2), keepdims=True)
        return (t - m) * lax.rsqrt(v + EPS) * g.reshape(1, 1, 1, -1) + be.reshape(1, 1, 1, -1)

    h = jax.nn.relu(bn(conv(x, params["w1"], params["b1"]), params["g1"], params["be1"]))
    o = bn(conv(h, params["w2"], params["b2"]), params["g2"], params["be2"]) + x
    return jnp.transpose(o, (0, 3, 1, 2))


if __name__ == "__main__":
    # Small shapes consistent with the module (in_channels == out_channels so the
    # residual add and BatchNorm2d(in_channels) are shape-consistent).
    N, C, H, W = 2, 32, 16, 16
    key = jax.random.PRNGKey(0)
    kx, kw1, kw2, kb1, kb2 = jax.random.split(key, 5)

    x = jax.random.normal(kx, (N, C, H, W), jnp.float32)

    fan_in = C * 3 * 3
    bound = 1.0 / jnp.sqrt(fan_in)
    params = {
        # Conv weights in HWIO layout (PyTorch OIHW -> HWIO), deterministic init.
        "w1": jax.random.uniform(kw1, (3, 3, C, C), jnp.float32, -bound, bound),
        "b1": jax.random.uniform(kb1, (1, C), jnp.float32, -bound, bound),
        "w2": jax.random.uniform(kw2, (3, 3, C, C), jnp.float32, -bound, bound),
        "b2": jax.random.uniform(kb2, (1, C), jnp.float32, -bound, bound),
        # BatchNorm default init: weight=1, bias=0.
        "g1": jnp.ones((1, C), jnp.float32),
        "be1": jnp.zeros((1, C), jnp.float32),
        "g2": jnp.ones((1, C), jnp.float32),
        "be2": jnp.zeros((1, C), jnp.float32),
    }

    out = jax.block_until_ready(residual_block(x, params))
    ref = jax.block_until_ready(_reference(x, params))

    assert out.shape == x.shape and out.dtype == x.dtype
    max_err = jnp.max(jnp.abs(out - ref))
    assert jnp.allclose(out, ref, atol=1e-2, rtol=1e-2), f"max abs err {max_err}"
    print("KERNEL_OK")
</pallas_src>

<mosaic_0001>
module attributes {stable_mosaic.version = 11 : i64} {
  func.func @kernel(%arg0: memref<32x512xf32, #tpu.memory_space<vmem>>, %arg1: memref<1536x512xbf16, #tpu.memory_space<vmem>>, %arg2: memref<1x512xf32, #tpu.memory_space<vmem>>, %arg3: memref<1x512xf32, #tpu.memory_space<vmem>>, %arg4: memref<1536x512xbf16, #tpu.memory_space<vmem>>, %arg5: memref<1x512xf32, #tpu.memory_space<vmem>>, %arg6: memref<1x512xf32, #tpu.memory_space<vmem>>, %arg7: memref<32x512xf32, #tpu.memory_space<vmem>>) attributes {dimension_semantics = [], scalar_prefetch = 0 : i64, scratch_operands = 0 : i64, tpu.core_type = #tpu.core_type<tc>} {
    %c0 = arith.constant 0 : index
    %c0_0 = arith.constant 0 : index
    %0 = vector.load %arg0[%c0, %c0_0] : memref<32x512xf32, #tpu.memory_space<vmem>>, vector<32x512xf32>
    %cst = arith.constant 0.000000e+00 : f32
    %1 = vector.broadcast %cst : f32 to vector<1x512xf32>
    %2 = tpu.iota {dimensions = array<i32: 0>} : vector<32x1xi32>
    %c16_i32 = arith.constant 16 : i32
    %c0_i32 = arith.constant 0 : i32
    %3 = arith.cmpi eq, %c16_i32, %c0_i32 : i32
    %c1_i32 = arith.constant 1 : i32
    %4 = arith.select %3, %c1_i32, %c16_i32 : i32
    %5 = vector.broadcast %4 : i32 to vector<32x1xi32>
    %6 = arith.remsi %2, %5 : vector<32x1xi32>
    %c0_i32_1 = arith.constant 0 : i32
    %7 = vector.broadcast %c0_i32_1 : i32 to vector<32x1xi32>
    %8 = arith.cmpi ne, %6, %7 : vector<32x1xi32>
    %c0_i32_2 = arith.constant 0 : i32
    %9 = vector.broadcast %c0_i32_2 : i32 to vector<32x1xi32>
    %10 = arith.cmpi slt, %6, %9 : vector<32x1xi32>
    %c0_i32_3 = arith.constant 0 : i32
    %11 = arith.cmpi slt, %4, %c0_i32_3 : i32
    %12 = vector.broadcast %11 : i1 to vector<32x1xi1>
    %13 = vector.broadcast %12 : vector<32x1xi1> to vector<32x1xi1>
    %14 = arith.xori %10, %13 : vector<32x1xi1>
    %15 = arith.andi %14, %8 : vector<32x1xi1>
    %16 = vector.broadcast %4 : i32 to vector<32x1xi32>
    %17 = arith.addi %6, %16 : vector<32x1xi32>
    %18 = arith.select %15, %17, %6 : vector<32x1xi1>, vector<32x1xi32>
    %c0_i32_4 = arith.constant 0 : i32
    %19 = vector.broadcast %c0_i32_4 : i32 to vector<32x1xi32>
    %20 = arith.cmpi sgt, %18, %19 : vector<32x1xi32>
    %c15_i32 = arith.constant 15 : i32
    %21 = vector.broadcast %c15_i32 : i32 to vector<32x1xi32>
    %22 = arith.cmpi slt, %18, %21 : vector<32x1xi32>
    %23 = vector.extract_strided_slice %0 {offsets = [0, 0], sizes = [31, 512], strides = [1, 1]} : vector<32x512xf32> to vector<31x512xf32>
    %24 = tpu.concatenate %1, %23 in 0 : vector<1x512xf32>, vector<31x512xf32> -> vector<32x512xf32>
    %cst_5 = arith.constant 0.000000e+00 : f32
    %25 = vector.shape_cast %20 : vector<32x1xi1> to vector<32x1xi1>
    %26 = vector.broadcast %25 : vector<32x1xi1> to vector<32x512xi1>
    %27 = vector.broadcast %cst_5 : f32 to vector<32x512xf32>
    %28 = arith.select %26, %24, %27 : vector<32x512xi1>, vector<32x512xf32>
    %29 = vector.extract_strided_slice %0 {offsets = [1, 0], sizes = [31, 512], strides = [1, 1]} : vector<32x512xf32> to vector<31x512xf32>
    %30 = tpu.concatenate %29, %1 in 0 : vector<31x512xf32>, vector<1x512xf32> -> vector<32x512xf32>
    %cst_6 = arith.constant 0.000000e+00 : f32
    %31 = vector.shape_cast %22 : vector<32x1xi1> to vector<32x1xi1>
    %32 = vector.broadcast %31 : vector<32x1xi1> to vector<32x512xi1>
    %33 = vector.broadcast %cst_6 : f32 to vector<32x512xf32>
    %34 = arith.select %32, %30, %33 : vector<32x512xi1>, vector<32x512xf32>
    %35 = arith.truncf %28 : vector<32x512xf32> to vector<32x512xbf16>
    %36 = arith.truncf %0 : vector<32x512xf32> to vector<32x512xbf16>
    %37 = arith.truncf %34 : vector<32x512xf32> to vector<32x512xbf16>
    %38 = tpu.concatenate %35, %36, %37 in 1 : vector<32x512xbf16>, vector<32x512xbf16>, vector<32x512xbf16> -> vector<32x1536xbf16>
    %c0_7 = arith.constant 0 : index
    %c0_8 = arith.constant 0 : index
    %39 = vector.load %arg1[%c0_7, %c0_8] : memref<1536x512xbf16, #tpu.memory_space<vmem>>, vector<1536x512xbf16>
    %cst_9 = arith.constant dense<0.000000e+00> : vector<32x512xf32>
    %40 = tpu.matmul %38, %39, %cst_9 {dimension_numbers = #tpu.dot_dimension_numbers<[1], [0], [0], [1], [0, 0, 1, 1], [], []>} : vector<32x1536xbf16>, vector<1536x512xbf16>, vector<32x512xf32> -> vector<32x512xf32>
    %cst_10 = arith.constant dense<0.000000e+00> : vector<512xf32>
    %41 = vector.multi_reduction <add>, %40, %cst_10 [0] : vector<32x512xf32> to vector<512xf32>
    %42 = vector.shape_cast %41 : vector<512xf32> to vector<1x512xf32>
    %43 = arith.mulf %40, %40 : vector<32x512xf32>
    %cst_11 = arith.constant dense<0.000000e+00> : vector<512xf32>
    %44 = vector.multi_reduction <add>, %43, %cst_11 [0] : vector<32x512xf32> to vector<512xf32>
    %45 = vector.shape_cast %44 : vector<512xf32> to vector<1x512xf32>
    %46 = tpu.concatenate %42, %45 in 0 : vector<1x512xf32>, vector<1x512xf32> -> vector<2x512xf32>
    %c32_i32 = arith.constant 32 : i32
    %47 = tpu.dynamic_rotate %46 by %c32_i32 dim 1 : vector<2x512xf32>, i32 -> vector<2x512xf32>
    %48 = arith.addf %46, %47 : vector<2x512xf32>
    %c64_i32 = arith.constant 64 : i32
    %49 = tpu.dynamic_rotate %48 by %c64_i32 dim 1 : vector<2x512xf32>, i32 -> vector<2x512xf32>
    %50 = arith.addf %48, %49 : vector<2x512xf32>
    %c128_i32 = arith.constant 128 : i32
    %51 = tpu.dynamic_rotate %50 by %c128_i32 dim 1 : vector<2x512xf32>, i32 -> vector<2x512xf32>
    %52 = arith.addf %50, %51 : vector<2x512xf32>
    %c256_i32 = arith.constant 256 : i32
    %53 = tpu.dynamic_rotate %52 by %c256_i32 dim 1 : vector<2x512xf32>, i32 -> vector<2x512xf32>
    %54 = arith.addf %52, %53 : vector<2x512xf32>
    %55 = vector.extract_strided_slice %54 {offsets = [0, 0], sizes = [1, 512], strides = [1, 1]} : vector<2x512xf32> to vector<1x512xf32>
    %cst_12 = arith.constant 0.001953125 : f32
    %56 = vector.broadcast %cst_12 : f32 to vector<1x512xf32>
    %57 = arith.mulf %55, %56 : vector<1x512xf32>
    %58 = vector.extract_strided_slice %54 {offsets = [1, 0], sizes = [1, 512], strides = [1, 1]} : vector<2x512xf32> to vector<1x512xf32>
    %cst_13 = arith.constant 0.001953125 : f32
    %59 = vector.broadcast %cst_13 : f32 to vector<1x512xf32>
    %60 = arith.mulf %58, %59 : vector<1x512xf32>
    %61 = arith.mulf %57, %57 : vector<1x512xf32>
    %62 = arith.subf %60, %61 : vector<1x512xf32>
    %c0_14 = arith.constant 0 : index
    %c0_15 = arith.constant 0 : index
    %63 = vector.load %arg2[%c0_14, %c0_15] : memref<1x512xf32, #tpu.memory_space<vmem>>, vector<1x512xf32>
    %cst_16 = arith.constant 9.99999974E-6 : f32
    %64 = vector.broadcast %cst_16 : f32 to vector<1x512xf32>
    %65 = arith.addf %62, %64 : vector<1x512xf32>
    %66 = math.rsqrt %65 : vector<1x512xf32>
    %67 = arith.mulf %63, %66 : vector<1x512xf32>
    %c0_17 = arith.constant 0 : index
    %c0_18 = arith.constant 0 : index
    %68 = vector.load %arg3[%c0_17, %c0_18] : memref<1x512xf32, #tpu.memory_space<vmem>>, vector<1x512xf32>
    %69 = arith.mulf %57, %67 : vector<1x512xf32>
    %70 = arith.subf %68, %69 : vector<1x512xf32>
    %71 = vector.broadcast %67 : vector<1x512xf32> to vector<32x512xf32>
    %72 = arith.mulf %40, %71 : vector<32x512xf32>
    %73 = vector.broadcast %70 : vector<1x512xf32> to vector<32x512xf32>
    %74 = arith.addf %72, %73 : vector<32x512xf32>
    %cst_19 = arith.constant 0.000000e+00 : f32
    %75 = vector.broadcast %cst_19 : f32 to vector<32x512xf32>
    %76 = arith.maximumf %74, %75 : vector<32x512xf32>
    %77 = vector.extract_strided_slice %76 {offsets = [0, 0], sizes = [31, 512], strides = [1, 1]} : vector<32x512xf32> to vector<31x512xf32>
    %78 = tpu.concatenate %1, %77 in 0 : vector<1x512xf32>, vector<31x512xf32> -> vector<32x512xf32>
    %cst_20 = arith.constant 0.000000e+00 : f32
    %79 = vector.shape_cast %20 : vector<32x1xi1> to vector<32x1xi1>
    %80 = vector.broadcast %79 : vector<32x1xi1> to vector<32x512xi1>
    %81 = vector.broadcast %cst_20 : f32 to vector<32x512xf32>
    %82 = arith.select %80, %78, %81 : vector<32x512xi1>, vector<32x512xf32>
    %83 = vector.extract_strided_slice %76 {offsets = [1, 0], sizes = [31, 512], strides = [1, 1]} : vector<32x512xf32> to vector<31x512xf32>
    %84 = tpu.concatenate %83, %1 in 0 : vector<31x512xf32>, vector<1x512xf32> -> vector<32x512xf32>
    %cst_21 = arith.constant 0.000000e+00 : f32
    %85 = vector.shape_cast %22 : vector<32x1xi1> to vector<32x1xi1>
    %86 = vector.broadcast %85 : vector<32x1xi1> to vector<32x512xi1>
    %87 = vector.broadcast %cst_21 : f32 to vector<32x512xf32>
    %88 = arith.select %86, %84, %87 : vector<32x512xi1>, vector<32x512xf32>
    %89 = arith.truncf %82 : vector<32x512xf32> to vector<32x512xbf16>
    %90 = arith.truncf %76 : vector<32x512xf32> to vector<32x512xbf16>
    %91 = arith.truncf %88 : vector<32x512xf32> to vector<32x512xbf16>
    %92 = tpu.concatenate %89, %90, %91 in 1 : vector<32x512xbf16>, vector<32x512xbf16>, vector<32x512xbf16> -> vector<32x1536xbf16>
    %c0_22 = arith.constant 0 : index
    %c0_23 = arith.constant 0 : index
    %93 = vector.load %arg4[%c0_22, %c0_23] : memref<1536x512xbf16, #tpu.memory_space<vmem>>, vector<1536x512xbf16>
    %cst_24 = arith.constant dense<0.000000e+00> : vector<32x512xf32>
    %94 = tpu.matmul %92, %93, %cst_24 {dimension_numbers = #tpu.dot_dimension_numbers<[1], [0], [0], [1], [0, 0, 1, 1], [], []>} : vector<32x1536xbf16>, vector<1536x512xbf16>, vector<32x512xf32> -> vector<32x512xf32>
    %cst_25 = arith.constant dense<0.000000e+00> : vector<512xf32>
    %95 = vector.multi_reduction <add>, %94, %cst_25 [0] : vector<32x512xf32> to vector<512xf32>
    %96 = vector.shape_cast %95 : vector<512xf32> to vector<1x512xf32>
    %97 = arith.mulf %94, %94 : vector<32x512xf32>
    %cst_26 = arith.constant dense<0.000000e+00> : vector<512xf32>
    %98 = vector.multi_reduction <add>, %97, %cst_26 [0] : vector<32x512xf32> to vector<512xf32>
    %99 = vector.shape_cast %98 : vector<512xf32> to vector<1x512xf32>
    %100 = tpu.concatenate %96, %99 in 0 : vector<1x512xf32>, vector<1x512xf32> -> vector<2x512xf32>
    %c32_i32_27 = arith.constant 32 : i32
    %101 = tpu.dynamic_rotate %100 by %c32_i32_27 dim 1 : vector<2x512xf32>, i32 -> vector<2x512xf32>
    %102 = arith.addf %100, %101 : vector<2x512xf32>
    %c64_i32_28 = arith.constant 64 : i32
    %103 = tpu.dynamic_rotate %102 by %c64_i32_28 dim 1 : vector<2x512xf32>, i32 -> vector<2x512xf32>
    %104 = arith.addf %102, %103 : vector<2x512xf32>
    %c128_i32_29 = arith.constant 128 : i32
    %105 = tpu.dynamic_rotate %104 by %c128_i32_29 dim 1 : vector<2x512xf32>, i32 -> vector<2x512xf32>
    %106 = arith.addf %104, %105 : vector<2x512xf32>
    %c256_i32_30 = arith.constant 256 : i32
    %107 = tpu.dynamic_rotate %106 by %c256_i32_30 dim 1 : vector<2x512xf32>, i32 -> vector<2x512xf32>
    %108 = arith.addf %106, %107 : vector<2x512xf32>
    %109 = vector.extract_strided_slice %108 {offsets = [0, 0], sizes = [1, 512], strides = [1, 1]} : vector<2x512xf32> to vector<1x512xf32>
    %cst_31 = arith.constant 0.001953125 : f32
    %110 = vector.broadcast %cst_31 : f32 to vector<1x512xf32>
    %111 = arith.mulf %109, %110 : vector<1x512xf32>
    %112 = vector.extract_strided_slice %108 {offsets = [1, 0], sizes = [1, 512], strides = [1, 1]} : vector<2x512xf32> to vector<1x512xf32>
    %cst_32 = arith.constant 0.001953125 : f32
    %113 = vector.broadcast %cst_32 : f32 to vector<1x512xf32>
    %114 = arith.mulf %112, %113 : vector<1x512xf32>
    %115 = arith.mulf %111, %111 : vector<1x512xf32>
    %116 = arith.subf %114, %115 : vector<1x512xf32>
    %c0_33 = arith.constant 0 : index
    %c0_34 = arith.constant 0 : index
    %117 = vector.load %arg5[%c0_33, %c0_34] : memref<1x512xf32, #tpu.memory_space<vmem>>, vector<1x512xf32>
    %cst_35 = arith.constant 9.99999974E-6 : f32
    %118 = vector.broadcast %cst_35 : f32 to vector<1x512xf32>
    %119 = arith.addf %116, %118 : vector<1x512xf32>
    %120 = math.rsqrt %119 : vector<1x512xf32>
    %121 = arith.mulf %117, %120 : vector<1x512xf32>
    %c0_36 = arith.constant 0 : index
    %c0_37 = arith.constant 0 : index
    %122 = vector.load %arg6[%c0_36, %c0_37] : memref<1x512xf32, #tpu.memory_space<vmem>>, vector<1x512xf32>
    %123 = arith.mulf %111, %121 : vector<1x512xf32>
    %124 = arith.subf %122, %123 : vector<1x512xf32>
    %125 = vector.broadcast %121 : vector<1x512xf32> to vector<32x512xf32>
    %126 = arith.mulf %94, %125 : vector<32x512xf32>
    %127 = vector.broadcast %124 : vector<1x512xf32> to vector<32x512xf32>
    %128 = arith.addf %126, %127 : vector<32x512xf32>
    %129 = arith.addf %128, %0 : vector<32x512xf32>
    %c0_38 = arith.constant 0 : index
    %c0_39 = arith.constant 0 : index
    %130 = vector.load %arg7[%c0_38, %c0_39] : memref<32x512xf32, #tpu.memory_space<vmem>>, vector<32x512xf32>
    tpu.vector_store %arg7[%c0_38, %c0_39], %129 {strides = array<i32>} : memref<32x512xf32, #tpu.memory_space<vmem>>, vector<32x512xf32>,
    return
  }
}

</mosaic_0001>

<llo_original>
// kernel: residual_block.1
$region0: #{residual_block.1}
  #allocation0 [shape = 'u32[]', space=smem, size = 0x4, offset = 0x4, fixed_abs, tag = 'smem constant byte address 0x4 - core index']
  #allocation1 [shape = 'u32[144,128]{1,0:T(1,128)}', space=vmem, size = 0x12000, scoped, tag = 'internal scratch']
  %s0 = inlined_call_operand.vmem [shape: f32[32,512], index: 0, kind: input, shape index: {}]
  %s1 = inlined_call_operand.vmem [shape: bf16[1536,512], index: 1, kind: input, shape index: {}]
  %s2 = inlined_call_operand.vmem [shape: f32[1,512], index: 2, kind: input, shape index: {}]
  %s3 = inlined_call_operand.vmem [shape: f32[1,512], index: 3, kind: input, shape index: {}]
  %s4 = inlined_call_operand.vmem [shape: bf16[1536,512], index: 4, kind: input, shape index: {}]
  %s5 = inlined_call_operand.vmem [shape: f32[1,512], index: 5, kind: input, shape index: {}]
  %s6 = inlined_call_operand.vmem [shape: f32[1,512], index: 6, kind: input, shape index: {}]
  %s7 = inlined_call_operand.vmem [shape: f32[32,512], index: 7, kind: output, shape index: {}]
  %s8 = sld [smem:[#allocation0]]
  $region38: #{residual_block.1} parent=0
    _
  %s10 = ssub.s32 1, %s8
  %s11 = scalar_select 0, %s10, %s8
  // Predicated region
  $region2: #{residual_block.1} parent=0 // pred_check
    _
  $region3: #{residual_block.1} parent=0 // pred_check_branch
    %13 = sbr.rel (0) target = $region5
  $region4: #{residual_block.1} parent=0 // pred_region
    _
  $region5: #{residual_block.1} parent=0 // pred_fallthru
    _
  // Predicated region
  $region6: #{residual_block.1} parent=0 // pred_check
    _
  $region7: #{residual_block.1} parent=0 // pred_check_branch
    %15 = sbr.rel (0) target = $region9
  $region8: #{residual_block.1} parent=0 // pred_region
    _
  $region9: #{residual_block.1} parent=0 // pred_fallthru
    _
  // Predicated region
  $region10: #{residual_block.1} parent=0 // pred_check
    _
  $region11: #{residual_block.1} parent=0 // pred_check_branch
    %17 = sbr.rel (0) target = $region13
  $region12: #{residual_block.1} parent=0 // pred_region
    _
  $region13: #{residual_block.1} parent=0 // pred_fallthru
    _
  // Predicated region
  $region14: #{residual_block.1} parent=0 // pred_check
    _
  $region15: #{residual_block.1} parent=0 // pred_check_branch
    %19 = sbr.rel (0) target = $region17
  $region16: #{residual_block.1} parent=0 // pred_region
    _
  $region17: #{residual_block.1} parent=0 // pred_fallthru
    _
  // Predicated region
  $region18: #{residual_block.1} parent=0 // pred_check
    _
  $region19: #{residual_block.1} parent=0 // pred_check_branch
    %21 = sbr.rel (0) target = $region21
  $region20: #{residual_block.1} parent=0 // pred_region
    _
  $region21: #{residual_block.1} parent=0 // pred_fallthru
    _
  // Predicated region
  $region22: #{residual_block.1} parent=0 // pred_check
    _
  $region23: #{residual_block.1} parent=0 // pred_check_branch
    %23 = sbr.rel (0) target = $region25
  $region24: #{residual_block.1} parent=0 // pred_region
    _
  $region25: #{residual_block.1} parent=0 // pred_fallthru
    _
  // Predicated region
  $region26: #{residual_block.1} parent=0 // pred_check
    _
  $region27: #{residual_block.1} parent=0 // pred_check_branch
    %25 = sbr.rel (0) target = $region29
  $region28: #{residual_block.1} parent=0 // pred_region
    _
  $region29: #{residual_block.1} parent=0 // pred_fallthru
    _
  %v26 = vld [vmem:[%s0] sm:$0xff]
  %v27 = vld [vmem:[%s0 + $0x8] sm:$0xff]
  %v28 = vld [vmem:[%s0 + $0x10] sm:$0xff]
  %v29 = vld [vmem:[%s0 + $0x18] sm:$0xff]
  %v30 = vld [vmem:[%s0 + $0x20] sm:$0xff]
  %v31 = vld [vmem:[%s0 + $0x28] sm:$0xff]
  %v32 = vld [vmem:[%s0 + $0x30] sm:$0xff]
  %v33 = vld [vmem:[%s0 + $0x38] sm:$0xff]
  %v34 = vld [vmem:[%s0 + $0x40] sm:$0xff]
  %v35 = vld [vmem:[%s0 + $0x48] sm:$0xff]
  %v36 = vld [vmem:[%s0 + $0x50] sm:$0xff]
  %v37 = vld [vmem:[%s0 + $0x58] sm:$0xff]
  %v38 = vld [vmem:[%s0 + $0x60] sm:$0xff]
  %v39 = vld [vmem:[%s0 + $0x68] sm:$0xff]
  %v40 = vld [vmem:[%s0 + $0x70] sm:$0xff]
  %v41 = vld [vmem:[%s0 + $0x78] sm:$0xff]
  %v42 = vlaneseq
  %v43 = vshrl.u32 %v42, 7
  %v44 = vadd.s32 %v43, 8
  %v45 = vadd.s32 %v43, 16
  %v46 = vadd.s32 %v43, 24
  %vm47 = vcmp.lt.s32.totalorder %v43, 0
  %v48 = vsub.s32 0, %v43
  %v49 = vsel %vm47, %v48, %v43
  %v50 = vshrl.u32 %v49, 4
  %v51 = vand.u32 %v49, 15
  %v52 = vsub.s32 0, %v51
  %v53 = vsel %vm47, %v52, %v51
  %vm54 = vcmp.lt.s32.totalorder %v44, 0
  %v55 = vsub.s32 0, %v44
  %v56 = vsel %vm54, %v55, %v44
  %v57 = vshrl.u32 %v56, 4
  %v58 = vand.u32 %v56, 15
  %v59 = vsub.s32 0, %v58
  %v60 = vsel %vm54, %v59, %v58
  %vm61 = vcmp.lt.s32.totalorder %v45, 0
  %v62 = vsub.s32 0, %v45
  %v63 = vsel %vm61, %v62, %v45
  %v64 = vshrl.u32 %v63, 4
  %v65 = vand.u32 %v63, 15
  %v66 = vsub.s32 0, %v65
  %v67 = vsel %vm61, %v66, %v65
  %vm68 = vcmp.lt.s32.totalorder %v46, 0
  %v69 = vsub.s32 0, %v46
  %v70 = vsel %vm68, %v69, %v46
  %v71 = vshrl.u32 %v70, 4
  %v72 = vand.u32 %v70, 15
  %v73 = vsub.s32 0, %v72
  %v74 = vsel %vm68, %v73, %v72
  %vm75 = vcmp.ne.s32.totalorder %v53, 0
  %vm76 = vcmp.ne.s32.totalorder %v60, 0
  %vm77 = vcmp.ne.s32.totalorder %v67, 0
  %vm78 = vcmp.ne.s32.totalorder %v74, 0
  %vm79 = vcmp.lt.s32.totalorder %v53, 0
  %vm80 = vcmp.lt.s32.totalorder %v60, 0
  %vm81 = vcmp.lt.s32.totalorder %v67, 0
  %vm82 = vcmp.lt.s32.totalorder %v74, 0
  %vm83 = vmand %vm79, %vm75
  %vm84 = vmand %vm80, %vm76
  %vm85 = vmand %vm81, %vm77
  %vm86 = vmand %vm82, %vm78
  %v87 = vadd.s32 %v53, 16
  %v88 = vadd.s32 %v60, 16
  %v89 = vadd.s32 %v67, 16
  %v90 = vadd.s32 %v74, 16
  %v91 = vsel %vm83, %v87, %v53
  %v92 = vsel %vm84, %v88, %v60
  %v93 = vsel %vm85, %v89, %v67
  %v94 = vsel %vm86, %v90, %v74
  %vm95 = vcmp.gt.s32.totalorder %v91, 0
  %vm96 = vcmp.gt.s32.totalorder %v92, 0
  %vm97 = vcmp.gt.s32.totalorder %v93, 0
  %vm98 = vcmp.gt.s32.totalorder %v94, 0
  %vm99 = vcmp.lt.s32.totalorder %v91, 15
  %vm100 = vcmp.lt.s32.totalorder %v92, 15
  %vm101 = vcmp.lt.s32.totalorder %v93, 15
  %vm102 = vcmp.lt.s32.totalorder %v94, 15
  %vm119 = vcmask 1040384
  %v120 = vrot.slane %v26, 7
  %v121 = vrot.slane %v27, 7
  %v122 = vrot.slane %v28, 7
  %v123 = vrot.slane %v29, 7
  %v124 = vrot.slane %v30, 7
  %v125 = vsel %vm119, %v120, %v124
  %v126 = vrot.slane %v31, 7
  %v127 = vsel %vm119, %v121, %v126
  %v128 = vrot.slane %v32, 7
  %v129 = vsel %vm119, %v122, %v128
  %v130 = vrot.slane %v33, 7
  %v131 = vsel %vm119, %v123, %v130
  %v132 = vrot.slane %v34, 7
  %v133 = vsel %vm119, %v124, %v132
  %v134 = vrot.slane %v35, 7
  %v135 = vsel %vm119, %v126, %v134
  %v136 = vrot.slane %v36, 7
  %v137 = vsel %vm119, %v128, %v136
  %v138 = vrot.slane %v37, 7
  %v139 = vsel %vm119, %v130, %v138
  %v140 = vrot.slane %v38, 7
  %v141 = vsel %vm119, %v132, %v140
  %v142 = vrot.slane %v39, 7
  %v143 = vsel %vm119, %v134, %v142
  %v144 = vrot.slane %v40, 7
  %v145 = vsel %vm119, %v136, %v144
  %v146 = vrot.slane %v41, 7
  %v147 = vsel %vm119, %v138, %v146
  %v164 = vsel %vm119, 0.0, %v120
  %v165 = vsel %vm119, 0.0, %v121
  %v166 = vsel %vm119, 0.0, %v122
  %v167 = vsel %vm119, 0.0, %v123
  %v168 = vsel %vm95, 1, 0
  %v169 = vsel %vm96, 1, 0
  %v170 = vsel %vm97, 1, 0
  %v171 = vsel %vm98, 1, 0
  %vm172 = vcmp.eq.s32.totalorder %v168, 1
  %vm173 = vcmp.eq.s32.totalorder %v169, 1
  %vm174 = vcmp.eq.s32.totalorder %v170, 1
  %vm175 = vcmp.eq.s32.totalorder %v171, 1
  %v176 = vsel %vm172, %v164, 0.0
  %v177 = vsel %vm172, %v165, 0.0
  %v178 = vsel %vm172, %v166, 0.0
  %v179 = vsel %vm172, %v167, 0.0
  %v180 = vsel %vm173, %v125, 0.0
  %v181 = vsel %vm173, %v127, 0.0
  %v182 = vsel %vm173, %v129, 0.0
  %v183 = vsel %vm173, %v131, 0.0
  %v184 = vsel %vm174, %v133, 0.0
  %v185 = vsel %vm174, %v135, 0.0
  %v186 = vsel %vm174, %v137, 0.0
  %v187 = vsel %vm174, %v139, 0.0
  %v188 = vsel %vm175, %v141, 0.0
  %v189 = vsel %vm175, %v143, 0.0
  %v190 = vsel %vm175, %v145, 0.0
  %v191 = vsel %vm175, %v147, 0.0
  %vm192 = vcmask 1046528
  %v193 = vrot.slane %v26, 1
  %v194 = vrot.slane %v30, 1
  %v195 = vsel %vm192, %v193, %v194
  %v196 = vrot.slane %v27, 1
  %v197 = vrot.slane %v31, 1
  %v198 = vsel %vm192, %v196, %v197
  %v199 = vrot.slane %v28, 1
  %v200 = vrot.slane %v32, 1
  %v201 = vsel %vm192, %v199, %v200
  %v202 = vrot.slane %v29, 1
  %v203 = vrot.slane %v33, 1
  %v204 = vsel %vm192, %v202, %v203
  %v205 = vrot.slane %v34, 1
  %v206 = vsel %vm192, %v194, %v205
  %v207 = vrot.slane %v35, 1
  %v208 = vsel %vm192, %v197, %v207
  %v209 = vrot.slane %v36, 1
  %v210 = vsel %vm192, %v200, %v209
  %v211 = vrot.slane %v37, 1
  %v212 = vsel %vm192, %v203, %v211
  %v213 = vrot.slane %v38, 1
  %v214 = vsel %vm192, %v205, %v213
  %v215 = vrot.slane %v39, 1
  %v216 = vsel %vm192, %v207, %v215
  %v217 = vrot.slane %v40, 1
  %v218 = vsel %vm192, %v209, %v217
  %v219 = vrot.slane %v41, 1
  %v220 = vsel %vm192, %v211, %v219
  %v237 = vsel %vm192, %v213, 0.0
  %v238 = vsel %vm192, %v215, 0.0
  %v239 = vsel %vm192, %v217, 0.0
  %v240 = vsel %vm192, %v219, 0.0
  %v241 = vsel %vm99, 1, 0
  %v242 = vsel %vm100, 1, 0
  %v243 = vsel %vm101, 1, 0
  %v244 = vsel %vm102, 1, 0
  %vm245 = vcmp.eq.s32.totalorder %v241, 1
  %vm246 = vcmp.eq.s32.totalorder %v242, 1
  %vm247 = vcmp.eq.s32.totalorder %v243, 1
  %vm248 = vcmp.eq.s32.totalorder %v244, 1
  %v249 = vsel %vm245, %v195, 0.0
  %v250 = vsel %vm245, %v198, 0.0
  %v251 = vsel %vm245, %v201, 0.0
  %v252 = vsel %vm245, %v204, 0.0
  %v253 = vsel %vm246, %v206, 0.0
  %v254 = vsel %vm246, %v208, 0.0
  %v255 = vsel %vm246, %v210, 0.0
  %v256 = vsel %vm246, %v212, 0.0
  %v257 = vsel %vm247, %v214, 0.0
  %v258 = vsel %vm247, %v216, 0.0
  %v259 = vsel %vm247, %v218, 0.0
  %v260 = vsel %vm247, %v220, 0.0
  %v261 = vsel %vm248, %v237, 0.0
  %v262 = vsel %vm248, %v238, 0.0
  %v263 = vsel %vm248, %v239, 0.0
  %v264 = vsel %vm248, %v240, 0.0
  %v265 = vpack.c.bf16 %v180, %v176
  %v266 = vpack.c.bf16 %v181, %v177
  %v267 = vpack.c.bf16 %v182, %v178
  %v268 = vpack.c.bf16 %v183, %v179
  %v269 = vpack.c.bf16 %v188, %v184
  %v270 = vpack.c.bf16 %v189, %v185
  %v271 = vpack.c.bf16 %v190, %v186
  %v272 = vpack.c.bf16 %v191, %v187
  %v273 = vpack.c.bf16 %v30, %v26
  %v274 = vpack.c.bf16 %v31, %v27
  %v275 = vpack.c.bf16 %v32, %v28
  %v276 = vpack.c.bf16 %v33, %v29
  %v277 = vpack.c.bf16 %v38, %v34
  %v278 = vpack.c.bf16 %v39, %v35
  %v279 = vpack.c.bf16 %v40, %v36
  %v280 = vpack.c.bf16 %v41, %v37
  %v281 = vpack.c.bf16 %v253, %v249
  %v282 = vpack.c.bf16 %v254, %v250
  %v283 = vpack.c.bf16 %v255, %v251
  %v284 = vpack.c.bf16 %v256, %v252
  %v285 = vpack.c.bf16 %v261, %v257
  %v286 = vpack.c.bf16 %v262, %v258
  %v287 = vpack.c.bf16 %v263, %v259
  %v288 = vpack.c.bf16 %v264, %v260
  %v289 = vld [vmem:[%s1] sm:$0xff]
  %v290 = vld [vmem:[%s1 + $0x8] sm:$0xff]
  %v291 = vld [vmem:[%s1 + $0x10] sm:$0xff]
  %v292 = vld [vmem:[%s1 + $0x18] sm:$0xff]
  %v293 = vld [vmem:[%s1 + $0x20] sm:$0xff]
  %v294 = vld [vmem:[%s1 + $0x28] sm:$0xff]
  %v295 = vld [vmem:[%s1 + $0x30] sm:$0xff]
  %v296 = vld [vmem:[%s1 + $0x38] sm:$0xff]
  %v297 = vld [vmem:[%s1 + $0x40] sm:$0xff]
  %v298 = vld [vmem:[%s1 + $0x48] sm:$0xff]
  %v299 = vld [vmem:[%s1 + $0x50] sm:$0xff]
  %v300 = vld [vmem:[%s1 + $0x58] sm:$0xff]
  %v301 = vld [vmem:[%s1 + $0x60] sm:$0xff]
  %v302 = vld [vmem:[%s1 + $0x68] sm:$0xff]
  %v303 = vld [vmem:[%s1 + $0x70] sm:$0xff]
  %v304 = vld [vmem:[%s1 + $0x78] sm:$0xff]
  %v305 = vld [vmem:[%s1 + $0x80] sm:$0xff]
  %v306 = vld [vmem:[%s1 + $0x88] sm:$0xff]
  %v307 = vld [vmem:[%s1 + $0x90] sm:$0xff]
  %v308 = vld [vmem:[%s1 + $0x98] sm:$0xff]
  %v309 = vld [vmem:[%s1 + $0xa0] sm:$0xff]
  %v310 = vld [vmem:[%s1 + $0xa8] sm:$0xff]
  %v311 = vld [vmem:[%s1 + $0xb0] sm:$0xff]
  %v312 = vld [vmem:[%s1 + $0xb8] sm:$0xff]
  %v313 = vld [vmem:[%s1 + $0xc0] sm:$0xff]
  %v314 = vld [vmem:[%s1 + $0xc8] sm:$0xff]
  %v315 = vld [vmem:[%s1 + $0xd0] sm:$0xff]
  %v316 = vld [vmem:[%s1 + $0xd8] sm:$0xff]
  %v317 = vld [vmem:[%s1 + $0xe0] sm:$0xff]
  %v318 = vld [vmem:[%s1 + $0xe8] sm:$0xff]
  %v319 = vld [vmem:[%s1 + $0xf0] sm:$0xff]
  %v320 = vld [vmem:[%s1 + $0xf8] sm:$0xff]
  %v321 = vld [vmem:[%s1 + $0x100] sm:$0xff]
  %v322 = vld [vmem:[%s1 + $0x108] sm:$0xff]
  %v323 = vld [vmem:[%s1 + $0x110] sm:$0xff]
  %v324 = vld [vmem:[%s1 + $0x118] sm:$0xff]
  %v325 = vld [vmem:[%s1 + $0x120] sm:$0xff]
  %v326 = vld [vmem:[%s1 + $0x128] sm:$0xff]
  %v327 = vld [vmem:[%s1 + $0x130] sm:$0xff]
  %v328 = vld [vmem:[%s1 + $0x138] sm:$0xff]
  %v329 = vld [vmem:[%s1 + $0x140] sm:$0xff]
  %v330 = vld [vmem:[%s1 + $0x148] sm:$0xff]
  %v331 = vld [vmem:[%s1 + $0x150] sm:$0xff]
  %v332 = vld [vmem:[%s1 + $0x158] sm:$0xff]
  %v333 = vld [vmem:[%s1 + $0x160] sm:$0xff]
  %v334 = vld [vmem:[%s1 + $0x168] sm:$0xff]
  %v335 = vld [vmem:[%s1 + $0x170] sm:$0xff]
  %v336 = vld [vmem:[%s1 + $0x178] sm:$0xff]
  %v337 = vld [vmem:[%s1 + $0x180] sm:$0xff]
  %v338 = vld [vmem:[%s1 + $0x188] sm:$0xff]
  %v339 = vld [vmem:[%s1 + $0x190] sm:$0xff]
  %v340 = vld [vmem:[%s1 + $0x198] sm:$0xff]
  %v341 = vld [vmem:[%s1 + $0x1a0] sm:$0xff]
  %v342 = vld [vmem:[%s1 + $0x1a8] sm:$0xff]
  %v343 = vld [vmem:[%s1 + $0x1b0] sm:$0xff]
  %v344 = vld [vmem:[%s1 + $0x1b8] sm:$0xff]
  %v345 = vld [vmem:[%s1 + $0x1c0] sm:$0xff]
  %v346 = vld [vmem:[%s1 + $0x1c8] sm:$0xff]
  %v347 = vld [vmem:[%s1 + $0x1d0] sm:$0xff]
  %v348 = vld [vmem:[%s1 + $0x1d8] sm:$0xff]
  %v349 = vld [vmem:[%s1 + $0x1e0] sm:$0xff]
  %v350 = vld [vmem:[%s1 + $0x1e8] sm:$0xff]
  %v351 = vld [vmem:[%s1 + $0x1f0] sm:$0xff]
  %v352 = vld [vmem:[%s1 + $0x1f8] sm:$0xff]
  %v353 = vld [vmem:[%s1 + $0x200] sm:$0xff]
  %v354 = vld [vmem:[%s1 + $0x208] sm:$0xff]
  %v355 = vld [vmem:[%s1 + $0x210] sm:$0xff]
  %v356 = vld [vmem:[%s1 + $0x218] sm:$0xff]
  %v357 = vld [vmem:[%s1 + $0x220] sm:$0xff]
  %v358 = vld [vmem:[%s1 + $0x228] sm:$0xff]
  %v359 = vld [vmem:[%s1 + $0x230] sm:$0xff]
  %v360 = vld [vmem:[%s1 + $0x238] sm:$0xff]
  %v361 = vld [vmem:[%s1 + $0x240] sm:$0xff]
  %v362 = vld [vmem:[%s1 + $0x248] sm:$0xff]
  %v363 = vld [vmem:[%s1 + $0x250] sm:$0xff]
  %v364 = vld [vmem:[%s1 + $0x258] sm:$0xff]
  %v365 = vld [vmem:[%s1 + $0x260] sm:$0xff]
  %v366 = vld [vmem:[%s1 + $0x268] sm:$0xff]
  %v367 = vld [vmem:[%s1 + $0x270] sm:$0xff]
  %v368 = vld [vmem:[%s1 + $0x278] sm:$0xff]
  %v369 = vld [vmem:[%s1 + $0x280] sm:$0xff]
  %v370 = vld [vmem:[%s1 + $0x288] sm:$0xff]
  %v371 = vld [vmem:[%s1 + $0x290] sm:$0xff]
  %v372 = vld [vmem:[%s1 + $0x298] sm:$0xff]
  %v373 = vld [vmem:[%s1 + $0x2a0] sm:$0xff]
  %v374 = vld [vmem:[%s1 + $0x2a8] sm:$0xff]
  %v375 = vld [vmem:[%s1 + $0x2b0] sm:$0xff]
  %v376 = vld [vmem:[%s1 + $0x2b8] sm:$0xff]
  %v377 = vld [vmem:[%s1 + $0x2c0] sm:$0xff]
  %v378 = vld [vmem:[%s1 + $0x2c8] sm:$0xff]
  %v379 = vld [vmem:[%s1 + $0x2d0] sm:$0xff]
  %v380 = vld [vmem:[%s1 + $0x2d8] sm:$0xff]
  %v381 = vld [vmem:[%s1 + $0x2e0] sm:$0xff]
  %v382 = vld [vmem:[%s1 + $0x2e8] sm:$0xff]
  %v383 = vld [vmem:[%s1 + $0x2f0] sm:$0xff]
  %v384 = vld [vmem:[%s1 + $0x2f8] sm:$0xff]
  %v385 = vld [vmem:[%s1 + $0x300] sm:$0xff]
  %v386 = vld [vmem:[%s1 + $0x308] sm:$0xff]
  %v387 = vld [vmem:[%s1 + $0x310] sm:$0xff]
  %v388 = vld [vmem:[%s1 + $0x318] sm:$0xff]
  %v389 = vld [vmem:[%s1 + $0x320] sm:$0xff]
  %v390 = vld [vmem:[%s1 + $0x328] sm:$0xff]
  %v391 = vld [vmem:[%s1 + $0x330] sm:$0xff]
  %v392 = vld [vmem:[%s1 + $0x338] sm:$0xff]
  %v393 = vld [vmem:[%s1 + $0x340] sm:$0xff]
  %v394 = vld [vmem:[%s1 + $0x348] sm:$0xff]
  %v395 = vld [vmem:[%s1 + $0x350] sm:$0xff]
  %v396 = vld [vmem:[%s1 + $0x358] sm:$0xff]
  %v397 = vld [vmem:[%s1 + $0x360] sm:$0xff]
  %v398 = vld [vmem:[%s1 + $0x368] sm:$0xff]
  %v399 = vld [vmem:[%s1 + $0x370] sm:$0xff]
  %v400 = vld [vmem:[%s1 + $0x378] sm:$0xff]
  %v401 = vld [vmem:[%s1 + $0x380] sm:$0xff]
  %v402 = vld [vmem:[%s1 + $0x388] sm:$0xff]
  %v403 = vld [vmem:[%s1 + $0x390] sm:$0xff]
  %v404 = vld [vmem:[%s1 + $0x398] sm:$0xff]
  %v405 = vld [vmem:[%s1 + $0x3a0] sm:$0xff]
  %v406 = vld [vmem:[%s1 + $0x3a8] sm:$0xff]
  %v407 = vld [vmem:[%s1 + $0x3b0] sm:$0xff]
  %v408 = vld [vmem:[%s1 + $0x3b8] sm:$0xff]
  %v409 = vld [vmem:[%s1 + $0x3c0] sm:$0xff]
  %v410 = vld [vmem:[%s1 + $0x3c8] sm:$0xff]
  %v411 = vld [vmem:[%s1 + $0x3d0] sm:$0xff]
  %v412 = vld [vmem:[%s1 + $0x3d8] sm:$0xff]
  %v413 = vld [vmem:[%s1 + $0x3e0] sm:$0xff]
  %v414 = vld [vmem:[%s1 + $0x3e8] sm:$0xff]
  %v415 = vld [vmem:[%s1 + $0x3f0] sm:$0xff]
  %v416 = vld [vmem:[%s1 + $0x3f8] sm:$0xff]
  %v417 = vld [vmem:[%s1 + $0x400] sm:$0xff]
  %v418 = vld [vmem:[%s1 + $0x408] sm:$0xff]
  %v419 = vld [vmem:[%s1 + $0x410] sm:$0xff]
  %v420 = vld [vmem:[%s1 + $0x418] sm:$0xff]
  %v421 = vld [vmem:[%s1 + $0x420] sm:$0xff]
  %v422 = vld [vmem:[%s1 + $0x428] sm:$0xff]
  %v423 = vld [vmem:[%s1 + $0x430] sm:$0xff]
  %v424 = vld [vmem:[%s1 + $0x438] sm:$0xff]
  %v425 = vld [vmem:[%s1 + $0x440] sm:$0xff]
  %v426 = vld [vmem:[%s1 + $0x448] sm:$0xff]
  %v427 = vld [vmem:[%s1 + $0x450] sm:$0xff]
  %v428 = vld [vmem:[%s1 + $0x458] sm:$0xff]
  %v429 = vld [vmem:[%s1 + $0x460] sm:$0xff]
  %v430 = vld [vmem:[%s1 + $0x468] sm:$0xff]
  %v431 = vld [vmem:[%s1 + $0x470] sm:$0xff]
  %v432 = vld [vmem:[%s1 + $0x478] sm:$0xff]
  %v433 = vld [vmem:[%s1 + $0x480] sm:$0xff]
  %v434 = vld [vmem:[%s1 + $0x488] sm:$0xff]
  %v435 = vld [vmem:[%s1 + $0x490] sm:$0xff]
  %v436 = vld [vmem:[%s1 + $0x498] sm:$0xff]
  %v437 = vld [vmem:[%s1 + $0x4a0] sm:$0xff]
  %v438 = vld [vmem:[%s1 + $0x4a8] sm:$0xff]
  %v439 = vld [vmem:[%s1 + $0x4b0] sm:$0xff]
  %v440 = vld [vmem:[%s1 + $0x4b8] sm:$0xff]
  %v441 = vld [vmem:[%s1 + $0x4c0] sm:$0xff]
  %v442 = vld [vmem:[%s1 + $0x4c8] sm:$0xff]
  %v443 = vld [vmem:[%s1 + $0x4d0] sm:$0xff]
  %v444 = vld [vmem:[%s1 + $0x4d8] sm:$0xff]
  %v445 = vld [vmem:[%s1 + $0x4e0] sm:$0xff]
  %v446 = vld [vmem:[%s1 + $0x4e8] sm:$0xff]
  %v447 = vld [vmem:[%s1 + $0x4f0] sm:$0xff]
  %v448 = vld [vmem:[%s1 + $0x4f8] sm:$0xff]
  %v449 = vld [vmem:[%s1 + $0x500] sm:$0xff]
  %v450 = vld [vmem:[%s1 + $0x508] sm:$0xff]
  %v451 = vld [vmem:[%s1 + $0x510] sm:$0xff]
  %v452 = vld [vmem:[%s1 + $0x518] sm:$0xff]
  %v453 = vld [vmem:[%s1 + $0x520] sm:$0xff]
  %v454 = vld [vmem:[%s1 + $0x528] sm:$0xff]
  %v455 = vld [vmem:[%s1 + $0x530] sm:$0xff]
  %v456 = vld [vmem:[%s1 + $0x538] sm:$0xff]
  %v457 = vld [vmem:[%s1 + $0x540] sm:$0xff]
  %v458 = vld [vmem:[%s1 + $0x548] sm:$0xff]
  %v459 = vld [vmem:[%s1 + $0x550] sm:$0xff]
  %v460 = vld [vmem:[%s1 + $0x558] sm:$0xff]
  %v461 = vld [vmem:[%s1 + $0x560] sm:$0xff]
  %v462 = vld [vmem:[%s1 + $0x568] sm:$0xff]
  %v463 = vld [vmem:[%s1 + $0x570] sm:$0xff]
  %v464 = vld [vmem:[%s1 + $0x578] sm:$0xff]
  %v465 = vld [vmem:[%s1 + $0x580] sm:$0xff]
  %v466 = vld [vmem:[%s1 + $0x588] sm:$0xff]
  %v467 = vld [vmem:[%s1 + $0x590] sm:$0xff]
  %v468 = vld [vmem:[%s1 + $0x598] sm:$0xff]
  %v469 = vld [vmem:[%s1 + $0x5a0] sm:$0xff]
  %v470 = vld [vmem:[%s1 + $0x5a8] sm:$0xff]
  %v471 = vld [vmem:[%s1 + $0x5b0] sm:$0xff]
  %v472 = vld [vmem:[%s1 + $0x5b8] sm:$0xff]
  %v473 = vld [vmem:[%s1 + $0x5c0] sm:$0xff]
  %v474 = vld [vmem:[%s1 + $0x5c8] sm:$0xff]
  %v475 = vld [vmem:[%s1 + $0x5d0] sm:$0xff]
  %v476 = vld [vmem:[%s1 + $0x5d8] sm:$0xff]
  %v477 = vld [vmem:[%s1 + $0x5e0] sm:$0xff]
  %v478 = vld [vmem:[%s1 + $0x5e8] sm:$0xff]
  %v479 = vld [vmem:[%s1 + $0x5f0] sm:$0xff]
  %v480 = vld [vmem:[%s1 + $0x5f8] sm:$0xff]
  %v481 = vld [vmem:[%s1 + $0x600] sm:$0xff]
  %v482 = vld [vmem:[%s1 + $0x608] sm:$0xff]
  %v483 = vld [vmem:[%s1 + $0x610] sm:$0xff]
  %v484 = vld [vmem:[%s1 + $0x618] sm:$0xff]
  %v485 = vld [vmem:[%s1 + $0x620] sm:$0xff]
  %v486 = vld [vmem:[%s1 + $0x628] sm:$0xff]
  %v487 = vld [vmem:[%s1 + $0x630] sm:$0xff]
  %v488 = vld [vmem:[%s1 + $0x638] sm:$0xff]
  %v489 = vld [vmem:[%s1 + $0x640] sm:$0xff]
  %v490 = vld [vmem:[%s1 + $0x648] sm:$0xff]
  %v491 = vld [vmem:[%s1 + $0x650] sm:$0xff]
  %v492 = vld [vmem:[%s1 + $0x658] sm:$0xff]
  %v493 = vld [vmem:[%s1 + $0x660] sm:$0xff]
  %v494 = vld [vmem:[%s1 + $0x668] sm:$0xff]
  %v495 = vld [vmem:[%s1 + $0x670] sm:$0xff]
  %v496 = vld [vmem:[%s1 + $0x678] sm:$0xff]
  %v497 = vld [vmem:[%s1 + $0x680] sm:$0xff]
  %v498 = vld [vmem:[%s1 + $0x688] sm:$0xff]
  %v499 = vld [vmem:[%s1 + $0x690] sm:$0xff]
  %v500 = vld [vmem:[%s1 + $0x698] sm:$0xff]
  %v501 = vld [vmem:[%s1 + $0x6a0] sm:$0xff]
  %v502 = vld [vmem:[%s1 + $0x6a8] sm:$0xff]
  %v503 = vld [vmem:[%s1 + $0x6b0] sm:$0xff]
  %v504 = vld [vmem:[%s1 + $0x6b8] sm:$0xff]
  %v505 = vld [vmem:[%s1 + $0x6c0] sm:$0xff]
  %v506 = vld [vmem:[%s1 + $0x6c8] sm:$0xff]
  %v507 = vld [vmem:[%s1 + $0x6d0] sm:$0xff]
  %v508 = vld [vmem:[%s1 + $0x6d8] sm:$0xff]
  %v509 = vld [vmem:[%s1 + $0x6e0] sm:$0xff]
  %v510 = vld [vmem:[%s1 + $0x6e8] sm:$0xff]
  %v511 = vld [vmem:[%s1 + $0x6f0] sm:$0xff]
  %v512 = vld [vmem:[%s1 + $0x6f8] sm:$0xff]
  %v513 = vld [vmem:[%s1 + $0x700] sm:$0xff]
  %v514 = vld [vmem:[%s1 + $0x708] sm:$0xff]
  %v515 = vld [vmem:[%s1 + $0x710] sm:$0xff]
  %v516 = vld [vmem:[%s1 + $0x718] sm:$0xff]
  %v517 = vld [vmem:[%s1 + $0x720] sm:$0xff]
  %v518 = vld [vmem:[%s1 + $0x728] sm:$0xff]
  %v519 = vld [vmem:[%s1 + $0x730] sm:$0xff]
  %v520 = vld [vmem:[%s1 + $0x738] sm:$0xff]
  %v521 = vld [vmem:[%s1 + $0x740] sm:$0xff]
  %v522 = vld [vmem:[%s1 + $0x748] sm:$0xff]
  %v523 = vld [vmem:[%s1 + $0x750] sm:$0xff]
  %v524 = vld [vmem:[%s1 + $0x758] sm:$0xff]
  %v525 = vld [vmem:[%s1 + $0x760] sm:$0xff]
  %v526 = vld [vmem:[%s1 + $0x768] sm:$0xff]
  %v527 = vld [vmem:[%s1 + $0x770] sm:$0xff]
  %v528 = vld [vmem:[%s1 + $0x778] sm:$0xff]
  %v529 = vld [vmem:[%s1 + $0x780] sm:$0xff]
  %v530 = vld [vmem:[%s1 + $0x788] sm:$0xff]
  %v531 = vld [vmem:[%s1 + $0x790] sm:$0xff]
  %v532 = vld [vmem:[%s1 + $0x798] sm:$0xff]
  %v533 = vld [vmem:[%s1 + $0x7a0] sm:$0xff]
  %v534 = vld [vmem:[%s1 + $0x7a8] sm:$0xff]
  %v535 = vld [vmem:[%s1 + $0x7b0] sm:$0xff]
  %v536 = vld [vmem:[%s1 + $0x7b8] sm:$0xff]
  %v537 = vld [vmem:[%s1 + $0x7c0] sm:$0xff]
  %v538 = vld [vmem:[%s1 + $0x7c8] sm:$0xff]
  %v539 = vld [vmem:[%s1 + $0x7d0] sm:$0xff]
  %v540 = vld [vmem:[%s1 + $0x7d8] sm:$0xff]
  %v541 = vld [vmem:[%s1 + $0x7e0] sm:$0xff]
  %v542 = vld [vmem:[%s1 + $0x7e8] sm:$0xff]
  %v543 = vld [vmem:[%s1 + $0x7f0] sm:$0xff]
  %v544 = vld [vmem:[%s1 + $0x7f8] sm:$0xff]
  %v545 = vld [vmem:[%s1 + $0x800] sm:$0xff]
  %v546 = vld [vmem:[%s1 + $0x808] sm:$0xff]
  %v547 = vld [vmem:[%s1 + $0x810] sm:$0xff]
  %v548 = vld [vmem:[%s1 + $0x818] sm:$0xff]
  %v549 = vld [vmem:[%s1 + $0x820] sm:$0xff]
  %v550 = vld [vmem:[%s1 + $0x828] sm:$0xff]
  %v551 = vld [vmem:[%s1 + $0x830] sm:$0xff]
  %v552 = vld [vmem:[%s1 + $0x838] sm:$0xff]
  %v553 = vld [vmem:[%s1 + $0x840] sm:$0xff]
  %v554 = vld [vmem:[%s1 + $0x848] sm:$0xff]
  %v555 = vld [vmem:[%s1 + $0x850] sm:$0xff]
  %v556 = vld [vmem:[%s1 + $0x858] sm:$0xff]
  %v557 = vld [vmem:[%s1 + $0x860] sm:$0xff]
  %v558 = vld [vmem:[%s1 + $0x868] sm:$0xff]
  %v559 = vld [vmem:[%s1 + $0x870] sm:$0xff]
  %v560 = vld [vmem:[%s1 + $0x878] sm:$0xff]
  %v561 = vld [vmem:[%s1 + $0x880] sm:$0xff]
  %v562 = vld [vmem:[%s1 + $0x888] sm:$0xff]
  %v563 = vld [vmem:[%s1 + $0x890] sm:$0xff]
  %v564 = vld [vmem:[%s1 + $0x898] sm:$0xff]
  %v565 = vld [vmem:[%s1 + $0x8a0] sm:$0xff]
  %v566 = vld [vmem:[%s1 + $0x8a8] sm:$0xff]
  %v567 = vld [vmem:[%s1 + $0x8b0] sm:$0xff]
  %v568 = vld [vmem:[%s1 + $0x8b8] sm:$0xff]
  %v569 = vld [vmem:[%s1 + $0x8c0] sm:$0xff]
  %v570 = vld [vmem:[%s1 + $0x8c8] sm:$0xff]
  %v571 = vld [vmem:[%s1 + $0x8d0] sm:$0xff]
  %v572 = vld [vmem:[%s1 + $0x8d8] sm:$0xff]
  %v573 = vld [vmem:[%s1 + $0x8e0] sm:$0xff]
  %v574 = vld [vmem:[%s1 + $0x8e8] sm:$0xff]
  %v575 = vld [vmem:[%s1 + $0x8f0] sm:$0xff]
  %v576 = vld [vmem:[%s1 + $0x8f8] sm:$0xff]
  %v577 = vld [vmem:[%s1 + $0x900] sm:$0xff]
  %v578 = vld [vmem:[%s1 + $0x908] sm:$0xff]
  %v579 = vld [vmem:[%s1 + $0x910] sm:$0xff]
  %v580 = vld [vmem:[%s1 + $0x918] sm:$0xff]
  %v581 = vld [vmem:[%s1 + $0x920] sm:$0xff]
  %v582 = vld [vmem:[%s1 + $0x928] sm:$0xff]
  %v583 = vld [vmem:[%s1 + $0x930] sm:$0xff]
  %v584 = vld [vmem:[%s1 + $0x938] sm:$0xff]
  %v585 = vld [vmem:[%s1 + $0x940] sm:$0xff]
  %v586 = vld [vmem:[%s1 + $0x948] sm:$0xff]
  %v587 = vld [vmem:[%s1 + $0x950] sm:$0xff]
  %v588 = vld [vmem:[%s1 + $0x958] sm:$0xff]
  %v589 = vld [vmem:[%s1 + $0x960] sm:$0xff]
  %v590 = vld [vmem:[%s1 + $0x968] sm:$0xff]
  %v591 = vld [vmem:[%s1 + $0x970] sm:$0xff]
  %v592 = vld [vmem:[%s1 + $0x978] sm:$0xff]
  %v593 = vld [vmem:[%s1 + $0x980] sm:$0xff]
  %v594 = vld [vmem:[%s1 + $0x988] sm:$0xff]
  %v595 = vld [vmem:[%s1 + $0x990] sm:$0xff]
  %v596 = vld [vmem:[%s1 + $0x998] sm:$0xff]
  %v597 = vld [vmem:[%s1 + $0x9a0] sm:$0xff]
  %v598 = vld [vmem:[%s1 + $0x9a8] sm:$0xff]
  %v599 = vld [vmem:[%s1 + $0x9b0] sm:$0xff]
  %v600 = vld [vmem:[%s1 + $0x9b8] sm:$0xff]
  %v601 = vld [vmem:[%s1 + $0x9c0] sm:$0xff]
  %v602 = vld [vmem:[%s1 + $0x9c8] sm:$0xff]
  %v603 = vld [vmem:[%s1 + $0x9d0] sm:$0xff]
  %v604 = vld [vmem:[%s1 + $0x9d8] sm:$0xff]
  %v605 = vld [vmem:[%s1 + $0x9e0] sm:$0xff]
  %v606 = vld [vmem:[%s1 + $0x9e8] sm:$0xff]
  %v607 = vld [vmem:[%s1 + $0x9f0] sm:$0xff]
  %v608 = vld [vmem:[%s1 + $0x9f8] sm:$0xff]
  %v609 = vld [vmem:[%s1 + $0xa00] sm:$0xff]
  %v610 = vld [vmem:[%s1 + $0xa08] sm:$0xff]
  %v611 = vld [vmem:[%s1 + $0xa10] sm:$0xff]
  %v612 = vld [vmem:[%s1 + $0xa18] sm:$0xff]
  %v613 = vld [vmem:[%s1 + $0xa20] sm:$0xff]
  %v614 = vld [vmem:[%s1 + $0xa28] sm:$0xff]
  %v615 = vld [vmem:[%s1 + $0xa30] sm:$0xff]
  %v616 = vld [vmem:[%s1 + $0xa38] sm:$0xff]
  %v617 = vld [vmem:[%s1 + $0xa40] sm:$0xff]
  %v618 = vld [vmem:[%s1 + $0xa48] sm:$0xff]
  %v619 = vld [vmem:[%s1 + $0xa50] sm:$0xff]
  %v620 = vld [vmem:[%s1 + $0xa58] sm:$0xff]
  %v621 = vld [vmem:[%s1 + $0xa60] sm:$0xff]
  %v622 = vld [vmem:[%s1 + $0xa68] sm:$0xff]
  %v623 = vld [vmem:[%s1 + $0xa70] sm:$0xff]
  %v624 = vld [vmem:[%s1 + $0xa78] sm:$0xff]
  %v625 = vld [vmem:[%s1 + $0xa80] sm:$0xff]
  %v626 = vld [vmem:[%s1 + $0xa88] sm:$0xff]
  %v627 = vld [vmem:[%s1 + $0xa90] sm:$0xff]
  %v628 = vld [vmem:[%s1 + $0xa98] sm:$0xff]
  %v629 = vld [vmem:[%s1 + $0xaa0] sm:$0xff]
  %v630 = vld [vmem:[%s1 + $0xaa8] sm:$0xff]
  %v631 = vld [vmem:[%s1 + $0xab0] sm:$0xff]
  %v632 = vld [vmem:[%s1 + $0xab8] sm:$0xff]
  %v633 = vld [vmem:[%s1 + $0xac0] sm:$0xff]
  %v634 = vld [vmem:[%s1 + $0xac8] sm:$0xff]
  %v635 = vld [vmem:[%s1 + $0xad0] sm:$0xff]
  %v636 = vld [vmem:[%s1 + $0xad8] sm:$0xff]
  %v637 = vld [vmem:[%s1 + $0xae0] sm:$0xff]
  %v638 = vld [vmem:[%s1 + $0xae8] sm:$0xff]
  %v639 = vld [vmem:[%s1 + $0xaf0] sm:$0xff]
  %v640 = vld [vmem:[%s1 + $0xaf8] sm:$0xff]
  %v641 = vld [vmem:[%s1 + $0xb00] sm:$0xff]
  %v642 = vld [vmem:[%s1 + $0xb08] sm:$0xff]
  %v643 = vld [vmem:[%s1 + $0xb10] sm:$0xff]
  %v644 = vld [vmem:[%s1 + $0xb18] sm:$0xff]
  %v645 = vld [vmem:[%s1 + $0xb20] sm:$0xff]
  %v646 = vld [vmem:[%s1 + $0xb28] sm:$0xff]
  %v647 = vld [vmem:[%s1 + $0xb30] sm:$0xff]
  %v648 = vld [vmem:[%s1 + $0xb38] sm:$0xff]
  %v649 = vld [vmem:[%s1 + $0xb40] sm:$0xff]
  %v650 = vld [vmem:[%s1 + $0xb48] sm:$0xff]
  %v651 = vld [vmem:[%s1 + $0xb50] sm:$0xff]
  %v652 = vld [vmem:[%s1 + $0xb58] sm:$0xff]
  %v653 = vld [vmem:[%s1 + $0xb60] sm:$0xff]
  %v654 = vld [vmem:[%s1 + $0xb68] sm:$0xff]
  %v655 = vld [vmem:[%s1 + $0xb70] sm:$0xff]
  %v656 = vld [vmem:[%s1 + $0xb78] sm:$0xff]
  %v657 = vld [vmem:[%s1 + $0xb80] sm:$0xff]
  %v658 = vld [vmem:[%s1 + $0xb88] sm:$0xff]
  %v659 = vld [vmem:[%s1 + $0xb90] sm:$0xff]
  %v660 = vld [vmem:[%s1 + $0xb98] sm:$0xff]
  %v661 = vld [vmem:[%s1 + $0xba0] sm:$0xff]
  %v662 = vld [vmem:[%s1 + $0xba8] sm:$0xff]
  %v663 = vld [vmem:[%s1 + $0xbb0] sm:$0xff]
  %v664 = vld [vmem:[%s1 + $0xbb8] sm:$0xff]
  %v665 = vld [vmem:[%s1 + $0xbc0] sm:$0xff]
  %v666 = vld [vmem:[%s1 + $0xbc8] sm:$0xff]
  %v667 = vld [vmem:[%s1 + $0xbd0] sm:$0xff]
  %v668 = vld [vmem:[%s1 + $0xbd8] sm:$0xff]
  %v669 = vld [vmem:[%s1 + $0xbe0] sm:$0xff]
  %v670 = vld [vmem:[%s1 + $0xbe8] sm:$0xff]
  %v671 = vld [vmem:[%s1 + $0xbf0] sm:$0xff]
  %v672 = vld [vmem:[%s1 + $0xbf8] sm:$0xff]
  %v1057 = vunpack.c.l.b16 %v289
  %v1058 = vunpack.c.h.b16 %v289
  %v1059 = vunpack.c.l.b16 %v290
  %v1060 = vunpack.c.h.b16 %v290
  %v1061 = vunpack.c.l.b16 %v291
  %v1062 = vunpack.c.h.b16 %v291
  %v1063 = vunpack.c.l.b16 %v292
  %v1064 = vunpack.c.h.b16 %v292
  %v1065 = vunpack.c.l.b16 %v293
  %v1066 = vunpack.c.h.b16 %v293
  %v1067 = vunpack.c.l.b16 %v294
  %v1068 = vunpack.c.h.b16 %v294
  %v1069 = vunpack.c.l.b16 %v295
  %v1070 = vunpack.c.h.b16 %v295
  %v1071 = vunpack.c.l.b16 %v296
  %v1072 = vunpack.c.h.b16 %v296
  %v1073 = vunpack.c.l.b16 %v297
  %v1074 = vunpack.c.h.b16 %v297
  %v1075 = vunpack.c.l.b16 %v298
  %v1076 = vunpack.c.h.b16 %v298
  %v1077 = vunpack.c.l.b16 %v299
  %v1078 = vunpack.c.h.b16 %v299
  %v1079 = vunpack.c.l.b16 %v300
  %v1080 = vunpack.c.h.b16 %v300
  %v1081 = vunpack.c.l.b16 %v301
  %v1082 = vunpack.c.h.b16 %v301
  %v1083 = vunpack.c.l.b16 %v302
  %v1084 = vunpack.c.h.b16 %v302
  %v1085 = vunpack.c.l.b16 %v303
  %v1086 = vunpack.c.h.b16 %v303
  %v1087 = vunpack.c.l.b16 %v304
  %v1088 = vunpack.c.h.b16 %v304
  %v1089 = vunpack.c.l.b16 %v305
  %v1090 = vunpack.c.h.b16 %v305
  %v1091 = vunpack.c.l.b16 %v306
  %v1092 = vunpack.c.h.b16 %v306
  %v1093 = vunpack.c.l.b16 %v307
  %v1094 = vunpack.c.h.b16 %v307
  %v1095 = vunpack.c.l.b16 %v308
  %v1096 = vunpack.c.h.b16 %v308
  %v1097 = vunpack.c.l.b16 %v309
  %v1098 = vunpack.c.h.b16 %v309
  %v1099 = vunpack.c.l.b16 %v310
  %v1100 = vunpack.c.h.b16 %v310
  %v1101 = vunpack.c.l.b16 %v311
  %v1102 = vunpack.c.h.b16 %v311
  %v1103 = vunpack.c.l.b16 %v312
  %v1104 = vunpack.c.h.b16 %v312
  %v1105 = vunpack.c.l.b16 %v313
  %v1106 = vunpack.c.h.b16 %v313
  %v1107 = vunpack.c.l.b16 %v314
  %v1108 = vunpack.c.h.b16 %v314
  %v1109 = vunpack.c.l.b16 %v315
  %v1110 = vunpack.c.h.b16 %v315
  %v1111 = vunpack.c.l.b16 %v316
  %v1112 = vunpack.c.h.b16 %v316
  %v1113 = vunpack.c.l.b16 %v317
  %v1114 = vunpack.c.h.b16 %v317
  %v1115 = vunpack.c.l.b16 %v318
  %v1116 = vunpack.c.h.b16 %v318
  %v1117 = vunpack.c.l.b16 %v319
  %v1118 = vunpack.c.h.b16 %v319
  %v1119 = vunpack.c.l.b16 %v320
  %v1120 = vunpack.c.h.b16 %v320
  %v1121 = vunpack.c.l.b16 %v321
  %v1122 = vunpack.c.h.b16 %v321
  %v1123 = vunpack.c.l.b16 %v322
  %v1124 = vunpack.c.h.b16 %v322
  %v1125 = vunpack.c.l.b16 %v323
  %v1126 = vunpack.c.h.b16 %v323
  %v1127 = vunpack.c.l.b16 %v324
  %v1128 = vunpack.c.h.b16 %v324
  %v1129 = vunpack.c.l.b16 %v325
  %v1130 = vunpack.c.h.b16 %v325
  %v1131 = vunpack.c.l.b16 %v326
  %v1132 = vunpack.c.h.b16 %v326
  %v1133 = vunpack.c.l.b16 %v327
  %v1134 = vunpack.c.h.b16 %v327
  %v1135 = vunpack.c.l.b16 %v328
  %v1136 = vunpack.c.h.b16 %v328
  %v1137 = vunpack.c.l.b16 %v329
  %v1138 = vunpack.c.h.b16 %v329
  %v1139 = vunpack.c.l.b16 %v330
  %v1140 = vunpack.c.h.b16 %v330
  %v1141 = vunpack.c.l.b16 %v331
  %v1142 = vunpack.c.h.b16 %v331
  %v1143 = vunpack.c.l.b16 %v332
  %v1144 = vunpack.c.h.b16 %v332
  %v1145 = vunpack.c.l.b16 %v333
  %v1146 = vunpack.c.h.b16 %v333
  %v1147 = vunpack.c.l.b16 %v334
  %v1148 = vunpack.c.h.b16 %v334
  %v1149 = vunpack.c.l.b16 %v335
  %v1150 = vunpack.c.h.b16 %v335
  %v1151 = vunpack.c.l.b16 %v336
  %v1152 = vunpack.c.h.b16 %v336
  %v1153 = vunpack.c.l.b16 %v337
  %v1154 = vunpack.c.h.b16 %v337
  %v1155 = vunpack.c.l.b16 %v338
  %v1156 = vunpack.c.h.b16 %v338
  %v1157 = vunpack.c.l.b16 %v339
  %v1158 = vunpack.c.h.b16 %v339
  %v1159 = vunpack.c.l.b16 %v340
  %v1160 = vunpack.c.h.b16 %v340
  %v1161 = vunpack.c.l.b16 %v341
  %v1162 = vunpack.c.h.b16 %v341
  %v1163 = vunpack.c.l.b16 %v342
  %v1164 = vunpack.c.h.b16 %v342
  %v1165 = vunpack.c.l.b16 %v343
  %v1166 = vunpack.c.h.b16 %v343
  %v1167 = vunpack.c.l.b16 %v344
  %v1168 = vunpack.c.h.b16 %v344
  %v1169 = vunpack.c.l.b16 %v345
  %v1170 = vunpack.c.h.b16 %v345
  %v1171 = vunpack.c.l.b16 %v346
  %v1172 = vunpack.c.h.b16 %v346
  %v1173 = vunpack.c.l.b16 %v347
  %v1174 = vunpack.c.h.b16 %v347
  %v1175 = vunpack.c.l.b16 %v348
  %v1176 = vunpack.c.h.b16 %v348
  %v1177 = vunpack.c.l.b16 %v349
  %v1178 = vunpack.c.h.b16 %v349
  %v1179 = vunpack.c.l.b16 %v350
  %v1180 = vunpack.c.h.b16 %v350
  %v1181 = vunpack.c.l.b16 %v351
  %v1182 = vunpack.c.h.b16 %v351
  %v1183 = vunpack.c.l.b16 %v352
  %v1184 = vunpack.c.h.b16 %v352
  %v1185 = vunpack.c.l.b16 %v353
  %v1186 = vunpack.c.h.b16 %v353
  %v1187 = vunpack.c.l.b16 %v354
  %v1188 = vunpack.c.h.b16 %v354
  %v1189 = vunpack.c.l.b16 %v355
  %v1190 = vunpack.c.h.b16 %v355
  %v1191 = vunpack.c.l.b16 %v356
  %v1192 = vunpack.c.h.b16 %v356
  %v1193 = vunpack.c.l.b16 %v357
  %v1194 = vunpack.c.h.b16 %v357
  %v1195 = vunpack.c.l.b16 %v358
  %v1196 = vunpack.c.h.b16 %v358
  %v1197 = vunpack.c.l.b16 %v359
  %v1198 = vunpack.c.h.b16 %v359
  %v1199 = vunpack.c.l.b16 %v360
  %v1200 = vunpack.c.h.b16 %v360
  %v1201 = vunpack.c.l.b16 %v361
  %v1202 = vunpack.c.h.b16 %v361
  %v1203 = vunpack.c.l.b16 %v362
  %v1204 = vunpack.c.h.b16 %v362
  %v1205 = vunpack.c.l.b16 %v363
  %v1206 = vunpack.c.h.b16 %v363
  %v1207 = vunpack.c.l.b16 %v364
  %v1208 = vunpack.c.h.b16 %v364
  %v1209 = vunpack.c.l.b16 %v365
  %v1210 = vunpack.c.h.b16 %v365
  %v1211 = vunpack.c.l.b16 %v366
  %v1212 = vunpack.c.h.b16 %v366
  %v1213 = vunpack.c.l.b16 %v367
  %v1214 = vunpack.c.h.b16 %v367
  %v1215 = vunpack.c.l.b16 %v368
  %v1216 = vunpack.c.h.b16 %v368
  %v1217 = vunpack.c.l.b16 %v369
  %v1218 = vunpack.c.h.b16 %v369
  %v1219 = vunpack.c.l.b16 %v370
  %v1220 = vunpack.c.h.b16 %v370
  %v1221 = vunpack.c.l.b16 %v371
  %v1222 = vunpack.c.h.b16 %v371
  %v1223 = vunpack.c.l.b16 %v372
  %v1224 = vunpack.c.h.b16 %v372
  %v1225 = vunpack.c.l.b16 %v373
  %v1226 = vunpack.c.h.b16 %v373
  %v1227 = vunpack.c.l.b16 %v374
  %v1228 = vunpack.c.h.b16 %v374
  %v1229 = vunpack.c.l.b16 %v375
  %v1230 = vunpack.c.h.b16 %v375
  %v1231 = vunpack.c.l.b16 %v376
  %v1232 = vunpack.c.h.b16 %v376
  %v1233 = vunpack.c.l.b16 %v377
  %v1234 = vunpack.c.h.b16 %v377
  %v1235 = vunpack.c.l.b16 %v378
  %v1236 = vunpack.c.h.b16 %v378
  %v1237 = vunpack.c.l.b16 %v379
  %v1238 = vunpack.c.h.b16 %v379
  %v1239 = vunpack.c.l.b16 %v380
  %v1240 = vunpack.c.h.b16 %v380
  %v1241 = vunpack.c.l.b16 %v381
  %v1242 = vunpack.c.h.b16 %v381
  %v1243 = vunpack.c.l.b16 %v382
  %v1244 = vunpack.c.h.b16 %v382
  %v1245 = vunpack.c.l.b16 %v383
  %v1246 = vunpack.c.h.b16 %v383
  %v1247 = vunpack.c.l.b16 %v384
  %v1248 = vunpack.c.h.b16 %v384
  %v1249 = vunpack.c.l.b16 %v385
  %v1250 = vunpack.c.h.b16 %v385
  %v1251 = vunpack.c.l.b16 %v386
  %v1252 = vunpack.c.h.b16 %v386
  %v1253 = vunpack.c.l.b16 %v387
  %v1254 = vunpack.c.h.b16 %v387
  %v1255 = vunpack.c.l.b16 %v388
  %v1256 = vunpack.c.h.b16 %v388
  %v1257 = vunpack.c.l.b16 %v389
  %v1258 = vunpack.c.h.b16 %v389
  %v1259 = vunpack.c.l.b16 %v390
  %v1260 = vunpack.c.h.b16 %v390
  %v1261 = vunpack.c.l.b16 %v391
  %v1262 = vunpack.c.h.b16 %v391
  %v1263 = vunpack.c.l.b16 %v392
  %v1264 = vunpack.c.h.b16 %v392
  %v1265 = vunpack.c.l.b16 %v393
  %v1266 = vunpack.c.h.b16 %v393
  %v1267 = vunpack.c.l.b16 %v394
  %v1268 = vunpack.c.h.b16 %v394
  %v1269 = vunpack.c.l.b16 %v395
  %v1270 = vunpack.c.h.b16 %v395
  %v1271 = vunpack.c.l.b16 %v396
  %v1272 = vunpack.c.h.b16 %v396
  %v1273 = vunpack.c.l.b16 %v397
  %v1274 = vunpack.c.h.b16 %v397
  %v1275 = vunpack.c.l.b16 %v398
  %v1276 = vunpack.c.h.b16 %v398
  %v1277 = vunpack.c.l.b16 %v399
  %v1278 = vunpack.c.h.b16 %v399
  %v1279 = vunpack.c.l.b16 %v400
  %v1280 = vunpack.c.h.b16 %v400
  %v1281 = vunpack.c.l.b16 %v401
  %v1282 = vunpack.c.h.b16 %v401
  %v1283 = vunpack.c.l.b16 %v402
  %v1284 = vunpack.c.h.b16 %v402
  %v1285 = vunpack.c.l.b16 %v403
  %v1286 = vunpack.c.h.b16 %v403
  %v1287 = vunpack.c.l.b16 %v404
  %v1288 = vunpack.c.h.b16 %v404
  %v1289 = vunpack.c.l.b16 %v405
  %v1290 = vunpack.c.h.b16 %v405
  %v1291 = vunpack.c.l.b16 %v406
  %v1292 = vunpack.c.h.b16 %v406
  %v1293 = vunpack.c.l.b16 %v407
  %v1294 = vunpack.c.h.b16 %v407
  %v1295 = vunpack.c.l.b16 %v408
  %v1296 = vunpack.c.h.b16 %v408
  %v1297 = vunpack.c.l.b16 %v409
  %v1298 = vunpack.c.h.b16 %v409
  %v1299 = vunpack.c.l.b16 %v410
  %v1300 = vunpack.c.h.b16 %v410
  %v1301 = vunpack.c.l.b16 %v411
  %v1302 = vunpack.c.h.b16 %v411
  %v1303 = vunpack.c.l.b16 %v412
  %v1304 = vunpack.c.h.b16 %v412
  %v1305 = vunpack.c.l.b16 %v413
  %v1306 = vunpack.c.h.b16 %v413
  %v1307 = vunpack.c.l.b16 %v414
  %v1308 = vunpack.c.h.b16 %v414
  %v1309 = vunpack.c.l.b16 %v415
  %v1310 = vunpack.c.h.b16 %v415
  %v1311 = vunpack.c.l.b16 %v416
  %v1312 = vunpack.c.h.b16 %v416
  %v1313 = vunpack.c.l.b16 %v417
  %v1314 = vunpack.c.h.b16 %v417
  %v1315 = vunpack.c.l.b16 %v418
  %v1316 = vunpack.c.h.b16 %v418
  %v1317 = vunpack.c.l.b16 %v419
  %v1318 = vunpack.c.h.b16 %v419
  %v1319 = vunpack.c.l.b16 %v420
  %v1320 = vunpack.c.h.b16 %v420
  %v1321 = vunpack.c.l.b16 %v421
  %v1322 = vunpack.c.h.b16 %v421
  %v1323 = vunpack.c.l.b16 %v422
  %v1324 = vunpack.c.h.b16 %v422
  %v1325 = vunpack.c.l.b16 %v423
  %v1326 = vunpack.c.h.b16 %v423
  %v1327 = vunpack.c.l.b16 %v424
  %v1328 = vunpack.c.h.b16 %v424
  %v1329 = vunpack.c.l.b16 %v425
  %v1330 = vunpack.c.h.b16 %v425
  %v1331 = vunpack.c.l.b16 %v426
  %v1332 = vunpack.c.h.b16 %v426
  %v1333 = vunpack.c.l.b16 %v427
  %v1334 = vunpack.c.h.b16 %v427
  %v1335 = vunpack.c.l.b16 %v428
  %v1336 = vunpack.c.h.b16 %v428
  %v1337 = vunpack.c.l.b16 %v429
  %v1338 = vunpack.c.h.b16 %v429
  %v1339 = vunpack.c.l.b16 %v430
  %v1340 = vunpack.c.h.b16 %v430
  %v1341 = vunpack.c.l.b16 %v431
  %v1342 = vunpack.c.h.b16 %v431
  %v1343 = vunpack.c.l.b16 %v432
  %v1344 = vunpack.c.h.b16 %v432
  %v1345 = vunpack.c.l.b16 %v433
  %v1346 = vunpack.c.h.b16 %v433
  %v1347 = vunpack.c.l.b16 %v434
  %v1348 = vunpack.c.h.b16 %v434
  %v1349 = vunpack.c.l.b16 %v435
  %v1350 = vunpack.c.h.b16 %v435
  %v1351 = vunpack.c.l.b16 %v436
  %v1352 = vunpack.c.h.b16 %v436
  %v1353 = vunpack.c.l.b16 %v437
  %v1354 = vunpack.c.h.b16 %v437
  %v1355 = vunpack.c.l.b16 %v438
  %v1356 = vunpack.c.h.b16 %v438
  %v1357 = vunpack.c.l.b16 %v439
  %v1358 = vunpack.c.h.b16 %v439
  %v1359 = vunpack.c.l.b16 %v440
  %v1360 = vunpack.c.h.b16 %v440
  %v1361 = vunpack.c.l.b16 %v441
  %v1362 = vunpack.c.h.b16 %v441
  %v1363 = vunpack.c.l.b16 %v442
  %v1364 = vunpack.c.h.b16 %v442
  %v1365 = vunpack.c.l.b16 %v443
  %v1366 = vunpack.c.h.b16 %v443
  %v1367 = vunpack.c.l.b16 %v444
  %v1368 = vunpack.c.h.b16 %v444
  %v1369 = vunpack.c.l.b16 %v445
  %v1370 = vunpack.c.h.b16 %v445
  %v1371 = vunpack.c.l.b16 %v446
  %v1372 = vunpack.c.h.b16 %v446
  %v1373 = vunpack.c.l.b16 %v447
  %v1374 = vunpack.c.h.b16 %v447
  %v1375 = vunpack.c.l.b16 %v448
  %v1376 = vunpack.c.h.b16 %v448
  %v1377 = vunpack.c.l.b16 %v449
  %v1378 = vunpack.c.h.b16 %v449
  %v1379 = vunpack.c.l.b16 %v450
  %v1380 = vunpack.c.h.b16 %v450
  %v1381 = vunpack.c.l.b16 %v451
  %v1382 = vunpack.c.h.b16 %v451
  %v1383 = vunpack.c.l.b16 %v452
  %v1384 = vunpack.c.h.b16 %v452
  %v1385 = vunpack.c.l.b16 %v453
  %v1386 = vunpack.c.h.b16 %v453
  %v1387 = vunpack.c.l.b16 %v454
  %v1388 = vunpack.c.h.b16 %v454
  %v1389 = vunpack.c.l.b16 %v455
  %v1390 = vunpack.c.h.b16 %v455
  %v1391 = vunpack.c.l.b16 %v456
  %v1392 = vunpack.c.h.b16 %v456
  %v1393 = vunpack.c.l.b16 %v457
  %v1394 = vunpack.c.h.b16 %v457
  %v1395 = vunpack.c.l.b16 %v458
  %v1396 = vunpack.c.h.b16 %v458
  %v1397 = vunpack.c.l.b16 %v459
  %v1398 = vunpack.c.h.b16 %v459
  %v1399 = vunpack.c.l.b16 %v460
  %v1400 = vunpack.c.h.b16 %v460
  %v1401 = vunpack.c.l.b16 %v461
  %v1402 = vunpack.c.h.b16 %v461
  %v1403 = vunpack.c.l.b16 %v462
  %v1404 = vunpack.c.h.b16 %v462
  %v1405 = vunpack.c.l.b16 %v463
  %v1406 = vunpack.c.h.b16 %v463
  %v1407 = vunpack.c.l.b16 %v464
  %v1408 = vunpack.c.h.b16 %v464
  %v1409 = vunpack.c.l.b16 %v465
  %v1410 = vunpack.c.h.b16 %v465
  %v1411 = vunpack.c.l.b16 %v466
  %v1412 = vunpack.c.h.b16 %v466
  %v1413 = vunpack.c.l.b16 %v467
  %v1414 = vunpack.c.h.b16 %v467
  %v1415 = vunpack.c.l.b16 %v468
  %v1416 = vunpack.c.h.b16 %v468
  %v1417 = vunpack.c.l.b16 %v469
  %v1418 = vunpack.c.h.b16 %v469
  %v1419 = vunpack.c.l.b16 %v470
  %v1420 = vunpack.c.h.b16 %v470
  %v1421 = vunpack.c.l.b16 %v471
  %v1422 = vunpack.c.h.b16 %v471
  %v1423 = vunpack.c.l.b16 %v472
  %v1424 = vunpack.c.h.b16 %v472
  %v1425 = vunpack.c.l.b16 %v473
  %v1426 = vunpack.c.h.b16 %v473
  %v1427 = vunpack.c.l.b16 %v474
  %v1428 = vunpack.c.h.b16 %v474
  %v1429 = vunpack.c.l.b16 %v475
  %v1430 = vunpack.c.h.b16 %v475
  %v1431 = vunpack.c.l.b16 %v476
  %v1432 = vunpack.c.h.b16 %v476
  %v1433 = vunpack.c.l.b16 %v477
  %v1434 = vunpack.c.h.b16 %v477
  %v1435 = vunpack.c.l.b16 %v478
  %v1436 = vunpack.c.h.b16 %v478
  %v1437 = vunpack.c.l.b16 %v479
  %v1438 = vunpack.c.h.b16 %v479
  %v1439 = vunpack.c.l.b16 %v480
  %v1440 = vunpack.c.h.b16 %v480
  %v1441 = vunpack.c.l.b16 %v481
  %v1442 = vunpack.c.h.b16 %v481
  %v1443 = vunpack.c.l.b16 %v482
  %v1444 = vunpack.c.h.b16 %v482
  %v1445 = vunpack.c.l.b16 %v483
  %v1446 = vunpack.c.h.b16 %v483
  %v1447 = vunpack.c.l.b16 %v484
  %v1448 = vunpack.c.h.b16 %v484
  %v1449 = vunpack.c.l.b16 %v485
  %v1450 = vunpack.c.h.b16 %v485
  %v1451 = vunpack.c.l.b16 %v486
  %v1452 = vunpack.c.h.b16 %v486
  %v1453 = vunpack.c.l.b16 %v487
  %v1454 = vunpack.c.h.b16 %v487
  %v1455 = vunpack.c.l.b16 %v488
  %v1456 = vunpack.c.h.b16 %v488
  %v1457 = vunpack.c.l.b16 %v489
  %v1458 = vunpack.c.h.b16 %v489
  %v1459 = vunpack.c.l.b16 %v490
  %v1460 = vunpack.c.h.b16 %v490
  %v1461 = vunpack.c.l.b16 %v491
  %v1462 = vunpack.c.h.b16 %v491
  %v1463 = vunpack.c.l.b16 %v492
  %v1464 = vunpack.c.h.b16 %v492
  %v1465 = vunpack.c.l.b16 %v493
  %v1466 = vunpack.c.h.b16 %v493
  %v1467 = vunpack.c.l.b16 %v494
  %v1468 = vunpack.c.h.b16 %v494
  %v1469 = vunpack.c.l.b16 %v495
  %v1470 = vunpack.c.h.b16 %v495
  %v1471 = vunpack.c.l.b16 %v496
  %v1472 = vunpack.c.h.b16 %v496
  %v1473 = vunpack.c.l.b16 %v497
  %v1474 = vunpack.c.h.b16 %v497
  %v1475 = vunpack.c.l.b16 %v498
  %v1476 = vunpack.c.h.b16 %v498
  %v1477 = vunpack.c.l.b16 %v499
  %v1478 = vunpack.c.h.b16 %v499
  %v1479 = vunpack.c.l.b16 %v500
  %v1480 = vunpack.c.h.b16 %v500
  %v1481 = vunpack.c.l.b16 %v501
  %v1482 = vunpack.c.h.b16 %v501
  %v1483 = vunpack.c.l.b16 %v502
  %v1484 = vunpack.c.h.b16 %v502
  %v1485 = vunpack.c.l.b16 %v503
  %v1486 = vunpack.c.h.b16 %v503
  %v1487 = vunpack.c.l.b16 %v504
  %v1488 = vunpack.c.h.b16 %v504
  %v1489 = vunpack.c.l.b16 %v505
  %v1490 = vunpack.c.h.b16 %v505
  %v1491 = vunpack.c.l.b16 %v506
  %v1492 = vunpack.c.h.b16 %v506
  %v1493 = vunpack.c.l.b16 %v507
  %v1494 = vunpack.c.h.b16 %v507
  %v1495 = vunpack.c.l.b16 %v508
  %v1496 = vunpack.c.h.b16 %v508
  %v1497 = vunpack.c.l.b16 %v509
  %v1498 = vunpack.c.h.b16 %v509
  %v1499 = vunpack.c.l.b16 %v510
  %v1500 = vunpack.c.h.b16 %v510
  %v1501 = vunpack.c.l.b16 %v511
  %v1502 = vunpack.c.h.b16 %v511
  %v1503 = vunpack.c.l.b16 %v512
  %v1504 = vunpack.c.h.b16 %v512
  %v1505 = vunpack.c.l.b16 %v513
  %v1506 = vunpack.c.h.b16 %v513
  %v1507 = vunpack.c.l.b16 %v514
  %v1508 = vunpack.c.h.b16 %v514
  %v1509 = vunpack.c.l.b16 %v515
  %v1510 = vunpack.c.h.b16 %v515
  %v1511 = vunpack.c.l.b16 %v516
  %v1512 = vunpack.c.h.b16 %v516
  %v1513 = vunpack.c.l.b16 %v517
  %v1514 = vunpack.c.h.b16 %v517
  %v1515 = vunpack.c.l.b16 %v518
  %v1516 = vunpack.c.h.b16 %v518
  %v1517 = vunpack.c.l.b16 %v519
  %v1518 = vunpack.c.h.b16 %v519
  %v1519 = vunpack.c.l.b16 %v520
  %v1520 = vunpack.c.h.b16 %v520
  %v1521 = vunpack.c.l.b16 %v521
  %v1522 = vunpack.c.h.b16 %v521
  %v1523 = vunpack.c.l.b16 %v522
  %v1524 = vunpack.c.h.b16 %v522
  %v1525 = vunpack.c.l.b16 %v523
  %v1526 = vunpack.c.h.b16 %v523
  %v1527 = vunpack.c.l.b16 %v524
  %v1528 = vunpack.c.h.b16 %v524
  %v1529 = vunpack.c.l.b16 %v525
  %v1530 = vunpack.c.h.b16 %v525
  %v1531 = vunpack.c.l.b16 %v526
  %v1532 = vunpack.c.h.b16 %v526
  %v1533 = vunpack.c.l.b16 %v527
  %v1534 = vunpack.c.h.b16 %v527
  %v1535 = vunpack.c.l.b16 %v528
  %v1536 = vunpack.c.h.b16 %v528
  %v1537 = vunpack.c.l.b16 %v529
  %v1538 = vunpack.c.h.b16 %v529
  %v1539 = vunpack.c.l.b16 %v530
  %v1540 = vunpack.c.h.b16 %v530
  %v1541 = vunpack.c.l.b16 %v531
  %v1542 = vunpack.c.h.b16 %v531
  %v1543 = vunpack.c.l.b16 %v532
  %v1544 = vunpack.c.h.b16 %v532
  %v1545 = vunpack.c.l.b16 %v533
  %v1546 = vunpack.c.h.b16 %v533
  %v1547 = vunpack.c.l.b16 %v534
  %v1548 = vunpack.c.h.b16 %v534
  %v1549 = vunpack.c.l.b16 %v535
  %v1550 = vunpack.c.h.b16 %v535
  %v1551 = vunpack.c.l.b16 %v536
  %v1552 = vunpack.c.h.b16 %v536
  %v1553 = vunpack.c.l.b16 %v537
  %v1554 = vunpack.c.h.b16 %v537
  %v1555 = vunpack.c.l.b16 %v538
  %v1556 = vunpack.c.h.b16 %v538
  %v1557 = vunpack.c.l.b16 %v539
  %v1558 = vunpack.c.h.b16 %v539
  %v1559 = vunpack.c.l.b16 %v540
  %v1560 = vunpack.c.h.b16 %v540
  %v1561 = vunpack.c.l.b16 %v541
  %v1562 = vunpack.c.h.b16 %v541
  %v1563 = vunpack.c.l.b16 %v542
  %v1564 = vunpack.c.h.b16 %v542
  %v1565 = vunpack.c.l.b16 %v543
  %v1566 = vunpack.c.h.b16 %v543
  %v1567 = vunpack.c.l.b16 %v544
  %v1568 = vunpack.c.h.b16 %v544
  %v1569 = vunpack.c.l.b16 %v545
  %v1570 = vunpack.c.h.b16 %v545
  %v1571 = vunpack.c.l.b16 %v546
  %v1572 = vunpack.c.h.b16 %v546
  %v1573 = vunpack.c.l.b16 %v547
  %v1574 = vunpack.c.h.b16 %v547
  %v1575 = vunpack.c.l.b16 %v548
  %v1576 = vunpack.c.h.b16 %v548
  %v1577 = vunpack.c.l.b16 %v549
  %v1578 = vunpack.c.h.b16 %v549
  %v1579 = vunpack.c.l.b16 %v550
  %v1580 = vunpack.c.h.b16 %v550
  %v1581 = vunpack.c.l.b16 %v551
  %v1582 = vunpack.c.h.b16 %v551
  %v1583 = vunpack.c.l.b16 %v552
  %v1584 = vunpack.c.h.b16 %v552
  %v1585 = vunpack.c.l.b16 %v553
  %v1586 = vunpack.c.h.b16 %v553
  %v1587 = vunpack.c.l.b16 %v554
  %v1588 = vunpack.c.h.b16 %v554
  %v1589 = vunpack.c.l.b16 %v555
  %v1590 = vunpack.c.h.b16 %v555
  %v1591 = vunpack.c.l.b16 %v556
  %v1592 = vunpack.c.h.b16 %v556
  %v1593 = vunpack.c.l.b16 %v557
  %v1594 = vunpack.c.h.b16 %v557
  %v1595 = vunpack.c.l.b16 %v558
  %v1596 = vunpack.c.h.b16 %v558
  %v1597 = vunpack.c.l.b16 %v559
  %v1598 = vunpack.c.h.b16 %v559
  %v1599 = vunpack.c.l.b16 %v560
  %v1600 = vunpack.c.h.b16 %v560
  %v1601 = vunpack.c.l.b16 %v561
  %v1602 = vunpack.c.h.b16 %v561
  %v1603 = vunpack.c.l.b16 %v562
  %v1604 = vunpack.c.h.b16 %v562
  %v1605 = vunpack.c.l.b16 %v563
  %v1606 = vunpack.c.h.b16 %v563
  %v1607 = vunpack.c.l.b16 %v564
  %v1608 = vunpack.c.h.b16 %v564
  %v1609 = vunpack.c.l.b16 %v565
  %v1610 = vunpack.c.h.b16 %v565
  %v1611 = vunpack.c.l.b16 %v566
  %v1612 = vunpack.c.h.b16 %v566
  %v1613 = vunpack.c.l.b16 %v567
  %v1614 = vunpack.c.h.b16 %v567
  %v1615 = vunpack.c.l.b16 %v568
  %v1616 = vunpack.c.h.b16 %v568
  %v1617 = vunpack.c.l.b16 %v569
  %v1618 = vunpack.c.h.b16 %v569
  %v1619 = vunpack.c.l.b16 %v570
  %v1620 = vunpack.c.h.b16 %v570
  %v1621 = vunpack.c.l.b16 %v571
  %v1622 = vunpack.c.h.b16 %v571
  %v1623 = vunpack.c.l.b16 %v572
  %v1624 = vunpack.c.h.b16 %v572
  %v1625 = vunpack.c.l.b16 %v573
  %v1626 = vunpack.c.h.b16 %v573
  %v1627 = vunpack.c.l.b16 %v574
  %v1628 = vunpack.c.h.b16 %v574
  %v1629 = vunpack.c.l.b16 %v575
  %v1630 = vunpack.c.h.b16 %v575
  %v1631 = vunpack.c.l.b16 %v576
  %v1632 = vunpack.c.h.b16 %v576
  %v1633 = vunpack.c.l.b16 %v577
  %v1634 = vunpack.c.h.b16 %v577
  %v1635 = vunpack.c.l.b16 %v578
  %v1636 = vunpack.c.h.b16 %v578
  %v1637 = vunpack.c.l.b16 %v579
  %v1638 = vunpack.c.h.b16 %v579
  %v1639 = vunpack.c.l.b16 %v580
  %v1640 = vunpack.c.h.b16 %v580
  %v1641 = vunpack.c.l.b16 %v581
  %v1642 = vunpack.c.h.b16 %v581
  %v1643 = vunpack.c.l.b16 %v582
  %v1644 = vunpack.c.h.b16 %v582
  %v1645 = vunpack.c.l.b16 %v583
  %v1646 = vunpack.c.h.b16 %v583
  %v1647 = vunpack.c.l.b16 %v584
  %v1648 = vunpack.c.h.b16 %v584
  %v1649 = vunpack.c.l.b16 %v585
  %v1650 = vunpack.c.h.b16 %v585
  %v1651 = vunpack.c.l.b16 %v586
  %v1652 = vunpack.c.h.b16 %v586
  %v1653 = vunpack.c.l.b16 %v587
  %v1654 = vunpack.c.h.b16 %v587
  %v1655 = vunpack.c.l.b16 %v588
  %v1656 = vunpack.c.h.b16 %v588
  %v1657 = vunpack.c.l.b16 %v589
  %v1658 = vunpack.c.h.b16 %v589
  %v1659 = vunpack.c.l.b16 %v590
  %v1660 = vunpack.c.h.b16 %v590
  %v1661 = vunpack.c.l.b16 %v591
  %v1662 = vunpack.c.h.b16 %v591
  %v1663 = vunpack.c.l.b16 %v592
  %v1664 = vunpack.c.h.b16 %v592
  %v1665 = vunpack.c.l.b16 %v593
  %v1666 = vunpack.c.h.b16 %v593
  %v1667 = vunpack.c.l.b16 %v594
  %v1668 = vunpack.c.h.b16 %v594
  %v1669 = vunpack.c.l.b16 %v595
  %v1670 = vunpack.c.h.b16 %v595
  %v1671 = vunpack.c.l.b16 %v596
  %v1672 = vunpack.c.h.b16 %v596
  %v1673 = vunpack.c.l.b16 %v597
  %v1674 = vunpack.c.h.b16 %v597
  %v1675 = vunpack.c.l.b16 %v598
  %v1676 = vunpack.c.h.b16 %v598
  %v1677 = vunpack.c.l.b16 %v599
  %v1678 = vunpack.c.h.b16 %v599
  %v1679 = vunpack.c.l.b16 %v600
  %v1680 = vunpack.c.h.b16 %v600
  %v1681 = vunpack.c.l.b16 %v601
  %v1682 = vunpack.c.h.b16 %v601
  %v1683 = vunpack.c.l.b16 %v602
  %v1684 = vunpack.c.h.b16 %v602
  %v1685 = vunpack.c.l.b16 %v603
  %v1686 = vunpack.c.h.b16 %v603
  %v1687 = vunpack.c.l.b16 %v604
  %v1688 = vunpack.c.h.b16 %v604
  %v1689 = vunpack.c.l.b16 %v605
  %v1690 = vunpack.c.h.b16 %v605
  %v1691 = vunpack.c.l.b16 %v606
  %v1692 = vunpack.c.h.b16 %v606
  %v1693 = vunpack.c.l.b16 %v607
  %v1694 = vunpack.c.h.b16 %v607
  %v1695 = vunpack.c.l.b16 %v608
  %v1696 = vunpack.c.h.b16 %v608
  %v1697 = vunpack.c.l.b16 %v609
  %v1698 = vunpack.c.h.b16 %v609
  %v1699 = vunpack.c.l.b16 %v610
  %v1700 = vunpack.c.h.b16 %v610
  %v1701 = vunpack.c.l.b16 %v611
  %v1702 = vunpack.c.h.b16 %v611
  %v1703 = vunpack.c.l.b16 %v612
  %v1704 = vunpack.c.h.b16 %v612
  %v1705 = vunpack.c.l.b16 %v613
  %v1706 = vunpack.c.h.b16 %v613
  %v1707 = vunpack.c.l.b16 %v614
  %v1708 = vunpack.c.h.b16 %v614
  %v1709 = vunpack.c.l.b16 %v615
  %v1710 = vunpack.c.h.b16 %v615
  %v1711 = vunpack.c.l.b16 %v616
  %v1712 = vunpack.c.h.b16 %v616
  %v1713 = vunpack.c.l.b16 %v617
  %v1714 = vunpack.c.h.b16 %v617
  %v1715 = vunpack.c.l.b16 %v618
  %v1716 = vunpack.c.h.b16 %v618
  %v1717 = vunpack.c.l.b16 %v619
  %v1718 = vunpack.c.h.b16 %v619
  %v1719 = vunpack.c.l.b16 %v620
  %v1720 = vunpack.c.h.b16 %v620
  %v1721 = vunpack.c.l.b16 %v621
  %v1722 = vunpack.c.h.b16 %v621
  %v1723 = vunpack.c.l.b16 %v622
  %v1724 = vunpack.c.h.b16 %v622
  %v1725 = vunpack.c.l.b16 %v623
  %v1726 = vunpack.c.h.b16 %v623
  %v1727 = vunpack.c.l.b16 %v624
  %v1728 = vunpack.c.h.b16 %v624
  %v1729 = vunpack.c.l.b16 %v625
  %v1730 = vunpack.c.h.b16 %v625
  %v1731 = vunpack.c.l.b16 %v626
  %v1732 = vunpack.c.h.b16 %v626
  %v1733 = vunpack.c.l.b16 %v627
  %v1734 = vunpack.c.h.b16 %v627
  %v1735 = vunpack.c.l.b16 %v628
  %v1736 = vunpack.c.h.b16 %v628
  %v1737 = vunpack.c.l.b16 %v629
  %v1738 = vunpack.c.h.b16 %v629
  %v1739 = vunpack.c.l.b16 %v630
  %v1740 = vunpack.c.h.b16 %v630
  %v1741 = vunpack.c.l.b16 %v631
  %v1742 = vunpack.c.h.b16 %v631
  %v1743 = vunpack.c.l.b16 %v632
  %v1744 = vunpack.c.h.b16 %v632
  %v1745 = vunpack.c.l.b16 %v633
  %v1746 = vunpack.c.h.b16 %v633
  %v1747 = vunpack.c.l.b16 %v634
  %v1748 = vunpack.c.h.b16 %v634
  %v1749 = vunpack.c.l.b16 %v635
  %v1750 = vunpack.c.h.b16 %v635
  %v1751 = vunpack.c.l.b16 %v636
  %v1752 = vunpack.c.h.b16 %v636
  %v1753 = vunpack.c.l.b16 %v637
  %v1754 = vunpack.c.h.b16 %v637
  %v1755 = vunpack.c.l.b16 %v638
  %v1756 = vunpack.c.h.b16 %v638
  %v1757 = vunpack.c.l.b16 %v639
  %v1758 = vunpack.c.h.b16 %v639
  %v1759 = vunpack.c.l.b16 %v640
  %v1760 = vunpack.c.h.b16 %v640
  %v1761 = vunpack.c.l.b16 %v641
  %v1762 = vunpack.c.h.b16 %v641
  %v1763 = vunpack.c.l.b16 %v642
  %v1764 = vunpack.c.h.b16 %v642
  %v1765 = vunpack.c.l.b16 %v643
  %v1766 = vunpack.c.h.b16 %v643
  %v1767 = vunpack.c.l.b16 %v644
  %v1768 = vunpack.c.h.b16 %v644
  %v1769 = vunpack.c.l.b16 %v645
  %v1770 = vunpack.c.h.b16 %v645
  %v1771 = vunpack.c.l.b16 %v646
  %v1772 = vunpack.c.h.b16 %v646
  %v1773 = vunpack.c.l.b16 %v647
  %v1774 = vunpack.c.h.b16 %v647
  %v1775 = vunpack.c.l.b16 %v648
  %v1776 = vunpack.c.h.b16 %v648
  %v1777 = vunpack.c.l.b16 %v649
  %v1778 = vunpack.c.h.b16 %v649
  %v1779 = vunpack.c.l.b16 %v650
  %v1780 = vunpack.c.h.b16 %v650
  %v1781 = vunpack.c.l.b16 %v651
  %v1782 = vunpack.c.h.b16 %v651
  %v1783 = vunpack.c.l.b16 %v652
  %v1784 = vunpack.c.h.b16 %v652
  %v1785 = vunpack.c.l.b16 %v653
  %v1786 = vunpack.c.h.b16 %v653
  %v1787 = vunpack.c.l.b16 %v654
  %v1788 = vunpack.c.h.b16 %v654
  %v1789 = vunpack.c.l.b16 %v655
  %v1790 = vunpack.c.h.b16 %v655
  %v1791 = vunpack.c.l.b16 %v656
  %v1792 = vunpack.c.h.b16 %v656
  %v1793 = vunpack.c.l.b16 %v657
  %v1794 = vunpack.c.h.b16 %v657
  %v1795 = vunpack.c.l.b16 %v658
  %v1796 = vunpack.c.h.b16 %v658
  %v1797 = vunpack.c.l.b16 %v659
  %v1798 = vunpack.c.h.b16 %v659
  %v1799 = vunpack.c.l.b16 %v660
  %v1800 = vunpack.c.h.b16 %v660
  %v1801 = vunpack.c.l.b16 %v661
  %v1802 = vunpack.c.h.b16 %v661
  %v1803 = vunpack.c.l.b16 %v662
  %v1804 = vunpack.c.h.b16 %v662
  %v1805 = vunpack.c.l.b16 %v663
  %v1806 = vunpack.c.h.b16 %v663
  %v1807 = vunpack.c.l.b16 %v664
  %v1808 = vunpack.c.h.b16 %v664
  %v1809 = vunpack.c.l.b16 %v665
  %v1810 = vunpack.c.h.b16 %v665
  %v1811 = vunpack.c.l.b16 %v666
  %v1812 = vunpack.c.h.b16 %v666
  %v1813 = vunpack.c.l.b16 %v667
  %v1814 = vunpack.c.h.b16 %v667
  %v1815 = vunpack.c.l.b16 %v668
  %v1816 = vunpack.c.h.b16 %v668
  %v1817 = vunpack.c.l.b16 %v669
  %v1818 = vunpack.c.h.b16 %v669
  %v1819 = vunpack.c.l.b16 %v670
  %v1820 = vunpack.c.h.b16 %v670
  %v1821 = vunpack.c.l.b16 %v671
  %v1822 = vunpack.c.h.b16 %v671
  %v1823 = vunpack.c.l.b16 %v672
  %v1824 = vunpack.c.h.b16 %v672
  %v1825 = vpack.c.b16 %v1061, %v1057
  %v1826 = vpack.c.b16 %v1062, %v1058
  %v1827 = vpack.c.b16 %v1063, %v1059
  %v1828 = vpack.c.b16 %v1064, %v1060
  %v1829 = vpack.c.b16 %v1069, %v1065
  %v1830 = vpack.c.b16 %v1070, %v1066
  %v1831 = vpack.c.b16 %v1071, %v1067
  %v1832 = vpack.c.b16 %v1072, %v1068
  %v1833 = vpack.c.b16 %v1077, %v1073
  %v1834 = vpack.c.b16 %v1078, %v1074
  %v1835 = vpack.c.b16 %v1079, %v1075
  %v1836 = vpack.c.b16 %v1080, %v1076
  %v1837 = vpack.c.b16 %v1085, %v1081
  %v1838 = vpack.c.b16 %v1086, %v1082
  %v1839 = vpack.c.b16 %v1087, %v1083
  %v1840 = vpack.c.b16 %v1088, %v1084
  %v1841 = vpack.c.b16 %v1093, %v1089
  %v1842 = vpack.c.b16 %v1094, %v1090
  %v1843 = vpack.c.b16 %v1095, %v1091
  %v1844 = vpack.c.b16 %v1096, %v1092
  %v1845 = vpack.c.b16 %v1101, %v1097
  %v1846 = vpack.c.b16 %v1102, %v1098
  %v1847 = vpack.c.b16 %v1103, %v1099
  %v1848 = vpack.c.b16 %v1104, %v1100
  %v1849 = vpack.c.b16 %v1109, %v1105
  %v1850 = vpack.c.b16 %v1110, %v1106
  %v1851 = vpack.c.b16 %v1111, %v1107
  %v1852 = vpack.c.b16 %v1112, %v1108
  %v1853 = vpack.c.b16 %v1117, %v1113
  %v1854 = vpack.c.b16 %v1118, %v1114
  %v1855 = vpack.c.b16 %v1119, %v1115
  %v1856 = vpack.c.b16 %v1120, %v1116
  %v1857 = vpack.c.b16 %v1125, %v1121
  %v1858 = vpack.c.b16 %v1126, %v1122
  %v1859 = vpack.c.b16 %v1127, %v1123
  %v1860 = vpack.c.b16 %v1128, %v1124
  %v1861 = vpack.c.b16 %v1133, %v1129
  %v1862 = vpack.c.b16 %v1134, %v1130
  %v1863 = vpack.c.b16 %v1135, %v1131
  %v1864 = vpack.c.b16 %v1136, %v1132
  %v1865 = vpack.c.b16 %v1141, %v1137
  %v1866 = vpack.c.b16 %v1142, %v1138
  %v1867 = vpack.c.b16 %v1143, %v1139
  %v1868 = vpack.c.b16 %v1144, %v1140
  %v1869 = vpack.c.b16 %v1149, %v1145
  %v1870 = vpack.c.b16 %v1150, %v1146
  %v1871 = vpack.c.b16 %v1151, %v1147
  %v1872 = vpack.c.b16 %v1152, %v1148
  %v1873 = vpack.c.b16 %v1157, %v1153
  %v1874 = vpack.c.b16 %v1158, %v1154
  %v1875 = vpack.c.b16 %v1159, %v1155
  %v1876 = vpack.c.b16 %v1160, %v1156
  %v1877 = vpack.c.b16 %v1165, %v1161
  %v1878 = vpack.c.b16 %v1166, %v1162
  %v1879 = vpack.c.b16 %v1167, %v1163
  %v1880 = vpack.c.b16 %v1168, %v1164
  %v1881 = vpack.c.b16 %v1173, %v1169
  %v1882 = vpack.c.b16 %v1174, %v1170
  %v1883 = vpack.c.b16 %v1175, %v1171
  %v1884 = vpack.c.b16 %v1176, %v1172
  %v1885 = vpack.c.b16 %v1181, %v1177
  %v1886 = vpack.c.b16 %v1182, %v1178
  %v1887 = vpack.c.b16 %v1183, %v1179
  %v1888 = vpack.c.b16 %v1184, %v1180
  %v1889 = vpack.c.b16 %v1189, %v1185
  %v1890 = vpack.c.b16 %v1190, %v1186
  %v1891 = vpack.c.b16 %v1191, %v1187
  %v1892 = vpack.c.b16 %v1192, %v1188
  %v1893 = vpack.c.b16 %v1197, %v1193
  %v1894 = vpack.c.b16 %v1198, %v1194
  %v1895 = vpack.c.b16 %v1199, %v1195
  %v1896 = vpack.c.b16 %v1200, %v1196
  %v1897 = vpack.c.b16 %v1205, %v1201
  %v1898 = vpack.c.b16 %v1206, %v1202
  %v1899 = vpack.c.b16 %v1207, %v1203
  %v1900 = vpack.c.b16 %v1208, %v1204
  %v1901 = vpack.c.b16 %v1213, %v1209
  %v1902 = vpack.c.b16 %v1214, %v1210
  %v1903 = vpack.c.b16 %v1215, %v1211
  %v1904 = vpack.c.b16 %v1216, %v1212
  %v1905 = vpack.c.b16 %v1221, %v1217
  %v1906 = vpack.c.b16 %v1222, %v1218
  %v1907 = vpack.c.b16 %v1223, %v1219
  %v1908 = vpack.c.b16 %v1224, %v1220
  %v1909 = vpack.c.b16 %v1229, %v1225
  %v1910 = vpack.c.b16 %v1230, %v1226
  %v1911 = vpack.c.b16 %v1231, %v1227
  %v1912 = vpack.c.b16 %v1232, %v1228
  %v1913 = vpack.c.b16 %v1237, %v1233
  %v1914 = vpack.c.b16 %v1238, %v1234
  %v1915 = vpack.c.b16 %v1239, %v1235
  %v1916 = vpack.c.b16 %v1240, %v1236
  %v1917 = vpack.c.b16 %v1245, %v1241
  %v1918 = vpack.c.b16 %v1246, %v1242
  %v1919 = vpack.c.b16 %v1247, %v1243
  %v1920 = vpack.c.b16 %v1248, %v1244
  %v1921 = vpack.c.b16 %v1253, %v1249
  %v1922 = vpack.c.b16 %v1254, %v1250
  %v1923 = vpack.c.b16 %v1255, %v1251
  %v1924 = vpack.c.b16 %v1256, %v1252
  %v1925 = vpack.c.b16 %v1261, %v1257
  %v1926 = vpack.c.b16 %v1262, %v1258
  %v1927 = vpack.c.b16 %v1263, %v1259
  %v1928 = vpack.c.b16 %v1264, %v1260
  %v1929 = vpack.c.b16 %v1269, %v1265
  %v1930 = vpack.c.b16 %v1270, %v1266
  %v1931 = vpack.c.b16 %v1271, %v1267
  %v1932 = vpack.c.b16 %v1272, %v1268
  %v1933 = vpack.c.b16 %v1277, %v1273
  %v1934 = vpack.c.b16 %v1278, %v1274
  %v1935 = vpack.c.b16 %v1279, %v1275
  %v1936 = vpack.c.b16 %v1280, %v1276
  %v1937 = vpack.c.b16 %v1285, %v1281
  %v1938 = vpack.c.b16 %v1286, %v1282
  %v1939 = vpack.c.b16 %v1287, %v1283
  %v1940 = vpack.c.b16 %v1288, %v1284
  %v1941 = vpack.c.b16 %v1293, %v1289
  %v1942 = vpack.c.b16 %v1294, %v1290
  %v1943 = vpack.c.b16 %v1295, %v1291
  %v1944 = vpack.c.b16 %v1296, %v1292
  %v1945 = vpack.c.b16 %v1301, %v1297
  %v1946 = vpack.c.b16 %v1302, %v1298
  %v1947 = vpack.c.b16 %v1303, %v1299
  %v1948 = vpack.c.b16 %v1304, %v1300
  %v1949 = vpack.c.b16 %v1309, %v1305
  %v1950 = vpack.c.b16 %v1310, %v1306
  %v1951 = vpack.c.b16 %v1311, %v1307
  %v1952 = vpack.c.b16 %v1312, %v1308
  %v1953 = vpack.c.b16 %v1317, %v1313
  %v1954 = vpack.c.b16 %v1318, %v1314
  %v1955 = vpack.c.b16 %v1319, %v1315
  %v1956 = vpack.c.b16 %v1320, %v1316
  %v1957 = vpack.c.b16 %v1325, %v1321
  %v1958 = vpack.c.b16 %v1326, %v1322
  %v1959 = vpack.c.b16 %v1327, %v1323
  %v1960 = vpack.c.b16 %v1328, %v1324
  %v1961 = vpack.c.b16 %v1333, %v1329
  %v1962 = vpack.c.b16 %v1334, %v1330
  %v1963 = vpack.c.b16 %v1335, %v1331
  %v1964 = vpack.c.b16 %v1336, %v1332
  %v1965 = vpack.c.b16 %v1341, %v1337
  %v1966 = vpack.c.b16 %v1342, %v1338
  %v1967 = vpack.c.b16 %v1343, %v1339
  %v1968 = vpack.c.b16 %v1344, %v1340
  %v1969 = vpack.c.b16 %v1349, %v1345
  %v1970 = vpack.c.b16 %v1350, %v1346
  %v1971 = vpack.c.b16 %v1351, %v1347
  %v1972 = vpack.c.b16 %v1352, %v1348
  %v1973 = vpack.c.b16 %v1357, %v1353
  %v1974 = vpack.c.b16 %v1358, %v1354
  %v1975 = vpack.c.b16 %v1359, %v1355
  %v1976 = vpack.c.b16 %v1360, %v1356
  %v1977 = vpack.c.b16 %v1365, %v1361
  %v1978 = vpack.c.b16 %v1366, %v1362
  %v1979 = vpack.c.b16 %v1367, %v1363
  %v1980 = vpack.c.b16 %v1368, %v1364
  %v1981 = vpack.c.b16 %v1373, %v1369
  %v1982 = vpack.c.b16 %v1374, %v1370
  %v1983 = vpack.c.b16 %v1375, %v1371
  %v1984 = vpack.c.b16 %v1376, %v1372
  %v1985 = vpack.c.b16 %v1381, %v1377
  %v1986 = vpack.c.b16 %v1382, %v1378
  %v1987 = vpack.c.b16 %v1383, %v1379
  %v1988 = vpack.c.b16 %v1384, %v1380
  %v1989 = vpack.c.b16 %v1389, %v1385
  %v1990 = vpack.c.b16 %v1390, %v1386
  %v1991 = vpack.c.b16 %v1391, %v1387
  %v1992 = vpack.c.b16 %v1392, %v1388
  %v1993 = vpack.c.b16 %v1397, %v1393
  %v1994 = vpack.c.b16 %v1398, %v1394
  %v1995 = vpack.c.b16 %v1399, %v1395
  %v1996 = vpack.c.b16 %v1400, %v1396
  %v1997 = vpack.c.b16 %v1405, %v1401
  %v1998 = vpack.c.b16 %v1406, %v1402
  %v1999 = vpack.c.b16 %v1407, %v1403
  %v2000 = vpack.c.b16 %v1408, %v1404
  %v2001 = vpack.c.b16 %v1413, %v1409
  %v2002 = vpack.c.b16 %v1414, %v1410
  %v2003 = vpack.c.b16 %v1415, %v1411
  %v2004 = vpack.c.b16 %v1416, %v1412
  %v2005 = vpack.c.b16 %v1421, %v1417
  %v2006 = vpack.c.b16 %v1422, %v1418
  %v2007 = vpack.c.b16 %v1423, %v1419
  %v2008 = vpack.c.b16 %v1424, %v1420
  %v2009 = vpack.c.b16 %v1429, %v1425
  %v2010 = vpack.c.b16 %v1430, %v1426
  %v2011 = vpack.c.b16 %v1431, %v1427
  %v2012 = vpack.c.b16 %v1432, %v1428
  %v2013 = vpack.c.b16 %v1437, %v1433
  %v2014 = vpack.c.b16 %v1438, %v1434
  %v2015 = vpack.c.b16 %v1439, %v1435
  %v2016 = vpack.c.b16 %v1440, %v1436
  %v2017 = vpack.c.b16 %v1445, %v1441
  %v2018 = vpack.c.b16 %v1446, %v1442
  %v2019 = vpack.c.b16 %v1447, %v1443
  %v2020 = vpack.c.b16 %v1448, %v1444
  %v2021 = vpack.c.b16 %v1453, %v1449
  %v2022 = vpack.c.b16 %v1454, %v1450
  %v2023 = vpack.c.b16 %v1455, %v1451
  %v2024 = vpack.c.b16 %v1456, %v1452
  %v2025 = vpack.c.b16 %v1461, %v1457
  %v2026 = vpack.c.b16 %v1462, %v1458
  %v2027 = vpack.c.b16 %v1463, %v1459
  %v2028 = vpack.c.b16 %v1464, %v1460
  %v2029 = vpack.c.b16 %v1469, %v1465
  %v2030 = vpack.c.b16 %v1470, %v1466
  %v2031 = vpack.c.b16 %v1471, %v1467
  %v2032 = vpack.c.b16 %v1472, %v1468
  %v2033 = vpack.c.b16 %v1477, %v1473
  %v2034 = vpack.c.b16 %v1478, %v1474
  %v2035 = vpack.c.b16 %v1479, %v1475
  %v2036 = vpack.c.b16 %v1480, %v1476
  %v2037 = vpack.c.b16 %v1485, %v1481
  %v2038 = vpack.c.b16 %v1486, %v1482
  %v2039 = vpack.c.b16 %v1487, %v1483
  %v2040 = vpack.c.b16 %v1488, %v1484
  %v2041 = vpack.c.b16 %v1493, %v1489
  %v2042 = vpack.c.b16 %v1494, %v1490
  %v2043 = vpack.c.b16 %v1495, %v1491
  %v2044 = vpack.c.b16 %v1496, %v1492
  %v2045 = vpack.c.b16 %v1501, %v1497
  %v2046 = vpack.c.b16 %v1502, %v1498
  %v2047 = vpack.c.b16 %v1503, %v1499
  %v2048 = vpack.c.b16 %v1504, %v1500
  %v2049 = vpack.c.b16 %v1509, %v1505
  %v2050 = vpack.c.b16 %v1510, %v1506
  %v2051 = vpack.c.b16 %v1511, %v1507
  %v2052 = vpack.c.b16 %v1512, %v1508
  %v2053 = vpack.c.b16 %v1517, %v1513
  %v2054 = vpack.c.b16 %v1518, %v1514
  %v2055 = vpack.c.b16 %v1519, %v1515
  %v2056 = vpack.c.b16 %v1520, %v1516
  %v2057 = vpack.c.b16 %v1525, %v1521
  %v2058 = vpack.c.b16 %v1526, %v1522
  %v2059 = vpack.c.b16 %v1527, %v1523
  %v2060 = vpack.c.b16 %v1528, %v1524
  %v2061 = vpack.c.b16 %v1533, %v1529
  %v2062 = vpack.c.b16 %v1534, %v1530
  %v2063 = vpack.c.b16 %v1535, %v1531
  %v2064 = vpack.c.b16 %v1536, %v1532
  %v2065 = vpack.c.b16 %v1541, %v1537
  %v2066 = vpack.c.b16 %v1542, %v1538
  %v2067 = vpack.c.b16 %v1543, %v1539
  %v2068 = vpack.c.b16 %v1544, %v1540
  %v2069 = vpack.c.b16 %v1549, %v1545
  %v2070 = vpack.c.b16 %v1550, %v1546
  %v2071 = vpack.c.b16 %v1551, %v1547
  %v2072 = vpack.c.b16 %v1552, %v1548
  %v2073 = vpack.c.b16 %v1557, %v1553
  %v2074 = vpack.c.b16 %v1558, %v1554
  %v2075 = vpack.c.b16 %v1559, %v1555
  %v2076 = vpack.c.b16 %v1560, %v1556
  %v2077 = vpack.c.b16 %v1565, %v1561
  %v2078 = vpack.c.b16 %v1566, %v1562
  %v2079 = vpack.c.b16 %v1567, %v1563
  %v2080 = vpack.c.b16 %v1568, %v1564
  %v2081 = vpack.c.b16 %v1573, %v1569
  %v2082 = vpack.c.b16 %v1574, %v1570
  %v2083 = vpack.c.b16 %v1575, %v1571
  %v2084 = vpack.c.b16 %v1576, %v1572
  %v2085 = vpack.c.b16 %v1581, %v1577
  %v2086 = vpack.c.b16 %v1582, %v1578
  %v2087 = vpack.c.b16 %v1583, %v1579
  %v2088 = vpack.c.b16 %v1584, %v1580
  %v2089 = vpack.c.b16 %v1589, %v1585
  %v2090 = vpack.c.b16 %v1590, %v1586
  %v2091 = vpack.c.b16 %v1591, %v1587
  %v2092 = vpack.c.b16 %v1592, %v1588
  %v2093 = vpack.c.b16 %v1597, %v1593
  %v2094 = vpack.c.b16 %v1598, %v1594
  %v2095 = vpack.c.b16 %v1599, %v1595
  %v2096 = vpack.c.b16 %v1600, %v1596
  %v2097 = vpack.c.b16 %v1605, %v1601
  %v2098 = vpack.c.b16 %v1606, %v1602
  %v2099 = vpack.c.b16 %v1607, %v1603
  %v2100 = vpack.c.b16 %v1608, %v1604
  %v2101 = vpack.c.b16 %v1613, %v1609
  %v2102 = vpack.c.b16 %v1614, %v1610
  %v2103 = vpack.c.b16 %v1615, %v1611
  %v2104 = vpack.c.b16 %v1616, %v1612
  %v2105 = vpack.c.b16 %v1621, %v1617
  %v2106 = vpack.c.b16 %v1622, %v1618
  %v2107 = vpack.c.b16 %v1623, %v1619
  %v2108 = vpack.c.b16 %v1624, %v1620
  %v2109 = vpack.c.b16 %v1629, %v1625
  %v2110 = vpack.c.b16 %v1630, %v1626
  %v2111 = vpack.c.b16 %v1631, %v1627
  %v2112 = vpack.c.b16 %v1632, %v1628
  %v2113 = vpack.c.b16 %v1637, %v1633
  %v2114 = vpack.c.b16 %v1638, %v1634
  %v2115 = vpack.c.b16 %v1639, %v1635
  %v2116 = vpack.c.b16 %v1640, %v1636
  %v2117 = vpack.c.b16 %v1645, %v1641
  %v2118 = vpack.c.b16 %v1646, %v1642
  %v2119 = vpack.c.b16 %v1647, %v1643
  %v2120 = vpack.c.b16 %v1648, %v1644
  %v2121 = vpack.c.b16 %v1653, %v1649
  %v2122 = vpack.c.b16 %v1654, %v1650
  %v2123 = vpack.c.b16 %v1655, %v1651
  %v2124 = vpack.c.b16 %v1656, %v1652
  %v2125 = vpack.c.b16 %v1661, %v1657
  %v2126 = vpack.c.b16 %v1662, %v1658
  %v2127 = vpack.c.b16 %v1663, %v1659
  %v2128 = vpack.c.b16 %v1664, %v1660
  %v2129 = vpack.c.b16 %v1669, %v1665
  %v2130 = vpack.c.b16 %v1670, %v1666
  %v2131 = vpack.c.b16 %v1671, %v1667
  %v2132 = vpack.c.b16 %v1672, %v1668
  %v2133 = vpack.c.b16 %v1677, %v1673
  %v2134 = vpack.c.b16 %v1678, %v1674
  %v2135 = vpack.c.b16 %v1679, %v1675
  %v2136 = vpack.c.b16 %v1680, %v1676
  %v2137 = vpack.c.b16 %v1685, %v1681
  %v2138 = vpack.c.b16 %v1686, %v1682
  %v2139 = vpack.c.b16 %v1687, %v1683
  %v2140 = vpack.c.b16 %v1688, %v1684
  %v2141 = vpack.c.b16 %v1693, %v1689
  %v2142 = vpack.c.b16 %v1694, %v1690
  %v2143 = vpack.c.b16 %v1695, %v1691
  %v2144 = vpack.c.b16 %v1696, %v1692
  %v2145 = vpack.c.b16 %v1701, %v1697
  %v2146 = vpack.c.b16 %v1702, %v1698
  %v2147 = vpack.c.b16 %v1703, %v1699
  %v2148 = vpack.c.b16 %v1704, %v1700
  %v2149 = vpack.c.b16 %v1709, %v1705
  %v2150 = vpack.c.b16 %v1710, %v1706
  %v2151 = vpack.c.b16 %v1711, %v1707
  %v2152 = vpack.c.b16 %v1712, %v1708
  %v2153 = vpack.c.b16 %v1717, %v1713
  %v2154 = vpack.c.b16 %v1718, %v1714
  %v2155 = vpack.c.b16 %v1719, %v1715
  %v2156 = vpack.c.b16 %v1720, %v1716
  %v2157 = vpack.c.b16 %v1725, %v1721
  %v2158 = vpack.c.b16 %v1726, %v1722
  %v2159 = vpack.c.b16 %v1727, %v1723
  %v2160 = vpack.c.b16 %v1728, %v1724
  %v2161 = vpack.c.b16 %v1733, %v1729
  %v2162 = vpack.c.b16 %v1734, %v1730
  %v2163 = vpack.c.b16 %v1735, %v1731
  %v2164 = vpack.c.b16 %v1736, %v1732
  %v2165 = vpack.c.b16 %v1741, %v1737
  %v2166 = vpack.c.b16 %v1742, %v1738
  %v2167 = vpack.c.b16 %v1743, %v1739
  %v2168 = vpack.c.b16 %v1744, %v1740
  %v2169 = vpack.c.b16 %v1749, %v1745
  %v2170 = vpack.c.b16 %v1750, %v1746
  %v2171 = vpack.c.b16 %v1751, %v1747
  %v2172 = vpack.c.b16 %v1752, %v1748
  %v2173 = vpack.c.b16 %v1757, %v1753
  %v2174 = vpack.c.b16 %v1758, %v1754
  %v2175 = vpack.c.b16 %v1759, %v1755
  %v2176 = vpack.c.b16 %v1760, %v1756
  %v2177 = vpack.c.b16 %v1765, %v1761
  %v2178 = vpack.c.b16 %v1766, %v1762
  %v2179 = vpack.c.b16 %v1767, %v1763
  %v2180 = vpack.c.b16 %v1768, %v1764
  %v2181 = vpack.c.b16 %v1773, %v1769
  %v2182 = vpack.c.b16 %v1774, %v1770
  %v2183 = vpack.c.b16 %v1775, %v1771
  %v2184 = vpack.c.b16 %v1776, %v1772
  %v2185 = vpack.c.b16 %v1781, %v1777
  %v2186 = vpack.c.b16 %v1782, %v1778
  %v2187 = vpack.c.b16 %v1783, %v1779
  %v2188 = vpack.c.b16 %v1784, %v1780
  %v2189 = vpack.c.b16 %v1789, %v1785
  %v2190 = vpack.c.b16 %v1790, %v1786
  %v2191 = vpack.c.b16 %v1791, %v1787
  %v2192 = vpack.c.b16 %v1792, %v1788
  %v2193 = vpack.c.b16 %v1797, %v1793
  %v2194 = vpack.c.b16 %v1798, %v1794
  %v2195 = vpack.c.b16 %v1799, %v1795
  %v2196 = vpack.c.b16 %v1800, %v1796
  %v2197 = vpack.c.b16 %v1805, %v1801
  %v2198 = vpack.c.b16 %v1806, %v1802
  %v2199 = vpack.c.b16 %v1807, %v1803
  %v2200 = vpack.c.b16 %v1808, %v1804
  %v2201 = vpack.c.b16 %v1813, %v1809
  %v2202 = vpack.c.b16 %v1814, %v1810
  %v2203 = vpack.c.b16 %v1815, %v1811
  %v2204 = vpack.c.b16 %v1816, %v1812
  %v2205 = vpack.c.b16 %v1821, %v1817
  %v2206 = vpack.c.b16 %v1822, %v1818
  %v2207 = vpack.c.b16 %v1823, %v1819
  %v2208 = vpack.c.b16 %v1824, %v1820
  %2593 = vmatprep.subr.bf16.mxu0 %v1854
  %2594 = vmatpush1.bf16.msra.mxu0 %v1853
  %2595 = vmatprep.subr.bf16.mxu0 %v1850
  %2596 = vmatpush1.bf16.msra.mxu0 %v1849
  %2597 = vmatprep.subr.bf16.mxu0 %v1846
  %2598 = vmatpush1.bf16.msra.mxu0 %v1845
  %2599 = vmatprep.subr.bf16.mxu0 %v1842
  %2600 = vmatpush1.bf16.msra.mxu0 %v1841
  %2601 = vmatprep.subr.bf16.mxu0 %v1838
  %2602 = vmatpush1.bf16.msra.mxu0 %v1837
  %2603 = vmatprep.subr.bf16.mxu0 %v1834
  %2604 = vmatpush1.bf16.msra.mxu0 %v1833
  %2605 = vmatprep.subr.bf16.mxu0 %v1830
  %2606 = vmatpush1.bf16.msra.mxu0 %v1829
  %2607 = vmatprep.subr.bf16.mxu0 %v1826
  %2608 = vmatpush1.bf16.msra.mxu0 %v1825
  %2609 = vmatprep.subr.bf16.mxu0 %v1886
  %2610 = vmatpush2.bf16.msra.mxu0 %v1885
  %2611 = vmatprep.subr.bf16.mxu0 %v1882
  %2612 = vmatpush2.bf16.msra.mxu0 %v1881
  %2613 = vmatprep.subr.bf16.mxu0 %v1878
  %2614 = vmatpush2.bf16.msra.mxu0 %v1877
  %2615 = vmatprep.subr.bf16.mxu0 %v1874
  %2616 = vmatpush2.bf16.msra.mxu0 %v1873
  %2617 = vmatprep.subr.bf16.mxu0 %v1870
  %2618 = vmatpush2.bf16.msra.mxu0 %v1869
  %2619 = vmatprep.subr.bf16.mxu0 %v1866
  %2620 = vmatpush2.bf16.msra.mxu0 %v1865
  %2621 = vmatprep.subr.bf16.mxu0 %v1862
  %2622 = vmatpush2.bf16.msra.mxu0 %v1861
  %2623 = vmatprep.subr.bf16.mxu0 %v1858
  %2624 = vmatpush2.bf16.msra.mxu0 %v1857
  %2625 = vmatprep.mubr.bf16.mxu0 %v266
  %2626 = vmatmul.mubr.bf16.gmra.mxu0 %v265
  %v2627 = vpop.f32.mrf.mxu0
  %v2628 = vadd.f32 0.0, %v2627
  %v2629 = vpop.f32.mrf.mxu0
  %v2630 = vadd.f32 0.0, %v2629
  %v2631 = vpop.f32.mrf.mxu0
  %v2632 = vadd.f32 0.0, %v2631
  %v2633 = vpop.f32.mrf.mxu0
  %v2634 = vadd.f32 0.0, %v2633
  %2635 = vmatprep.mubr.bf16.mxu0 %v270
  %2636 = vmatmul.mubr.bf16.gmra.mxu0 %v269
  %v2637 = vpop.f32.mrf.mxu0
  %v2638 = vadd.f32 0.0, %v2637
  %v2639 = vpop.f32.mrf.mxu0
  %v2640 = vadd.f32 0.0, %v2639
  %v2641 = vpop.f32.mrf.mxu0
  %v2642 = vadd.f32 0.0, %v2641
  %v2643 = vpop.f32.mrf.mxu0
  %v2644 = vadd.f32 0.0, %v2643
  %2645 = vdwg.mxu0
  %2646 = vmatprep.subr.bf16.mxu0 %v1918
  %2647 = vmatpush1.bf16.msra.mxu0 %v1917
  %2648 = vmatprep.subr.bf16.mxu0 %v1914
  %2649 = vmatpush1.bf16.msra.mxu0 %v1913
  %2650 = vmatprep.subr.bf16.mxu0 %v1910
  %2651 = vmatpush1.bf16.msra.mxu0 %v1909
  %2652 = vmatprep.subr.bf16.mxu0 %v1906
  %2653 = vmatpush1.bf16.msra.mxu0 %v1905
  %2654 = vmatprep.subr.bf16.mxu0 %v1902
  %2655 = vmatpush1.bf16.msra.mxu0 %v1901
  %2656 = vmatprep.subr.bf16.mxu0 %v1898
  %2657 = vmatpush1.bf16.msra.mxu0 %v1897
  %2658 = vmatprep.subr.bf16.mxu0 %v1894
  %2659 = vmatpush1.bf16.msra.mxu0 %v1893
  %2660 = vmatprep.subr.bf16.mxu0 %v1890
  %2661 = vmatpush1.bf16.msra.mxu0 %v1889
  %2662 = vmatprep.subr.bf16.mxu0 %v1950
  %2663 = vmatpush2.bf16.msra.mxu0 %v1949
  %2664 = vmatprep.subr.bf16.mxu0 %v1946
  %2665 = vmatpush2.bf16.msra.mxu0 %v1945
  %2666 = vmatprep.subr.bf16.mxu0 %v1942
  %2667 = vmatpush2.bf16.msra.mxu0 %v1941
  %2668 = vmatprep.subr.bf16.mxu0 %v1938
  %2669 = vmatpush2.bf16.msra.mxu0 %v1937
  %2670 = vmatprep.subr.bf16.mxu0 %v1934
  %2671 = vmatpush2.bf16.msra.mxu0 %v1933
  %2672 = vmatprep.subr.bf16.mxu0 %v1930
  %2673 = vmatpush2.bf16.msra.mxu0 %v1929
  %2674 = vmatprep.subr.bf16.mxu0 %v1926
  %2675 = vmatpush2.bf16.msra.mxu0 %v1925
  %2676 = vmatprep.subr.bf16.mxu0 %v1922
  %2677 = vmatpush2.bf16.msra.mxu0 %v1921
  %2678 = vmatprep.mubr.bf16.mxu0 %v268
  %2679 = vmatmul.mubr.bf16.gmra.mxu0 %v267
  %v2680 = vpop.f32.mrf.mxu0
  %v2681 = vadd.f32 %v2628, %v2680
  %v2682 = vpop.f32.mrf.mxu0
  %v2683 = vadd.f32 %v2630, %v2682
  %v2684 = vpop.f32.mrf.mxu0
  %v2685 = vadd.f32 %v2632, %v2684
  %v2686 = vpop.f32.mrf.mxu0
  %v2687 = vadd.f32 %v2634, %v2686
  %2688 = vmatprep.mubr.bf16.mxu0 %v272
  %2689 = vmatmul.mubr.bf16.gmra.mxu0 %v271
  %v2690 = vpop.f32.mrf.mxu0
  %v2691 = vadd.f32 %v2638, %v2690
  %v2692 = vpop.f32.mrf.mxu0
  %v2693 = vadd.f32 %v2640, %v2692
  %v2694 = vpop.f32.mrf.mxu0
  %v2695 = vadd.f32 %v2642, %v2694
  %v2696 = vpop.f32.mrf.mxu0
  %v2697 = vadd.f32 %v2644, %v2696
  %2698 = vdwg.mxu0
  %2699 = vmatprep.subr.bf16.mxu0 %v1982
  %2700 = vmatpush1.bf16.msra.mxu0 %v1981
  %2701 = vmatprep.subr.bf16.mxu0 %v1978
  %2702 = vmatpush1.bf16.msra.mxu0 %v1977
  %2703 = vmatprep.subr.bf16.mxu0 %v1974
  %2704 = vmatpush1.bf16.msra.mxu0 %v1973
  %2705 = vmatprep.subr.bf16.mxu0 %v1970
  %2706 = vmatpush1.bf16.msra.mxu0 %v1969
  %2707 = vmatprep.subr.bf16.mxu0 %v1966
  %2708 = vmatpush1.bf16.msra.mxu0 %v1965
  %2709 = vmatprep.subr.bf16.mxu0 %v1962
  %2710 = vmatpush1.bf16.msra.mxu0 %v1961
  %2711 = vmatprep.subr.bf16.mxu0 %v1958
  %2712 = vmatpush1.bf16.msra.mxu0 %v1957
  %2713 = vmatprep.subr.bf16.mxu0 %v1954
  %2714 = vmatpush1.bf16.msra.mxu0 %v1953
  %2715 = vmatprep.subr.bf16.mxu0 %v2014
  %2716 = vmatpush2.bf16.msra.mxu0 %v2013
  %2717 = vmatprep.subr.bf16.mxu0 %v2010
  %2718 = vmatpush2.bf16.msra.mxu0 %v2009
  %2719 = vmatprep.subr.bf16.mxu0 %v2006
  %2720 = vmatpush2.bf16.msra.mxu0 %v2005
  %2721 = vmatprep.subr.bf16.mxu0 %v2002
  %2722 = vmatpush2.bf16.msra.mxu0 %v2001
  %2723 = vmatprep.subr.bf16.mxu0 %v1998
  %2724 = vmatpush2.bf16.msra.mxu0 %v1997
  %2725 = vmatprep.subr.bf16.mxu0 %v1994
  %2726 = vmatpush2.bf16.msra.mxu0 %v1993
  %2727 = vmatprep.subr.bf16.mxu0 %v1990
  %2728 = vmatpush2.bf16.msra.mxu0 %v1989
  %2729 = vmatprep.subr.bf16.mxu0 %v1986
  %2730 = vmatpush2.bf16.msra.mxu0 %v1985
  %2731 = vmatprep.mubr.bf16.mxu0 %v274
  %2732 = vmatmul.mubr.bf16.gmra.mxu0 %v273
  %v2733 = vpop.f32.mrf.mxu0
  %v2734 = vadd.f32 %v2681, %v2733
  %v2735 = vpop.f32.mrf.mxu0
  %v2736 = vadd.f32 %v2683, %v2735
  %v2737 = vpop.f32.mrf.mxu0
  %v2738 = vadd.f32 %v2685, %v2737
  %v2739 = vpop.f32.mrf.mxu0
  %v2740 = vadd.f32 %v2687, %v2739
  %2741 = vmatprep.mubr.bf16.mxu0 %v278
  %2742 = vmatmul.mubr.bf16.gmra.mxu0 %v277
  %v2743 = vpop.f32.mrf.mxu0
  %v2744 = vadd.f32 %v2691, %v2743
  %v2745 = vpop.f32.mrf.mxu0
  %v2746 = vadd.f32 %v2693, %v2745
  %v2747 = vpop.f32.mrf.mxu0
  %v2748 = vadd.f32 %v2695, %v2747
  %v2749 = vpop.f32.mrf.mxu0
  %v2750 = vadd.f32 %v2697, %v2749
  %2751 = vdwg.mxu0
  %2752 = vmatprep.subr.bf16.mxu0 %v2046
  %2753 = vmatpush1.bf16.msra.mxu0 %v2045
  %2754 = vmatprep.subr.bf16.mxu0 %v2042
  %2755 = vmatpush1.bf16.msra.mxu0 %v2041
  %2756 = vmatprep.subr.bf16.mxu0 %v2038
  %2757 = vmatpush1.bf16.msra.mxu0 %v2037
  %2758 = vmatprep.subr.bf16.mxu0 %v2034
  %2759 = vmatpush1.bf16.msra.mxu0 %v2033
  %2760 = vmatprep.subr.bf16.mxu0 %v2030
  %2761 = vmatpush1.bf16.msra.mxu0 %v2029
  %2762 = vmatprep.subr.bf16.mxu0 %v2026
  %2763 = vmatpush1.bf16.msra.mxu0 %v2025
  %2764 = vmatprep.subr.bf16.mxu0 %v2022
  %2765 = vmatpush1.bf16.msra.mxu0 %v2021
  %2766 = vmatprep.subr.bf16.mxu0 %v2018
  %2767 = vmatpush1.bf16.msra.mxu0 %v2017
  %2768 = vmatprep.subr.bf16.mxu0 %v2078
  %2769 = vmatpush2.bf16.msra.mxu0 %v2077
  %2770 = vmatprep.subr.bf16.mxu0 %v2074
  %2771 = vmatpush2.bf16.msra.mxu0 %v2073
  %2772 = vmatprep.subr.bf16.mxu0 %v2070
  %2773 = vmatpush2.bf16.msra.mxu0 %v2069
  %2774 = vmatprep.subr.bf16.mxu0 %v2066
  %2775 = vmatpush2.bf16.msra.mxu0 %v2065
  %2776 = vmatprep.subr.bf16.mxu0 %v2062
  %2777 = vmatpush2.bf16.msra.mxu0 %v2061
  %2778 = vmatprep.subr.bf16.mxu0 %v2058
  %2779 = vmatpush2.bf16.msra.mxu0 %v2057
  %2780 = vmatprep.subr.bf16.mxu0 %v2054
  %2781 = vmatpush2.bf16.msra.mxu0 %v2053
  %2782 = vmatprep.subr.bf16.mxu0 %v2050
  %2783 = vmatpush2.bf16.msra.mxu0 %v2049
  %2784 = vmatprep.mubr.bf16.mxu0 %v276
  %2785 = vmatmul.mubr.bf16.gmra.mxu0 %v275
  %v2786 = vpop.f32.mrf.mxu0
  %v2787 = vadd.f32 %v2734, %v2786
  %v2788 = vpop.f32.mrf.mxu0
  %v2789 = vadd.f32 %v2736, %v2788
  %v2790 = vpop.f32.mrf.mxu0
  %v2791 = vadd.f32 %v2738, %v2790
  %v2792 = vpop.f32.mrf.mxu0
  %v2793 = vadd.f32 %v2740, %v2792
  %2794 = vmatprep.mubr.bf16.mxu0 %v280
  %2795 = vmatmul.mubr.bf16.gmra.mxu0 %v279
  %v2796 = vpop.f32.mrf.mxu0
  %v2797 = vadd.f32 %v2744, %v2796
  %v2798 = vpop.f32.mrf.mxu0
  %v2799 = vadd.f32 %v2746, %v2798
  %v2800 = vpop.f32.mrf.mxu0
  %v2801 = vadd.f32 %v2748, %v2800
  %v2802 = vpop.f32.mrf.mxu0
  %v2803 = vadd.f32 %v2750, %v2802
  %2804 = vdwg.mxu0
  %2805 = vmatprep.subr.bf16.mxu0 %v2110
  %2806 = vmatpush1.bf16.msra.mxu0 %v2109
  %2807 = vmatprep.subr.bf16.mxu0 %v2106
  %2808 = vmatpush1.bf16.msra.mxu0 %v2105
  %2809 = vmatprep.subr.bf16.mxu0 %v2102
  %2810 = vmatpush1.bf16.msra.mxu0 %v2101
  %2811 = vmatprep.subr.bf16.mxu0 %v2098
  %2812 = vmatpush1.bf16.msra.mxu0 %v2097
  %2813 = vmatprep.subr.bf16.mxu0 %v2094
  %2814 = vmatpush1.bf16.msra.mxu0 %v2093
  %2815 = vmatprep.subr.bf16.mxu0 %v2090
  %2816 = vmatpush1.bf16.msra.mxu0 %v2089
  %2817 = vmatprep.subr.bf16.mxu0 %v2086
  %2818 = vmatpush1.bf16.msra.mxu0 %v2085
  %2819 = vmatprep.subr.bf16.mxu0 %v2082
  %2820 = vmatpush1.bf16.msra.mxu0 %v2081
  %2821 = vmatprep.subr.bf16.mxu0 %v2142
  %2822 = vmatpush2.bf16.msra.mxu0 %v2141
  %2823 = vmatprep.subr.bf16.mxu0 %v2138
  %2824 = vmatpush2.bf16.msra.mxu0 %v2137
  %2825 = vmatprep.subr.bf16.mxu0 %v2134
  %2826 = vmatpush2.bf16.msra.mxu0 %v2133
  %2827 = vmatprep.subr.bf16.mxu0 %v2130
  %2828 = vmatpush2.bf16.msra.mxu0 %v2129
  %2829 = vmatprep.subr.bf16.mxu0 %v2126
  %2830 = vmatpush2.bf16.msra.mxu0 %v2125
  %2831 = vmatprep.subr.bf16.mxu0 %v2122
  %2832 = vmatpush2.bf16.msra.mxu0 %v2121
  %2833 = vmatprep.subr.bf16.mxu0 %v2118
  %2834 = vmatpush2.bf16.msra.mxu0 %v2117
  %2835 = vmatprep.subr.bf16.mxu0 %v2114
  %2836 = vmatpush2.bf16.msra.mxu0 %v2113
  %2837 = vmatprep.mubr.bf16.mxu0 %v282
  %2838 = vmatmul.mubr.bf16.gmra.mxu0 %v281
  %v2839 = vpop.f32.mrf.mxu0
  %v2840 = vadd.f32 %v2787, %v2839
  %v2841 = vpop.f32.mrf.mxu0
  %v2842 = vadd.f32 %v2789, %v2841
  %v2843 = vpop.f32.mrf.mxu0
  %v2844 = vadd.f32 %v2791, %v2843
  %v2845 = vpop.f32.mrf.mxu0
  %v2846 = vadd.f32 %v2793, %v2845
  %2847 = vmatprep.mubr.bf16.mxu0 %v286
  %2848 = vmatmul.mubr.bf16.gmra.mxu0 %v285
  %v2849 = vpop.f32.mrf.mxu0
  %v2850 = vadd.f32 %v2797, %v2849
  %v2851 = vpop.f32.mrf.mxu0
  %v2852 = vadd.f32 %v2799, %v2851
  %v2853 = vpop.f32.mrf.mxu0
  %v2854 = vadd.f32 %v2801, %v2853
  %v2855 = vpop.f32.mrf.mxu0
  %v2856 = vadd.f32 %v2803, %v2855
  %2857 = vdwg.mxu0
  %2858 = vmatprep.subr.bf16.mxu0 %v2174
  %2859 = vmatpush1.bf16.msra.mxu0 %v2173
  %2860 = vmatprep.subr.bf16.mxu0 %v2170
  %2861 = vmatpush1.bf16.msra.mxu0 %v2169
  %2862 = vmatprep.subr.bf16.mxu0 %v2166
  %2863 = vmatpush1.bf16.msra.mxu0 %v2165
  %2864 = vmatprep.subr.bf16.mxu0 %v2162
  %2865 = vmatpush1.bf16.msra.mxu0 %v2161
  %2866 = vmatprep.subr.bf16.mxu0 %v2158
  %2867 = vmatpush1.bf16.msra.mxu0 %v2157
  %2868 = vmatprep.subr.bf16.mxu0 %v2154
  %2869 = vmatpush1.bf16.msra.mxu0 %v2153
  %2870 = vmatprep.subr.bf16.mxu0 %v2150
  %2871 = vmatpush1.bf16.msra.mxu0 %v2149
  %2872 = vmatprep.subr.bf16.mxu0 %v2146
  %2873 = vmatpush1.bf16.msra.mxu0 %v2145
  %2874 = vmatprep.subr.bf16.mxu0 %v2206
  %2875 = vmatpush2.bf16.msra.mxu0 %v2205
  %2876 = vmatprep.subr.bf16.mxu0 %v2202
  %2877 = vmatpush2.bf16.msra.mxu0 %v2201
  %2878 = vmatprep.subr.bf16.mxu0 %v2198
  %2879 = vmatpush2.bf16.msra.mxu0 %v2197
  %2880 = vmatprep.subr.bf16.mxu0 %v2194
  %2881 = vmatpush2.bf16.msra.mxu0 %v2193
  %2882 = vmatprep.subr.bf16.mxu0 %v2190
  %2883 = vmatpush2.bf16.msra.mxu0 %v2189
  %2884 = vmatprep.subr.bf16.mxu0 %v2186
  %2885 = vmatpush2.bf16.msra.mxu0 %v2185
  %2886 = vmatprep.subr.bf16.mxu0 %v2182
  %2887 = vmatpush2.bf16.msra.mxu0 %v2181
  %2888 = vmatprep.subr.bf16.mxu0 %v2178
  %2889 = vmatpush2.bf16.msra.mxu0 %v2177
  %2890 = vmatprep.mubr.bf16.mxu0 %v284
  %2891 = vmatmul.mubr.bf16.gmra.mxu0 %v283
  %v2892 = vpop.f32.mrf.mxu0
  %v2893 = vadd.f32 %v2840, %v2892
  %v2894 = vpop.f32.mrf.mxu0
  %v2895 = vadd.f32 %v2842, %v2894
  %v2896 = vpop.f32.mrf.mxu0
  %v2897 = vadd.f32 %v2844, %v2896
  %v2898 = vpop.f32.mrf.mxu0
  %v2899 = vadd.f32 %v2846, %v2898
  %2900 = vmatprep.mubr.bf16.mxu0 %v288
  %2901 = vmatmul.mubr.bf16.gmra.mxu0 %v287
  %v2902 = vpop.f32.mrf.mxu0
  %v2903 = vadd.f32 %v2850, %v2902
  %v2904 = vpop.f32.mrf.mxu0
  %v2905 = vadd.f32 %v2852, %v2904
  %v2906 = vpop.f32.mrf.mxu0
  %v2907 = vadd.f32 %v2854, %v2906
  %v2908 = vpop.f32.mrf.mxu0
  %v2909 = vadd.f32 %v2856, %v2908
  %2910 = vdwg.mxu0
  %2911 = vmatprep.subr.bf16.mxu0 %v1856
  %2912 = vmatpush1.bf16.msra.mxu0 %v1855
  %2913 = vmatprep.subr.bf16.mxu0 %v1852
  %2914 = vmatpush1.bf16.msra.mxu0 %v1851
  %2915 = vmatprep.subr.bf16.mxu0 %v1848
  %2916 = vmatpush1.bf16.msra.mxu0 %v1847
  %2917 = vmatprep.subr.bf16.mxu0 %v1844
  %2918 = vmatpush1.bf16.msra.mxu0 %v1843
  %2919 = vmatprep.subr.bf16.mxu0 %v1840
  %2920 = vmatpush1.bf16.msra.mxu0 %v1839
  %2921 = vmatprep.subr.bf16.mxu0 %v1836
  %2922 = vmatpush1.bf16.msra.mxu0 %v1835
  %2923 = vmatprep.subr.bf16.mxu0 %v1832
  %2924 = vmatpush1.bf16.msra.mxu0 %v1831
  %2925 = vmatprep.subr.bf16.mxu0 %v1828
  %2926 = vmatpush1.bf16.msra.mxu0 %v1827
  %2927 = vmatprep.subr.bf16.mxu0 %v1888
  %2928 = vmatpush2.bf16.msra.mxu0 %v1887
  %2929 = vmatprep.subr.bf16.mxu0 %v1884
  %2930 = vmatpush2.bf16.msra.mxu0 %v1883
  %2931 = vmatprep.subr.bf16.mxu0 %v1880
  %2932 = vmatpush2.bf16.msra.mxu0 %v1879
  %2933 = vmatprep.subr.bf16.mxu0 %v1876
  %2934 = vmatpush2.bf16.msra.mxu0 %v1875
  %2935 = vmatprep.subr.bf16.mxu0 %v1872
  %2936 = vmatpush2.bf16.msra.mxu0 %v1871
  %2937 = vmatprep.subr.bf16.mxu0 %v1868
  %2938 = vmatpush2.bf16.msra.mxu0 %v1867
  %2939 = vmatprep.subr.bf16.mxu0 %v1864
  %2940 = vmatpush2.bf16.msra.mxu0 %v1863
  %2941 = vmatprep.subr.bf16.mxu0 %v1860
  %2942 = vmatpush2.bf16.msra.mxu0 %v1859
  %2943 = vmatprep.mubr.bf16.mxu0 %v266
  %2944 = vmatmul.mubr.bf16.gmra.mxu0 %v265
  %v2945 = vpop.f32.mrf.mxu0
  %v2946 = vadd.f32 0.0, %v2945
  %v2947 = vpop.f32.mrf.mxu0
  %v2948 = vadd.f32 0.0, %v2947
  %v2949 = vpop.f32.mrf.mxu0
  %v2950 = vadd.f32 0.0, %v2949
  %v2951 = vpop.f32.mrf.mxu0
  %v2952 = vadd.f32 0.0, %v2951
  %2953 = vmatprep.mubr.bf16.mxu0 %v270
  %2954 = vmatmul.mubr.bf16.gmra.mxu0 %v269
  %v2955 = vpop.f32.mrf.mxu0
  %v2956 = vadd.f32 0.0, %v2955
  %v2957 = vpop.f32.mrf.mxu0
  %v2958 = vadd.f32 0.0, %v2957
  %v2959 = vpop.f32.mrf.mxu0
  %v2960 = vadd.f32 0.0, %v2959
  %v2961 = vpop.f32.mrf.mxu0
  %v2962 = vadd.f32 0.0, %v2961
  %2963 = vdwg.mxu0
  %2964 = vmatprep.subr.bf16.mxu0 %v1920
  %2965 = vmatpush1.bf16.msra.mxu0 %v1919
  %2966 = vmatprep.subr.bf16.mxu0 %v1916
  %2967 = vmatpush1.bf16.msra.mxu0 %v1915
  %2968 = vmatprep.subr.bf16.mxu0 %v1912
  %2969 = vmatpush1.bf16.msra.mxu0 %v1911
  %2970 = vmatprep.subr.bf16.mxu0 %v1908
  %2971 = vmatpush1.bf16.msra.mxu0 %v1907
  %2972 = vmatprep.subr.bf16.mxu0 %v1904
  %2973 = vmatpush1.bf16.msra.mxu0 %v1903
  %2974 = vmatprep.subr.bf16.mxu0 %v1900
  %2975 = vmatpush1.bf16.msra.mxu0 %v1899
  %2976 = vmatprep.subr.bf16.mxu0 %v1896
  %2977 = vmatpush1.bf16.msra.mxu0 %v1895
  %2978 = vmatprep.subr.bf16.mxu0 %v1892
  %2979 = vmatpush1.bf16.msra.mxu0 %v1891
  %2980 = vmatprep.subr.bf16.mxu0 %v1952
  %2981 = vmatpush2.bf16.msra.mxu0 %v1951
  %2982 = vmatprep.subr.bf16.mxu0 %v1948
  %2983 = vmatpush2.bf16.msra.mxu0 %v1947
  %2984 = vmatprep.subr.bf16.mxu0 %v1944
  %2985 = vmatpush2.bf16.msra.mxu0 %v1943
  %2986 = vmatprep.subr.bf16.mxu0 %v1940
  %2987 = vmatpush2.bf16.msra.mxu0 %v1939
  %2988 = vmatprep.subr.bf16.mxu0 %v1936
  %2989 = vmatpush2.bf16.msra.mxu0 %v1935
  %2990 = vmatprep.subr.bf16.mxu0 %v1932
  %2991 = vmatpush2.bf16.msra.mxu0 %v1931
  %2992 = vmatprep.subr.bf16.mxu0 %v1928
  %2993 = vmatpush2.bf16.msra.mxu0 %v1927
  %2994 = vmatprep.subr.bf16.mxu0 %v1924
  %2995 = vmatpush2.bf16.msra.mxu0 %v1923
  %2996 = vmatprep.mubr.bf16.mxu0 %v268
  %2997 = vmatmul.mubr.bf16.gmra.mxu0 %v267
  %v2998 = vpop.f32.mrf.mxu0
  %v2999 = vadd.f32 %v2946, %v2998
  %v3000 = vpop.f32.mrf.mxu0
  %v3001 = vadd.f32 %v2948, %v3000
  %v3002 = vpop.f32.mrf.mxu0
  %v3003 = vadd.f32 %v2950, %v3002
  %v3004 = vpop.f32.mrf.mxu0
  %v3005 = vadd.f32 %v2952, %v3004
  %3006 = vmatprep.mubr.bf16.mxu0 %v272
  %3007 = vmatmul.mubr.bf16.gmra.mxu0 %v271
  %v3008 = vpop.f32.mrf.mxu0
  %v3009 = vadd.f32 %v2956, %v3008
  %v3010 = vpop.f32.mrf.mxu0
  %v3011 = vadd.f32 %v2958, %v3010
  %v3012 = vpop.f32.mrf.mxu0
  %v3013 = vadd.f32 %v2960, %v3012
  %v3014 = vpop.f32.mrf.mxu0
  %v3015 = vadd.f32 %v2962, %v3014
  %3016 = vdwg.mxu0
  %3017 = vmatprep.subr.bf16.mxu0 %v1984
  %3018 = vmatpush1.bf16.msra.mxu0 %v1983
  %3019 = vmatprep.subr.bf16.mxu0 %v1980
  %3020 = vmatpush1.bf16.msra.mxu0 %v1979
  %3021 = vmatprep.subr.bf16.mxu0 %v1976
  %3022 = vmatpush1.bf16.msra.mxu0 %v1975
  %3023 = vmatprep.subr.bf16.mxu0 %v1972
  %3024 = vmatpush1.bf16.msra.mxu0 %v1971
  %3025 = vmatprep.subr.bf16.mxu0 %v1968
  %3026 = vmatpush1.bf16.msra.mxu0 %v1967
  %3027 = vmatprep.subr.bf16.mxu0 %v1964
  %3028 = vmatpush1.bf16.msra.mxu0 %v1963
  %3029 = vmatprep.subr.bf16.mxu0 %v1960
  %3030 = vmatpush1.bf16.msra.mxu0 %v1959
  %3031 = vmatprep.subr.bf16.mxu0 %v1956
  %3032 = vmatpush1.bf16.msra.mxu0 %v1955
  %3033 = vmatprep.subr.bf16.mxu0 %v2016
  %3034 = vmatpush2.bf16.msra.mxu0 %v2015
  %3035 = vmatprep.subr.bf16.mxu0 %v2012
  %3036 = vmatpush2.bf16.msra.mxu0 %v2011
  %3037 = vmatprep.subr.bf16.mxu0 %v2008
  %3038 = vmatpush2.bf16.msra.mxu0 %v2007
  %3039 = vmatprep.subr.bf16.mxu0 %v2004
  %3040 = vmatpush2.bf16.msra.mxu0 %v2003
  %3041 = vmatprep.subr.bf16.mxu0 %v2000
  %3042 = vmatpush2.bf16.msra.mxu0 %v1999
  %3043 = vmatprep.subr.bf16.mxu0 %v1996
  %3044 = vmatpush2.bf16.msra.mxu0 %v1995
  %3045 = vmatprep.subr.bf16.mxu0 %v1992
  %3046 = vmatpush2.bf16.msra.mxu0 %v1991
  %3047 = vmatprep.subr.bf16.mxu0 %v1988
  %3048 = vmatpush2.bf16.msra.mxu0 %v1987
  %3049 = vmatprep.mubr.bf16.mxu0 %v274
  %3050 = vmatmul.mubr.bf16.gmra.mxu0 %v273
  %v3051 = vpop.f32.mrf.mxu0
  %v3052 = vadd.f32 %v2999, %v3051
  %v3053 = vpop.f32.mrf.mxu0
  %v3054 = vadd.f32 %v3001, %v3053
  %v3055 = vpop.f32.mrf.mxu0
  %v3056 = vadd.f32 %v3003, %v3055
  %v3057 = vpop.f32.mrf.mxu0
  %v3058 = vadd.f32 %v3005, %v3057
  %3059 = vmatprep.mubr.bf16.mxu0 %v278
  %3060 = vmatmul.mubr.bf16.gmra.mxu0 %v277
  %v3061 = vpop.f32.mrf.mxu0
  %v3062 = vadd.f32 %v3009, %v3061
  %v3063 = vpop.f32.mrf.mxu0
  %v3064 = vadd.f32 %v3011, %v3063
  %v3065 = vpop.f32.mrf.mxu0
  %v3066 = vadd.f32 %v3013, %v3065
  %v3067 = vpop.f32.mrf.mxu0
  %v3068 = vadd.f32 %v3015, %v3067
  %3069 = vdwg.mxu0
  %3070 = vmatprep.subr.bf16.mxu0 %v2048
  %3071 = vmatpush1.bf16.msra.mxu0 %v2047
  %3072 = vmatprep.subr.bf16.mxu0 %v2044
  %3073 = vmatpush1.bf16.msra.mxu0 %v2043
  %3074 = vmatprep.subr.bf16.mxu0 %v2040
  %3075 = vmatpush1.bf16.msra.mxu0 %v2039
  %3076 = vmatprep.subr.bf16.mxu0 %v2036
  %3077 = vmatpush1.bf16.msra.mxu0 %v2035
  %3078 = vmatprep.subr.bf16.mxu0 %v2032
  %3079 = vmatpush1.bf16.msra.mxu0 %v2031
  %3080 = vmatprep.subr.bf16.mxu0 %v2028
  %3081 = vmatpush1.bf16.msra.mxu0 %v2027
  %3082 = vmatprep.subr.bf16.mxu0 %v2024
  %3083 = vmatpush1.bf16.msra.mxu0 %v2023
  %3084 = vmatprep.subr.bf16.mxu0 %v2020
  %3085 = vmatpush1.bf16.msra.mxu0 %v2019
  %3086 = vmatprep.subr.bf16.mxu0 %v2080
  %3087 = vmatpush2.bf16.msra.mxu0 %v2079
  %3088 = vmatprep.subr.bf16.mxu0 %v2076
  %3089 = vmatpush2.bf16.msra.mxu0 %v2075
  %3090 = vmatprep.subr.bf16.mxu0 %v2072
  %3091 = vmatpush2.bf16.msra.mxu0 %v2071
  %3092 = vmatprep.subr.bf16.mxu0 %v2068
  %3093 = vmatpush2.bf16.msra.mxu0 %v2067
  %3094 = vmatprep.subr.bf16.mxu0 %v2064
  %3095 = vmatpush2.bf16.msra.mxu0 %v2063
  %3096 = vmatprep.subr.bf16.mxu0 %v2060
  %3097 = vmatpush2.bf16.msra.mxu0 %v2059
  %3098 = vmatprep.subr.bf16.mxu0 %v2056
  %3099 = vmatpush2.bf16.msra.mxu0 %v2055
  %3100 = vmatprep.subr.bf16.mxu0 %v2052
  %3101 = vmatpush2.bf16.msra.mxu0 %v2051
  %3102 = vmatprep.mubr.bf16.mxu0 %v276
  %3103 = vmatmul.mubr.bf16.gmra.mxu0 %v275
  %v3104 = vpop.f32.mrf.mxu0
  %v3105 = vadd.f32 %v3052, %v3104
  %v3106 = vpop.f32.mrf.mxu0
  %v3107 = vadd.f32 %v3054, %v3106
  %v3108 = vpop.f32.mrf.mxu0
  %v3109 = vadd.f32 %v3056, %v3108
  %v3110 = vpop.f32.mrf.mxu0
  %v3111 = vadd.f32 %v3058, %v3110
  %3112 = vmatprep.mubr.bf16.mxu0 %v280
  %3113 = vmatmul.mubr.bf16.gmra.mxu0 %v279
  %v3114 = vpop.f32.mrf.mxu0
  %v3115 = vadd.f32 %v3062, %v3114
  %v3116 = vpop.f32.mrf.mxu0
  %v3117 = vadd.f32 %v3064, %v3116
  %v3118 = vpop.f32.mrf.mxu0
  %v3119 = vadd.f32 %v3066, %v3118
  %v3120 = vpop.f32.mrf.mxu0
  %v3121 = vadd.f32 %v3068, %v3120
  %3122 = vdwg.mxu0
  %3123 = vmatprep.subr.bf16.mxu0 %v2112
  %3124 = vmatpush1.bf16.msra.mxu0 %v2111
  %3125 = vmatprep.subr.bf16.mxu0 %v2108
  %3126 = vmatpush1.bf16.msra.mxu0 %v2107
  %3127 = vmatprep.subr.bf16.mxu0 %v2104
  %3128 = vmatpush1.bf16.msra.mxu0 %v2103
  %3129 = vmatprep.subr.bf16.mxu0 %v2100
  %3130 = vmatpush1.bf16.msra.mxu0 %v2099
  %3131 = vmatprep.subr.bf16.mxu0 %v2096
  %3132 = vmatpush1.bf16.msra.mxu0 %v2095
  %3133 = vmatprep.subr.bf16.mxu0 %v2092
  %3134 = vmatpush1.bf16.msra.mxu0 %v2091
  %3135 = vmatprep.subr.bf16.mxu0 %v2088
  %3136 = vmatpush1.bf16.msra.mxu0 %v2087
  %3137 = vmatprep.subr.bf16.mxu0 %v2084
  %3138 = vmatpush1.bf16.msra.mxu0 %v2083
  %3139 = vmatprep.subr.bf16.mxu0 %v2144
  %3140 = vmatpush2.bf16.msra.mxu0 %v2143
  %3141 = vmatprep.subr.bf16.mxu0 %v2140
  %3142 = vmatpush2.bf16.msra.mxu0 %v2139
  %3143 = vmatprep.subr.bf16.mxu0 %v2136
  %3144 = vmatpush2.bf16.msra.mxu0 %v2135
  %3145 = vmatprep.subr.bf16.mxu0 %v2132
  %3146 = vmatpush2.bf16.msra.mxu0 %v2131
  %3147 = vmatprep.subr.bf16.mxu0 %v2128
  %3148 = vmatpush2.bf16.msra.mxu0 %v2127
  %3149 = vmatprep.subr.bf16.mxu0 %v2124
  %3150 = vmatpush2.bf16.msra.mxu0 %v2123
  %3151 = vmatprep.subr.bf16.mxu0 %v2120
  %3152 = vmatpush2.bf16.msra.mxu0 %v2119
  %3153 = vmatprep.subr.bf16.mxu0 %v2116
  %3154 = vmatpush2.bf16.msra.mxu0 %v2115
  %3155 = vmatprep.mubr.bf16.mxu0 %v282
  %3156 = vmatmul.mubr.bf16.gmra.mxu0 %v281
  %v3157 = vpop.f32.mrf.mxu0
  %v3158 = vadd.f32 %v3105, %v3157
  %v3159 = vpop.f32.mrf.mxu0
  %v3160 = vadd.f32 %v3107, %v3159
  %v3161 = vpop.f32.mrf.mxu0
  %v3162 = vadd.f32 %v3109, %v3161
  %v3163 = vpop.f32.mrf.mxu0
  %v3164 = vadd.f32 %v3111, %v3163
  %3165 = vmatprep.mubr.bf16.mxu0 %v286
  %3166 = vmatmul.mubr.bf16.gmra.mxu0 %v285
  %v3167 = vpop.f32.mrf.mxu0
  %v3168 = vadd.f32 %v3115, %v3167
  %v3169 = vpop.f32.mrf.mxu0
  %v3170 = vadd.f32 %v3117, %v3169
  %v3171 = vpop.f32.mrf.mxu0
  %v3172 = vadd.f32 %v3119, %v3171
  %v3173 = vpop.f32.mrf.mxu0
  %v3174 = vadd.f32 %v3121, %v3173
  %3175 = vdwg.mxu0
  %3176 = vmatprep.subr.bf16.mxu0 %v2176
  %3177 = vmatpush1.bf16.msra.mxu0 %v2175
  %3178 = vmatprep.subr.bf16.mxu0 %v2172
  %3179 = vmatpush1.bf16.msra.mxu0 %v2171
  %3180 = vmatprep.subr.bf16.mxu0 %v2168
  %3181 = vmatpush1.bf16.msra.mxu0 %v2167
  %3182 = vmatprep.subr.bf16.mxu0 %v2164
  %3183 = vmatpush1.bf16.msra.mxu0 %v2163
  %3184 = vmatprep.subr.bf16.mxu0 %v2160
  %3185 = vmatpush1.bf16.msra.mxu0 %v2159
  %3186 = vmatprep.subr.bf16.mxu0 %v2156
  %3187 = vmatpush1.bf16.msra.mxu0 %v2155
  %3188 = vmatprep.subr.bf16.mxu0 %v2152
  %3189 = vmatpush1.bf16.msra.mxu0 %v2151
  %3190 = vmatprep.subr.bf16.mxu0 %v2148
  %3191 = vmatpush1.bf16.msra.mxu0 %v2147
  %3192 = vmatprep.subr.bf16.mxu0 %v2208
  %3193 = vmatpush2.bf16.msra.mxu0 %v2207
  %3194 = vmatprep.subr.bf16.mxu0 %v2204
  %3195 = vmatpush2.bf16.msra.mxu0 %v2203
  %3196 = vmatprep.subr.bf16.mxu0 %v2200
  %3197 = vmatpush2.bf16.msra.mxu0 %v2199
  %3198 = vmatprep.subr.bf16.mxu0 %v2196
  %3199 = vmatpush2.bf16.msra.mxu0 %v2195
  %3200 = vmatprep.subr.bf16.mxu0 %v2192
  %3201 = vmatpush2.bf16.msra.mxu0 %v2191
  %3202 = vmatprep.subr.bf16.mxu0 %v2188
  %3203 = vmatpush2.bf16.msra.mxu0 %v2187
  %3204 = vmatprep.subr.bf16.mxu0 %v2184
  %3205 = vmatpush2.bf16.msra.mxu0 %v2183
  %3206 = vmatprep.subr.bf16.mxu0 %v2180
  %3207 = vmatpush2.bf16.msra.mxu0 %v2179
  %3208 = vmatprep.mubr.bf16.mxu0 %v284
  %3209 = vmatmul.mubr.bf16.gmra.mxu0 %v283
  %v3210 = vpop.f32.mrf.mxu0
  %v3211 = vadd.f32 %v3158, %v3210
  %v3212 = vpop.f32.mrf.mxu0
  %v3213 = vadd.f32 %v3160, %v3212
  %v3214 = vpop.f32.mrf.mxu0
  %v3215 = vadd.f32 %v3162, %v3214
  %v3216 = vpop.f32.mrf.mxu0
  %v3217 = vadd.f32 %v3164, %v3216
  %3218 = vmatprep.mubr.bf16.mxu0 %v288
  %3219 = vmatmul.mubr.bf16.gmra.mxu0 %v287
  %v3220 = vpop.f32.mrf.mxu0
  %v3221 = vadd.f32 %v3168, %v3220
  %v3222 = vpop.f32.mrf.mxu0
  %v3223 = vadd.f32 %v3170, %v3222
  %v3224 = vpop.f32.mrf.mxu0
  %v3225 = vadd.f32 %v3172, %v3224
  %v3226 = vpop.f32.mrf.mxu0
  %v3227 = vadd.f32 %v3174, %v3226
  %3228 = vdwg.mxu0
  %v3229 = vadd.f32 %v2893, %v2897
  %v3230 = vadd.f32 %v3229, %v2903
  %v3231 = vadd.f32 %v3230, %v2907
  %v3232 = vrot.slane %v3231, 4
  %v3233 = vadd.f32 %v3231, %v3232
  %v3234 = vrot.slane %v3233, 2
  %v3235 = vadd.f32 %v3233, %v3234
  %v3236 = vrot.slane %v3235, 1
  %v3237 = vadd.f32 %v3235, %v3236
  %v3238 = vadd.f32 %v2895, %v2899
  %v3239 = vadd.f32 %v3238, %v2905
  %v3240 = vadd.f32 %v3239, %v2909
  %v3241 = vrot.slane %v3240, 4
  %v3242 = vadd.f32 %v3240, %v3241
  %v3243 = vrot.slane %v3242, 2
  %v3244 = vadd.f32 %v3242, %v3243
  %v3245 = vrot.slane %v3244, 1
  %v3246 = vadd.f32 %v3244, %v3245
  %v3247 = vadd.f32 %v3211, %v3215
  %v3248 = vadd.f32 %v3247, %v3221
  %v3249 = vadd.f32 %v3248, %v3225
  %v3250 = vrot.slane %v3249, 4
  %v3251 = vadd.f32 %v3249, %v3250
  %v3252 = vrot.slane %v3251, 2
  %v3253 = vadd.f32 %v3251, %v3252
  %v3254 = vrot.slane %v3253, 1
  %v3255 = vadd.f32 %v3253, %v3254
  %v3256 = vadd.f32 %v3213, %v3217
  %v3257 = vadd.f32 %v3256, %v3223
  %v3258 = vadd.f32 %v3257, %v3227
  %v3259 = vrot.slane %v3258, 4
  %v3260 = vadd.f32 %v3258, %v3259
  %v3261 = vrot.slane %v3260, 2
  %v3262 = vadd.f32 %v3260, %v3261
  %v3263 = vrot.slane %v3262, 1
  %v3264 = vadd.f32 %v3262, %v3263
  %v3265 = vmul.f32 %v2893, %v2893
  %v3266 = vmul.f32 %v2895, %v2895
  %v3267 = vmul.f32 %v3211, %v3211
  %v3268 = vmul.f32 %v3213, %v3213
  %v3269 = vmul.f32 %v2897, %v2897
  %v3270 = vmul.f32 %v2899, %v2899
  %v3271 = vmul.f32 %v3215, %v3215
  %v3272 = vmul.f32 %v3217, %v3217
  %v3273 = vmul.f32 %v2903, %v2903
  %v3274 = vmul.f32 %v2905, %v2905
  %v3275 = vmul.f32 %v3221, %v3221
  %v3276 = vmul.f32 %v3223, %v3223
  %v3277 = vmul.f32 %v2907, %v2907
  %v3278 = vmul.f32 %v2909, %v2909
  %v3279 = vmul.f32 %v3225, %v3225
  %v3280 = vmul.f32 %v3227, %v3227
  %v3281 = vadd.f32 %v3265, %v3269
  %v3282 = vadd.f32 %v3281, %v3273
  %v3283 = vadd.f32 %v3282, %v3277
  %v3284 = vrot.slane %v3283, 4
  %v3285 = vadd.f32 %v3283, %v3284
  %v3286 = vrot.slane %v3285, 2
  %v3287 = vadd.f32 %v3285, %v3286
  %v3288 = vrot.slane %v3287, 1
  %v3289 = vadd.f32 %v3287, %v3288
  %v3290 = vadd.f32 %v3266, %v3270
  %v3291 = vadd.f32 %v3290, %v3274
  %v3292 = vadd.f32 %v3291, %v3278
  %v3293 = vrot.slane %v3292, 4
  %v3294 = vadd.f32 %v3292, %v3293
  %v3295 = vrot.slane %v3294, 2
  %v3296 = vadd.f32 %v3294, %v3295
  %v3297 = vrot.slane %v3296, 1
  %v3298 = vadd.f32 %v3296, %v3297
  %v3299 = vadd.f32 %v3267, %v3271
  %v3300 = vadd.f32 %v3299, %v3275
  %v3301 = vadd.f32 %v3300, %v3279
  %v3302 = vrot.slane %v3301, 4
  %v3303 = vadd.f32 %v3301, %v3302
  %v3304 = vrot.slane %v3303, 2
  %v3305 = vadd.f32 %v3303, %v3304
  %v3306 = vrot.slane %v3305, 1
  %v3307 = vadd.f32 %v3305, %v3306
  %v3308 = vadd.f32 %v3268, %v3272
  %v3309 = vadd.f32 %v3308, %v3276
  %v3310 = vadd.f32 %v3309, %v3280
  %v3311 = vrot.slane %v3310, 4
  %v3312 = vadd.f32 %v3310, %v3311
  %v3313 = vrot.slane %v3312, 2
  %v3314 = vadd.f32 %v3312, %v3313
  %v3315 = vrot.slane %v3314, 1
  %v3316 = vadd.f32 %v3314, %v3315
  %v3317 = vsel %vm119, %v3237, %v3289
  %v3318 = vsel %vm119, %v3246, %v3298
  %v3319 = vsel %vm119, %v3255, %v3307
  %v3320 = vsel %vm119, %v3264, %v3316
  %3321 = vrot.lane.b32.xlu0 %v3317, 32
  %v3322 = vpop.permute.xlu0 %3321
  %3323 = vrot.lane.b32.xlu0 %v3318, 32
  %v3324 = vpop.permute.xlu0 %3323
  %3325 = vrot.lane.b32.xlu0 %v3319, 32
  %v3326 = vpop.permute.xlu0 %3325
  %3327 = vrot.lane.b32.xlu0 %v3320, 32
  %v3328 = vpop.permute.xlu0 %3327
  %v3329 = vlaneseq
  %v3330 = vand.u32 %v3329, 127
  %vm3331 = vcmp.lt.s32.totalorder %v3330, 32
  %v3332 = vsel %vm3331, %v3326, %v3328
  %v3333 = vsel %vm3331, %v3324, %v3326
  %v3334 = vsel %vm3331, %v3322, %v3324
  %v3335 = vsel %vm3331, %v3328, %v3322
  %v3336 = vadd.f32 %v3317, %v3335
  %v3337 = vadd.f32 %v3318, %v3334
  %v3338 = vadd.f32 %v3319, %v3333
  %v3339 = vadd.f32 %v3320, %v3332
  %3340 = vrot.lane.b32.xlu0 %v3336, 64
  %v3341 = vpop.permute.xlu0 %3340
  %3342 = vrot.lane.b32.xlu0 %v3337, 64
  %v3343 = vpop.permute.xlu0 %3342
  %3344 = vrot.lane.b32.xlu0 %v3338, 64
  %v3345 = vpop.permute.xlu0 %3344
  %3346 = vrot.lane.b32.xlu0 %v3339, 64
  %v3347 = vpop.permute.xlu0 %3346
  %vm3348 = vcmp.lt.s32.totalorder %v3330, 64
  %v3349 = vsel %vm3348, %v3345, %v3347
  %v3350 = vsel %vm3348, %v3343, %v3345
  %v3351 = vsel %vm3348, %v3341, %v3343
  %v3352 = vsel %vm3348, %v3347, %v3341
  %v3353 = vadd.f32 %v3336, %v3352
  %v3354 = vadd.f32 %v3337, %v3351
  %v3355 = vadd.f32 %v3338, %v3350
  %v3356 = vadd.f32 %v3339, %v3349
  %v3357 = vadd.f32 %v3353, %v3356
  %v3358 = vadd.f32 %v3354, %v3353
  %v3359 = vadd.f32 %v3355, %v3354
  %v3360 = vadd.f32 %v3356, %v3355
  %v3361 = vadd.f32 %v3357, %v3359
  %v3362 = vadd.f32 %v3358, %v3360
  %v3363 = vmul.f32 %v3361, 0.001953125
  %v3364 = vmul.f32 %v3362, 0.001953125
  %v3365 = vmul.f32 %v3363, %v3363
  %v3366 = vmul.f32 %v3364, %v3364
  %v3369 = vrot.slane %v3365, 7
  %v3370 = vrot.slane %v3366, 7
  %v3373 = vsub.f32 %v3363, %v3369
  %v3374 = vsub.f32 %v3364, %v3370
  %v3375 = vld [vmem:[%s2] sm:$0xf]
  %v3376 = vadd.f32 %v3373, 1e-05
  %v3377 = vadd.f32 %v3374, 1e-05
  %v3378 = vrsqrt.pop %v3376
  %v3379 = vrsqrt.pop %v3377
  %v3382 = vcombine.low %v3378, %v3379
  %v3384 = vunpack.c.l.s4 1966171168
  %v3385 = vunpack.c.0.s8 %v3384
  %v3386 = vlaneseq
  %v3387 = vshrl.u32 %v3386, 7
  %v3388 = vsub.s32 %v3385, %v3387
  %v3389 = vrot.slane %v3382, %v3388
  %v3390 = vcombine.high %v3389, %v3389
  %v3392 = vunpack.c.l.s4 1966171168
  %v3393 = vunpack.c.0.s8 %v3392
  %v3394 = vlaneseq
  %v3395 = vshrl.u32 %v3394, 7
  %v3396 = vsub.s32 %v3393, %v3395
  %v3397 = vrot.slane %v3390, %v3396
  %v3399 = vmul.f32 %v3375, %v3397
  %v3400 = vld [vmem:[%s3] sm:$0xf]
  %v3402 = vlaneseq
  %v3403 = vshrl.u32 %v3402, 7
  %v3404 = vsub.s32 0, %v3403
  %v3405 = vrot.slane %v3399, %v3404
  %v3406 = vlaneseq
  %v3407 = vshrl.u32 %v3406, 7
  %v3408 = vsub.s32 1, %v3407
  %v3409 = vrot.slane %v3399, %v3408
  %v3410 = vlaneseq
  %v3411 = vshrl.u32 %v3410, 7
  %v3412 = vsub.s32 2, %v3411
  %v3413 = vrot.slane %v3399, %v3412
  %v3414 = vlaneseq
  %v3415 = vshrl.u32 %v3414, 7
  %v3416 = vsub.s32 3, %v3415
  %v3417 = vrot.slane %v3399, %v3416
  %v3422 = vmul.f32 %v3363, %v3405
  %v3423 = vmul.f32 %v3364, %v3409
  %v3424 = vmul.f32 %v3363, %v3413
  %v3425 = vmul.f32 %v3364, %v3417
  %v3430 = vcombine.low %v3422, %v3423
  %v3431 = vcombine.low %v3424, %v3425
  %v3433 = vunpack.c.l.s4 1966171168
  %v3434 = vunpack.c.0.s8 %v3433
  %v3435 = vlaneseq
  %v3436 = vshrl.u32 %v3435, 7
  %v3437 = vsub.s32 %v3434, %v3436
  %v3438 = vrot.slane %v3430, %v3437
  %v3440 = vunpack.c.l.s4 1966171168
  %v3441 = vunpack.c.0.s8 %v3440
  %v3442 = vlaneseq
  %v3443 = vshrl.u32 %v3442, 7
  %v3444 = vsub.s32 %v3441, %v3443
  %v3445 = vrot.slane %v3431, %v3444
  %v3446 = vcombine.low %v3438, %v3445
  %v3448 = vunpack.c.l.s4 1966171168
  %v3449 = vunpack.c.0.s8 %v3448
  %v3450 = vlaneseq
  %v3451 = vshrl.u32 %v3450, 7
  %v3452 = vsub.s32 %v3449, %v3451
  %v3453 = vrot.slane %v3446, %v3452
  %v3455 = vsub.f32 %v3400, %v3453
  %v3456 = vmul.f32 %v2893, %v3405
  %v3457 = vmul.f32 %v2895, %v3409
  %v3458 = vmul.f32 %v3211, %v3413
  %v3459 = vmul.f32 %v3213, %v3417
  %v3460 = vmul.f32 %v2897, %v3405
  %v3461 = vmul.f32 %v2899, %v3409
  %v3462 = vmul.f32 %v3215, %v3413
  %v3463 = vmul.f32 %v3217, %v3417
  %v3464 = vmul.f32 %v2903, %v3405
  %v3465 = vmul.f32 %v2905, %v3409
  %v3466 = vmul.f32 %v3221, %v3413
  %v3467 = vmul.f32 %v3223, %v3417
  %v3468 = vmul.f32 %v2907, %v3405
  %v3469 = vmul.f32 %v2909, %v3409
  %v3470 = vmul.f32 %v3225, %v3413
  %v3471 = vmul.f32 %v3227, %v3417
  %v3473 = vlaneseq
  %v3474 = vshrl.u32 %v3473, 7
  %v3475 = vsub.s32 0, %v3474
  %v3476 = vrot.slane %v3455, %v3475
  %v3477 = vlaneseq
  %v3478 = vshrl.u32 %v3477, 7
  %v3479 = vsub.s32 1, %v3478
  %v3480 = vrot.slane %v3455, %v3479
  %v3481 = vlaneseq
  %v3482 = vshrl.u32 %v3481, 7
  %v3483 = vsub.s32 2, %v3482
  %v3484 = vrot.slane %v3455, %v3483
  %v3485 = vlaneseq
  %v3486 = vshrl.u32 %v3485, 7
  %v3487 = vsub.s32 3, %v3486
  %v3488 = vrot.slane %v3455, %v3487
  %v3493 = vadd.f32 %v3456, %v3476
  %v3494 = vadd.f32 %v3457, %v3480
  %v3495 = vadd.f32 %v3458, %v3484
  %v3496 = vadd.f32 %v3459, %v3488
  %v3497 = vadd.f32 %v3460, %v3476
  %v3498 = vadd.f32 %v3461, %v3480
  %v3499 = vadd.f32 %v3462, %v3484
  %v3500 = vadd.f32 %v3463, %v3488
  %v3501 = vadd.f32 %v3464, %v3476
  %v3502 = vadd.f32 %v3465, %v3480
  %v3503 = vadd.f32 %v3466, %v3484
  %v3504 = vadd.f32 %v3467, %v3488
  %v3505 = vadd.f32 %v3468, %v3476
  %v3506 = vadd.f32 %v3469, %v3480
  %v3507 = vadd.f32 %v3470, %v3484
  %v3508 = vadd.f32 %v3471, %v3488
  %v3509 = vmax.f32 %v3493, 0.0
  %v3510 = vmax.f32 %v3494, 0.0
  %v3511 = vmax.f32 %v3495, 0.0
  %v3512 = vmax.f32 %v3496, 0.0
  %v3513 = vmax.f32 %v3497, 0.0
  %v3514 = vmax.f32 %v3498, 0.0
  %v3515 = vmax.f32 %v3499, 0.0
  %v3516 = vmax.f32 %v3500, 0.0
  %v3517 = vmax.f32 %v3501, 0.0
  %v3518 = vmax.f32 %v3502, 0.0
  %v3519 = vmax.f32 %v3503, 0.0
  %v3520 = vmax.f32 %v3504, 0.0
  %v3521 = vmax.f32 %v3505, 0.0
  %v3522 = vmax.f32 %v3506, 0.0
  %v3523 = vmax.f32 %v3507, 0.0
  %v3524 = vmax.f32 %v3508, 0.0
  %v3541 = vrot.slane %v3509, 7
  %v3542 = vrot.slane %v3510, 7
  %v3543 = vrot.slane %v3511, 7
  %v3544 = vrot.slane %v3512, 7
  %v3545 = vrot.slane %v3513, 7
  %v3546 = vsel %vm119, %v3541, %v3545
  %v3547 = vrot.slane %v3514, 7
  %v3548 = vsel %vm119, %v3542, %v3547
  %v3549 = vrot.slane %v3515, 7
  %v3550 = vsel %vm119, %v3543, %v3549
  %v3551 = vrot.slane %v3516, 7
  %v3552 = vsel %vm119, %v3544, %v3551
  %v3553 = vrot.slane %v3517, 7
  %v3554 = vsel %vm119, %v3545, %v3553
  %v3555 = vrot.slane %v3518, 7
  %v3556 = vsel %vm119, %v3547, %v3555
  %v3557 = vrot.slane %v3519, 7
  %v3558 = vsel %vm119, %v3549, %v3557
  %v3559 = vrot.slane %v3520, 7
  %v3560 = vsel %vm119, %v3551, %v3559
  %v3561 = vrot.slane %v3521, 7
  %v3562 = vsel %vm119, %v3553, %v3561
  %v3563 = vrot.slane %v3522, 7
  %v3564 = vsel %vm119, %v3555, %v3563
  %v3565 = vrot.slane %v3523, 7
  %v3566 = vsel %vm119, %v3557, %v3565
  %v3567 = vrot.slane %v3524, 7
  %v3568 = vsel %vm119, %v3559, %v3567
  %v3585 = vsel %vm119, 0.0, %v3541
  %v3586 = vsel %vm119, 0.0, %v3542
  %v3587 = vsel %vm119, 0.0, %v3543
  %v3588 = vsel %vm119, 0.0, %v3544
  %v3589 = vsel %vm172, %v3585, 0.0
  %v3590 = vsel %vm172, %v3586, 0.0
  %v3591 = vsel %vm172, %v3587, 0.0
  %v3592 = vsel %vm172, %v3588, 0.0
  %v3593 = vsel %vm173, %v3546, 0.0
  %v3594 = vsel %vm173, %v3548, 0.0
  %v3595 = vsel %vm173, %v3550, 0.0
  %v3596 = vsel %vm173, %v3552, 0.0
  %v3597 = vsel %vm174, %v3554, 0.0
  %v3598 = vsel %vm174, %v3556, 0.0
  %v3599 = vsel %vm174, %v3558, 0.0
  %v3600 = vsel %vm174, %v3560, 0.0
  %v3601 = vsel %vm175, %v3562, 0.0
  %v3602 = vsel %vm175, %v3564, 0.0
  %v3603 = vsel %vm175, %v3566, 0.0
  %v3604 = vsel %vm175, %v3568, 0.0
  %v3605 = vrot.slane %v3509, 1
  %v3606 = vrot.slane %v3513, 1
  %v3607 = vsel %vm192, %v3605, %v3606
  %v3608 = vrot.slane %v3510, 1
  %v3609 = vrot.slane %v3514, 1
  %v3610 = vsel %vm192, %v3608, %v3609
  %v3611 = vrot.slane %v3511, 1
  %v3612 = vrot.slane %v3515, 1
  %v3613 = vsel %vm192, %v3611, %v3612
  %v3614 = vrot.slane %v3512, 1
  %v3615 = vrot.slane %v3516, 1
  %v3616 = vsel %vm192, %v3614, %v3615
  %v3617 = vrot.slane %v3517, 1
  %v3618 = vsel %vm192, %v3606, %v3617
  %v3619 = vrot.slane %v3518, 1
  %v3620 = vsel %vm192, %v3609, %v3619
  %v3621 = vrot.slane %v3519, 1
  %v3622 = vsel %vm192, %v3612, %v3621
  %v3623 = vrot.slane %v3520, 1
  %v3624 = vsel %vm192, %v3615, %v3623
  %v3625 = vrot.slane %v3521, 1
  %v3626 = vsel %vm192, %v3617, %v3625
  %v3627 = vrot.slane %v3522, 1
  %v3628 = vsel %vm192, %v3619, %v3627
  %v3629 = vrot.slane %v3523, 1
  %v3630 = vsel %vm192, %v3621, %v3629
  %v3631 = vrot.slane %v3524, 1
  %v3632 = vsel %vm192, %v3623, %v3631
  %v3649 = vsel %vm192, %v3625, 0.0
  %v3650 = vsel %vm192, %v3627, 0.0
  %v3651 = vsel %vm192, %v3629, 0.0
  %v3652 = vsel %vm192, %v3631, 0.0
  %v3653 = vsel %vm245, %v3607, 0.0
  %v3654 = vsel %vm245, %v3610, 0.0
  %v3655 = vsel %vm245, %v3613, 0.0
  %v3656 = vsel %vm245, %v3616, 0.0
  %v3657 = vsel %vm246, %v3618, 0.0
  %v3658 = vsel %vm246, %v3620, 0.0
  %v3659 = vsel %vm246, %v3622, 0.0
  %v3660 = vsel %vm246, %v3624, 0.0
  %v3661 = vsel %vm247, %v3626, 0.0
  %v3662 = vsel %vm247, %v3628, 0.0
  %v3663 = vsel %vm247, %v3630, 0.0
  %v3664 = vsel %vm247, %v3632, 0.0
  %v3665 = vsel %vm248, %v3649, 0.0
  %v3666 = vsel %vm248, %v3650, 0.0
  %v3667 = vsel %vm248, %v3651, 0.0
  %v3668 = vsel %vm248, %v3652, 0.0
  %v3669 = vpack.c.bf16 %v3593, %v3589
  %v3670 = vpack.c.bf16 %v3594, %v3590
  %v3671 = vpack.c.bf16 %v3595, %v3591
  %v3672 = vpack.c.bf16 %v3596, %v3592
  %v3673 = vpack.c.bf16 %v3601, %v3597
  %v3674 = vpack.c.bf16 %v3602, %v3598
  %v3675 = vpack.c.bf16 %v3603, %v3599
  %v3676 = vpack.c.bf16 %v3604, %v3600
  %v3677 = vpack.c.bf16 %v3513, %v3509
  %v3678 = vpack.c.bf16 %v3514, %v3510
  %v3679 = vpack.c.bf16 %v3515, %v3511
  %v3680 = vpack.c.bf16 %v3516, %v3512
  %v3681 = vpack.c.bf16 %v3521, %v3517
  %v3682 = vpack.c.bf16 %v3522, %v3518
  %v3683 = vpack.c.bf16 %v3523, %v3519
  %v3684 = vpack.c.bf16 %v3524, %v3520
  %v3685 = vpack.c.bf16 %v3657, %v3653
  %v3686 = vpack.c.bf16 %v3658, %v3654
  %v3687 = vpack.c.bf16 %v3659, %v3655
  %v3688 = vpack.c.bf16 %v3660, %v3656
  %v3689 = vpack.c.bf16 %v3665, %v3661
  %v3690 = vpack.c.bf16 %v3666, %v3662
  %v3691 = vpack.c.bf16 %v3667, %v3663
  %v3692 = vpack.c.bf16 %v3668, %v3664
  %v3693 = vld [vmem:[%s4] sm:$0xff]
  %v3694 = vld [vmem:[%s4 + $0x8] sm:$0xff]
  %v3695 = vld [vmem:[%s4 + $0x10] sm:$0xff]
  %v3696 = vld [vmem:[%s4 + $0x18] sm:$0xff]
  %v3697 = vld [vmem:[%s4 + $0x20] sm:$0xff]
  %v3698 = vld [vmem:[%s4 + $0x28] sm:$0xff]
  %v3699 = vld [vmem:[%s4 + $0x30] sm:$0xff]
  %v3700 = vld [vmem:[%s4 + $0x38] sm:$0xff]
  %v3701 = vld [vmem:[%s4 + $0x40] sm:$0xff]
  %v3702 = vld [vmem:[%s4 + $0x48] sm:$0xff]
  %v3703 = vld [vmem:[%s4 + $0x50] sm:$0xff]
  %v3704 = vld [vmem:[%s4 + $0x58] sm:$0xff]
  %v3705 = vld [vmem:[%s4 + $0x60] sm:$0xff]
  %v3706 = vld [vmem:[%s4 + $0x68] sm:$0xff]
  %v3707 = vld [vmem:[%s4 + $0x70] sm:$0xff]
  %v3708 = vld [vmem:[%s4 + $0x78] sm:$0xff]
  %v3709 = vld [vmem:[%s4 + $0x80] sm:$0xff]
  %v3710 = vld [vmem:[%s4 + $0x88] sm:$0xff]
  %v3711 = vld [vmem:[%s4 + $0x90] sm:$0xff]
  %v3712 = vld [vmem:[%s4 + $0x98] sm:$0xff]
  %v3713 = vld [vmem:[%s4 + $0xa0] sm:$0xff]
  %v3714 = vld [vmem:[%s4 + $0xa8] sm:$0xff]
  %v3715 = vld [vmem:[%s4 + $0xb0] sm:$0xff]
  %v3716 = vld [vmem:[%s4 + $0xb8] sm:$0xff]
  %v3717 = vld [vmem:[%s4 + $0xc0] sm:$0xff]
  %v3718 = vld [vmem:[%s4 + $0xc8] sm:$0xff]
  %v3719 = vld [vmem:[%s4 + $0xd0] sm:$0xff]
  %v3720 = vld [vmem:[%s4 + $0xd8] sm:$0xff]
  %v3721 = vld [vmem:[%s4 + $0xe0] sm:$0xff]
  %v3722 = vld [vmem:[%s4 + $0xe8] sm:$0xff]
  %v3723 = vld [vmem:[%s4 + $0xf0] sm:$0xff]
  %v3724 = vld [vmem:[%s4 + $0xf8] sm:$0xff]
  %v3725 = vld [vmem:[%s4 + $0x100] sm:$0xff]
  %v3726 = vld [vmem:[%s4 + $0x108] sm:$0xff]
  %v3727 = vld [vmem:[%s4 + $0x110] sm:$0xff]
  %v3728 = vld [vmem:[%s4 + $0x118] sm:$0xff]
  %v3729 = vld [vmem:[%s4 + $0x120] sm:$0xff]
  %v3730 = vld [vmem:[%s4 + $0x128] sm:$0xff]
  %v3731 = vld [vmem:[%s4 + $0x130] sm:$0xff]
  %v3732 = vld [vmem:[%s4 + $0x138] sm:$0xff]
  %v3733 = vld [vmem:[%s4 + $0x140] sm:$0xff]
  %v3734 = vld [vmem:[%s4 + $0x148] sm:$0xff]
  %v3735 = vld [vmem:[%s4 + $0x150] sm:$0xff]
  %v3736 = vld [vmem:[%s4 + $0x158] sm:$0xff]
  %v3737 = vld [vmem:[%s4 + $0x160] sm:$0xff]
  %v3738 = vld [vmem:[%s4 + $0x168] sm:$0xff]
  %v3739 = vld [vmem:[%s4 + $0x170] sm:$0xff]
  %v3740 = vld [vmem:[%s4 + $0x178] sm:$0xff]
  %v3741 = vld [vmem:[%s4 + $0x180] sm:$0xff]
  %v3742 = vld [vmem:[%s4 + $0x188] sm:$0xff]
  %v3743 = vld [vmem:[%s4 + $0x190] sm:$0xff]
  %v3744 = vld [vmem:[%s4 + $0x198] sm:$0xff]
  %v3745 = vld [vmem:[%s4 + $0x1a0] sm:$0xff]
  %v3746 = vld [vmem:[%s4 + $0x1a8] sm:$0xff]
  %v3747 = vld [vmem:[%s4 + $0x1b0] sm:$0xff]
  %v3748 = vld [vmem:[%s4 + $0x1b8] sm:$0xff]
  %v3749 = vld [vmem:[%s4 + $0x1c0] sm:$0xff]
  %v3750 = vld [vmem:[%s4 + $0x1c8] sm:$0xff]
  %v3751 = vld [vmem:[%s4 + $0x1d0] sm:$0xff]
  %v3752 = vld [vmem:[%s4 + $0x1d8] sm:$0xff]
  %v3753 = vld [vmem:[%s4 + $0x1e0] sm:$0xff]
  %v3754 = vld [vmem:[%s4 + $0x1e8] sm:$0xff]
  %v3755 = vld [vmem:[%s4 + $0x1f0] sm:$0xff]
  %v3756 = vld [vmem:[%s4 + $0x1f8] sm:$0xff]
  %v3757 = vld [vmem:[%s4 + $0x200] sm:$0xff]
  %v3758 = vld [vmem:[%s4 + $0x208] sm:$0xff]
  %v3759 = vld [vmem:[%s4 + $0x210] sm:$0xff]
  %v3760 = vld [vmem:[%s4 + $0x218] sm:$0xff]
  %v3761 = vld [vmem:[%s4 + $0x220] sm:$0xff]
  %v3762 = vld [vmem:[%s4 + $0x228] sm:$0xff]
  %v3763 = vld [vmem:[%s4 + $0x230] sm:$0xff]
  %v3764 = vld [vmem:[%s4 + $0x238] sm:$0xff]
  %v3765 = vld [vmem:[%s4 + $0x240] sm:$0xff]
  %v3766 = vld [vmem:[%s4 + $0x248] sm:$0xff]
  %v3767 = vld [vmem:[%s4 + $0x250] sm:$0xff]
  %v3768 = vld [vmem:[%s4 + $0x258] sm:$0xff]
  %v3769 = vld [vmem:[%s4 + $0x260] sm:$0xff]
  %v3770 = vld [vmem:[%s4 + $0x268] sm:$0xff]
  %v3771 = vld [vmem:[%s4 + $0x270] sm:$0xff]
  %v3772 = vld [vmem:[%s4 + $0x278] sm:$0xff]
  %v3773 = vld [vmem:[%s4 + $0x280] sm:$0xff]
  %v3774 = vld [vmem:[%s4 + $0x288] sm:$0xff]
  %v3775 = vld [vmem:[%s4 + $0x290] sm:$0xff]
  %v3776 = vld [vmem:[%s4 + $0x298] sm:$0xff]
  %v3777 = vld [vmem:[%s4 + $0x2a0] sm:$0xff]
  %v3778 = vld [vmem:[%s4 + $0x2a8] sm:$0xff]
  %v3779 = vld [vmem:[%s4 + $0x2b0] sm:$0xff]
  %v3780 = vld [vmem:[%s4 + $0x2b8] sm:$0xff]
  %v3781 = vld [vmem:[%s4 + $0x2c0] sm:$0xff]
  %v3782 = vld [vmem:[%s4 + $0x2c8] sm:$0xff]
  %v3783 = vld [vmem:[%s4 + $0x2d0] sm:$0xff]
  %v3784 = vld [vmem:[%s4 + $0x2d8] sm:$0xff]
  %v3785 = vld [vmem:[%s4 + $0x2e0] sm:$0xff]
  %v3786 = vld [vmem:[%s4 + $0x2e8] sm:$0xff]
  %v3787 = vld [vmem:[%s4 + $0x2f0] sm:$0xff]
  %v3788 = vld [vmem:[%s4 + $0x2f8] sm:$0xff]
  %v3789 = vld [vmem:[%s4 + $0x300] sm:$0xff]
  %v3790 = vld [vmem:[%s4 + $0x308] sm:$0xff]
  %v3791 = vld [vmem:[%s4 + $0x310] sm:$0xff]
  %v3792 = vld [vmem:[%s4 + $0x318] sm:$0xff]
  %v3793 = vld [vmem:[%s4 + $0x320] sm:$0xff]
  %v3794 = vld [vmem:[%s4 + $0x328] sm:$0xff]
  %v3795 = vld [vmem:[%s4 + $0x330] sm:$0xff]
  %v3796 = vld [vmem:[%s4 + $0x338] sm:$0xff]
  %v3797 = vld [vmem:[%s4 + $0x340] sm:$0xff]
  %v3798 = vld [vmem:[%s4 + $0x348] sm:$0xff]
  %v3799 = vld [vmem:[%s4 + $0x350] sm:$0xff]
  %v3800 = vld [vmem:[%s4 + $0x358] sm:$0xff]
  %v3801 = vld [vmem:[%s4 + $0x360] sm:$0xff]
  %v3802 = vld [vmem:[%s4 + $0x368] sm:$0xff]
  %v3803 = vld [vmem:[%s4 + $0x370] sm:$0xff]
  %v3804 = vld [vmem:[%s4 + $0x378] sm:$0xff]
  %v3805 = vld [vmem:[%s4 + $0x380] sm:$0xff]
  %v3806 = vld [vmem:[%s4 + $0x388] sm:$0xff]
  %v3807 = vld [vmem:[%s4 + $0x390] sm:$0xff]
  %v3808 = vld [vmem:[%s4 + $0x398] sm:$0xff]
  %v3809 = vld [vmem:[%s4 + $0x3a0] sm:$0xff]
  %v3810 = vld [vmem:[%s4 + $0x3a8] sm:$0xff]
  %v3811 = vld [vmem:[%s4 + $0x3b0] sm:$0xff]
  %v3812 = vld [vmem:[%s4 + $0x3b8] sm:$0xff]
  %v3813 = vld [vmem:[%s4 + $0x3c0] sm:$0xff]
  %v3814 = vld [vmem:[%s4 + $0x3c8] sm:$0xff]
  %v3815 = vld [vmem:[%s4 + $0x3d0] sm:$0xff]
  %v3816 = vld [vmem:[%s4 + $0x3d8] sm:$0xff]
  %v3817 = vld [vmem:[%s4 + $0x3e0] sm:$0xff]
  %v3818 = vld [vmem:[%s4 + $0x3e8] sm:$0xff]
  %v3819 = vld [vmem:[%s4 + $0x3f0] sm:$0xff]
  %v3820 = vld [vmem:[%s4 + $0x3f8] sm:$0xff]
  %v3821 = vld [vmem:[%s4 + $0x400] sm:$0xff]
  %v3822 = vld [vmem:[%s4 + $0x408] sm:$0xff]
  %v3823 = vld [vmem:[%s4 + $0x410] sm:$0xff]
  %v3824 = vld [vmem:[%s4 + $0x418] sm:$0xff]
  %v3825 = vld [vmem:[%s4 + $0x420] sm:$0xff]
  %v3826 = vld [vmem:[%s4 + $0x428] sm:$0xff]
  %v3827 = vld [vmem:[%s4 + $0x430] sm:$0xff]
  %v3828 = vld [vmem:[%s4 + $0x438] sm:$0xff]
  %v3829 = vld [vmem:[%s4 + $0x440] sm:$0xff]
  %v3830 = vld [vmem:[%s4 + $0x448] sm:$0xff]
  %v3831 = vld [vmem:[%s4 + $0x450] sm:$0xff]
  %v3832 = vld [vmem:[%s4 + $0x458] sm:$0xff]
  %v3833 = vld [vmem:[%s4 + $0x460] sm:$0xff]
  %v3834 = vld [vmem:[%s4 + $0x468] sm:$0xff]
  %v3835 = vld [vmem:[%s4 + $0x470] sm:$0xff]
  %v3836 = vld [vmem:[%s4 + $0x478] sm:$0xff]
  %v3837 = vld [vmem:[%s4 + $0x480] sm:$0xff]
  %v3838 = vld [vmem:[%s4 + $0x488] sm:$0xff]
  %v3839 = vld [vmem:[%s4 + $0x490] sm:$0xff]
  %v3840 = vld [vmem:[%s4 + $0x498] sm:$0xff]
  %v3841 = vld [vmem:[%s4 + $0x4a0] sm:$0xff]
  %v3842 = vld [vmem:[%s4 + $0x4a8] sm:$0xff]
  %v3843 = vld [vmem:[%s4 + $0x4b0] sm:$0xff]
  %v3844 = vld [vmem:[%s4 + $0x4b8] sm:$0xff]
  %v3845 = vld [vmem:[%s4 + $0x4c0] sm:$0xff]
  %v3846 = vld [vmem:[%s4 + $0x4c8] sm:$0xff]
  %v3847 = vld [vmem:[%s4 + $0x4d0] sm:$0xff]
  %v3848 = vld [vmem:[%s4 + $0x4d8] sm:$0xff]
  %v3849 = vld [vmem:[%s4 + $0x4e0] sm:$0xff]
  %v3850 = vld [vmem:[%s4 + $0x4e8] sm:$0xff]
  %v3851 = vld [vmem:[%s4 + $0x4f0] sm:$0xff]
  %v3852 = vld [vmem:[%s4 + $0x4f8] sm:$0xff]
  %v3853 = vld [vmem:[%s4 + $0x500] sm:$0xff]
  %v3854 = vld [vmem:[%s4 + $0x508] sm:$0xff]
  %v3855 = vld [vmem:[%s4 + $0x510] sm:$0xff]
  %v3856 = vld [vmem:[%s4 + $0x518] sm:$0xff]
  %v3857 = vld [vmem:[%s4 + $0x520] sm:$0xff]
  %v3858 = vld [vmem:[%s4 + $0x528] sm:$0xff]
  %v3859 = vld [vmem:[%s4 + $0x530] sm:$0xff]
  %v3860 = vld [vmem:[%s4 + $0x538] sm:$0xff]
  %v3861 = vld [vmem:[%s4 + $0x540] sm:$0xff]
  %v3862 = vld [vmem:[%s4 + $0x548] sm:$0xff]
  %v3863 = vld [vmem:[%s4 + $0x550] sm:$0xff]
  %v3864 = vld [vmem:[%s4 + $0x558] sm:$0xff]
  %v3865 = vld [vmem:[%s4 + $0x560] sm:$0xff]
  %v3866 = vld [vmem:[%s4 + $0x568] sm:$0xff]
  %v3867 = vld [vmem:[%s4 + $0x570] sm:$0xff]
  %v3868 = vld [vmem:[%s4 + $0x578] sm:$0xff]
  %v3869 = vld [vmem:[%s4 + $0x580] sm:$0xff]
  %v3870 = vld [vmem:[%s4 + $0x588] sm:$0xff]
  %v3871 = vld [vmem:[%s4 + $0x590] sm:$0xff]
  %v3872 = vld [vmem:[%s4 + $0x598] sm:$0xff]
  %v3873 = vld [vmem:[%s4 + $0x5a0] sm:$0xff]
  %v3874 = vld [vmem:[%s4 + $0x5a8] sm:$0xff]
  %v3875 = vld [vmem:[%s4 + $0x5b0] sm:$0xff]
  %v3876 = vld [vmem:[%s4 + $0x5b8] sm:$0xff]
  %v3877 = vld [vmem:[%s4 + $0x5c0] sm:$0xff]
  %v3878 = vld [vmem:[%s4 + $0x5c8] sm:$0xff]
  %v3879 = vld [vmem:[%s4 + $0x5d0] sm:$0xff]
  %v3880 = vld [vmem:[%s4 + $0x5d8] sm:$0xff]
  %v3881 = vld [vmem:[%s4 + $0x5e0] sm:$0xff]
  %v3882 = vld [vmem:[%s4 + $0x5e8] sm:$0xff]
  %v3883 = vld [vmem:[%s4 + $0x5f0] sm:$0xff]
  %v3884 = vld [vmem:[%s4 + $0x5f8] sm:$0xff]
  %v3885 = vld [vmem:[%s4 + $0x600] sm:$0xff]
  %v3886 = vld [vmem:[%s4 + $0x608] sm:$0xff]
  %v3887 = vld [vmem:[%s4 + $0x610] sm:$0xff]
  %v3888 = vld [vmem:[%s4 + $0x618] sm:$0xff]
  %v3889 = vld [vmem:[%s4 + $0x620] sm:$0xff]
  %v3890 = vld [vmem:[%s4 + $0x628] sm:$0xff]
  %v3891 = vld [vmem:[%s4 + $0x630] sm:$0xff]
  %v3892 = vld [vmem:[%s4 + $0x638] sm:$0xff]
  %v3893 = vld [vmem:[%s4 + $0x640] sm:$0xff]
  %v3894 = vld [vmem:[%s4 + $0x648] sm:$0xff]
  %v3895 = vld [vmem:[%s4 + $0x650] sm:$0xff]
  %v3896 = vld [vmem:[%s4 + $0x658] sm:$0xff]
  %v3897 = vld [vmem:[%s4 + $0x660] sm:$0xff]
  %v3898 = vld [vmem:[%s4 + $0x668] sm:$0xff]
  %v3899 = vld [vmem:[%s4 + $0x670] sm:$0xff]
  %v3900 = vld [vmem:[%s4 + $0x678] sm:$0xff]
  %v3901 = vld [vmem:[%s4 + $0x680] sm:$0xff]
  %v3902 = vld [vmem:[%s4 + $0x688] sm:$0xff]
  %v3903 = vld [vmem:[%s4 + $0x690] sm:$0xff]
  %v3904 = vld [vmem:[%s4 + $0x698] sm:$0xff]
  %v3905 = vld [vmem:[%s4 + $0x6a0] sm:$0xff]
  %v3906 = vld [vmem:[%s4 + $0x6a8] sm:$0xff]
  %v3907 = vld [vmem:[%s4 + $0x6b0] sm:$0xff]
  %v3908 = vld [vmem:[%s4 + $0x6b8] sm:$0xff]
  %v3909 = vld [vmem:[%s4 + $0x6c0] sm:$0xff]
  %v3910 = vld [vmem:[%s4 + $0x6c8] sm:$0xff]
  %v3911 = vld [vmem:[%s4 + $0x6d0] sm:$0xff]
  %v3912 = vld [vmem:[%s4 + $0x6d8] sm:$0xff]
  %v3913 = vld [vmem:[%s4 + $0x6e0] sm:$0xff]
  %v3914 = vld [vmem:[%s4 + $0x6e8] sm:$0xff]
  %v3915 = vld [vmem:[%s4 + $0x6f0] sm:$0xff]
  %v3916 = vld [vmem:[%s4 + $0x6f8] sm:$0xff]
  %v3917 = vld [vmem:[%s4 + $0x700] sm:$0xff]
  %v3918 = vld [vmem:[%s4 + $0x708] sm:$0xff]
  %v3919 = vld [vmem:[%s4 + $0x710] sm:$0xff]
  %v3920 = vld [vmem:[%s4 + $0x718] sm:$0xff]
  %v3921 = vld [vmem:[%s4 + $0x720] sm:$0xff]
  %v3922 = vld [vmem:[%s4 + $0x728] sm:$0xff]
  %v3923 = vld [vmem:[%s4 + $0x730] sm:$0xff]
  %v3924 = vld [vmem:[%s4 + $0x738] sm:$0xff]
  %v3925 = vld [vmem:[%s4 + $0x740] sm:$0xff]
  %v3926 = vld [vmem:[%s4 + $0x748] sm:$0xff]
  %v3927 = vld [vmem:[%s4 + $0x750] sm:$0xff]
  %v3928 = vld [vmem:[%s4 + $0x758] sm:$0xff]
  %v3929 = vld [vmem:[%s4 + $0x760] sm:$0xff]
  %v3930 = vld [vmem:[%s4 + $0x768] sm:$0xff]
  %v3931 = vld [vmem:[%s4 + $0x770] sm:$0xff]
  %v3932 = vld [vmem:[%s4 + $0x778] sm:$0xff]
  %v3933 = vld [vmem:[%s4 + $0x780] sm:$0xff]
  %v3934 = vld [vmem:[%s4 + $0x788] sm:$0xff]
  %v3935 = vld [vmem:[%s4 + $0x790] sm:$0xff]
  %v3936 = vld [vmem:[%s4 + $0x798] sm:$0xff]
  %v3937 = vld [vmem:[%s4 + $0x7a0] sm:$0xff]
  %v3938 = vld [vmem:[%s4 + $0x7a8] sm:$0xff]
  %v3939 = vld [vmem:[%s4 + $0x7b0] sm:$0xff]
  %v3940 = vld [vmem:[%s4 + $0x7b8] sm:$0xff]
  %v3941 = vld [vmem:[%s4 + $0x7c0] sm:$0xff]
  %v3942 = vld [vmem:[%s4 + $0x7c8] sm:$0xff]
  %v3943 = vld [vmem:[%s4 + $0x7d0] sm:$0xff]
  %v3944 = vld [vmem:[%s4 + $0x7d8] sm:$0xff]
  %v3945 = vld [vmem:[%s4 + $0x7e0] sm:$0xff]
  %v3946 = vld [vmem:[%s4 + $0x7e8] sm:$0xff]
  %v3947 = vld [vmem:[%s4 + $0x7f0] sm:$0xff]
  %v3948 = vld [vmem:[%s4 + $0x7f8] sm:$0xff]
  %v3949 = vld [vmem:[%s4 + $0x800] sm:$0xff]
  %v3950 = vld [vmem:[%s4 + $0x808] sm:$0xff]
  %v3951 = vld [vmem:[%s4 + $0x810] sm:$0xff]
  %v3952 = vld [vmem:[%s4 + $0x818] sm:$0xff]
  %v3953 = vld [vmem:[%s4 + $0x820] sm:$0xff]
  %v3954 = vld [vmem:[%s4 + $0x828] sm:$0xff]
  %v3955 = vld [vmem:[%s4 + $0x830] sm:$0xff]
  %v3956 = vld [vmem:[%s4 + $0x838] sm:$0xff]
  %v3957 = vld [vmem:[%s4 + $0x840] sm:$0xff]
  %v3958 = vld [vmem:[%s4 + $0x848] sm:$0xff]
  %v3959 = vld [vmem:[%s4 + $0x850] sm:$0xff]
  %v3960 = vld [vmem:[%s4 + $0x858] sm:$0xff]
  %v3961 = vld [vmem:[%s4 + $0x860] sm:$0xff]
  %v3962 = vld [vmem:[%s4 + $0x868] sm:$0xff]
  %v3963 = vld [vmem:[%s4 + $0x870] sm:$0xff]
  %v3964 = vld [vmem:[%s4 + $0x878] sm:$0xff]
  %v3965 = vld [vmem:[%s4 + $0x880] sm:$0xff]
  %v3966 = vld [vmem:[%s4 + $0x888] sm:$0xff]
  %v3967 = vld [vmem:[%s4 + $0x890] sm:$0xff]
  %v3968 = vld [vmem:[%s4 + $0x898] sm:$0xff]
  %v3969 = vld [vmem:[%s4 + $0x8a0] sm:$0xff]
  %v3970 = vld [vmem:[%s4 + $0x8a8] sm:$0xff]
  %v3971 = vld [vmem:[%s4 + $0x8b0] sm:$0xff]
  %v3972 = vld [vmem:[%s4 + $0x8b8] sm:$0xff]
  %v3973 = vld [vmem:[%s4 + $0x8c0] sm:$0xff]
  %v3974 = vld [vmem:[%s4 + $0x8c8] sm:$0xff]
  %v3975 = vld [vmem:[%s4 + $0x8d0] sm:$0xff]
  %v3976 = vld [vmem:[%s4 + $0x8d8] sm:$0xff]
  %v3977 = vld [vmem:[%s4 + $0x8e0] sm:$0xff]
  %v3978 = vld [vmem:[%s4 + $0x8e8] sm:$0xff]
  %v3979 = vld [vmem:[%s4 + $0x8f0] sm:$0xff]
  %v3980 = vld [vmem:[%s4 + $0x8f8] sm:$0xff]
  %v3981 = vld [vmem:[%s4 + $0x900] sm:$0xff]
  %v3982 = vld [vmem:[%s4 + $0x908] sm:$0xff]
  %v3983 = vld [vmem:[%s4 + $0x910] sm:$0xff]
  %v3984 = vld [vmem:[%s4 + $0x918] sm:$0xff]
  %v3985 = vld [vmem:[%s4 + $0x920] sm:$0xff]
  %v3986 = vld [vmem:[%s4 + $0x928] sm:$0xff]
  %v3987 = vld [vmem:[%s4 + $0x930] sm:$0xff]
  %v3988 = vld [vmem:[%s4 + $0x938] sm:$0xff]
  %v3989 = vld [vmem:[%s4 + $0x940] sm:$0xff]
  %v3990 = vld [vmem:[%s4 + $0x948] sm:$0xff]
  %v3991 = vld [vmem:[%s4 + $0x950] sm:$0xff]
  %v3992 = vld [vmem:[%s4 + $0x958] sm:$0xff]
  %v3993 = vld [vmem:[%s4 + $0x960] sm:$0xff]
  %v3994 = vld [vmem:[%s4 + $0x968] sm:$0xff]
  %v3995 = vld [vmem:[%s4 + $0x970] sm:$0xff]
  %v3996 = vld [vmem:[%s4 + $0x978] sm:$0xff]
  %v3997 = vld [vmem:[%s4 + $0x980] sm:$0xff]
  %v3998 = vld [vmem:[%s4 + $0x988] sm:$0xff]
  %v3999 = vld [vmem:[%s4 + $0x990] sm:$0xff]
  %v4000 = vld [vmem:[%s4 + $0x998] sm:$0xff]
  %v4001 = vld [vmem:[%s4 + $0x9a0] sm:$0xff]
  %v4002 = vld [vmem:[%s4 + $0x9a8] sm:$0xff]
  %v4003 = vld [vmem:[%s4 + $0x9b0] sm:$0xff]
  %v4004 = vld [vmem:[%s4 + $0x9b8] sm:$0xff]
  %v4005 = vld [vmem:[%s4 + $0x9c0] sm:$0xff]
  %v4006 = vld [vmem:[%s4 + $0x9c8] sm:$0xff]
  %v4007 = vld [vmem:[%s4 + $0x9d0] sm:$0xff]
  %v4008 = vld [vmem:[%s4 + $0x9d8] sm:$0xff]
  %v4009 = vld [vmem:[%s4 + $0x9e0] sm:$0xff]
  %v4010 = vld [vmem:[%s4 + $0x9e8] sm:$0xff]
  %v4011 = vld [vmem:[%s4 + $0x9f0] sm:$0xff]
  %v4012 = vld [vmem:[%s4 + $0x9f8] sm:$0xff]
  %v4013 = vld [vmem:[%s4 + $0xa00] sm:$0xff]
  %v4014 = vld [vmem:[%s4 + $0xa08] sm:$0xff]
  %v4015 = vld [vmem:[%s4 + $0xa10] sm:$0xff]
  %v4016 = vld [vmem:[%s4 + $0xa18] sm:$0xff]
  %v4017 = vld [vmem:[%s4 + $0xa20] sm:$0xff]
  %v4018 = vld [vmem:[%s4 + $0xa28] sm:$0xff]
  %v4019 = vld [vmem:[%s4 + $0xa30] sm:$0xff]
  %v4020 = vld [vmem:[%s4 + $0xa38] sm:$0xff]
  %v4021 = vld [vmem:[%s4 + $0xa40] sm:$0xff]
  %v4022 = vld [vmem:[%s4 + $0xa48] sm:$0xff]
  %v4023 = vld [vmem:[%s4 + $0xa50] sm:$0xff]
  %v4024 = vld [vmem:[%s4 + $0xa58] sm:$0xff]
  %v4025 = vld [vmem:[%s4 + $0xa60] sm:$0xff]
  %v4026 = vld [vmem:[%s4 + $0xa68] sm:$0xff]
  %v4027 = vld [vmem:[%s4 + $0xa70] sm:$0xff]
  %v4028 = vld [vmem:[%s4 + $0xa78] sm:$0xff]
  %v4029 = vld [vmem:[%s4 + $0xa80] sm:$0xff]
  %v4030 = vld [vmem:[%s4 + $0xa88] sm:$0xff]
  %v4031 = vld [vmem:[%s4 + $0xa90] sm:$0xff]
  %v4032 = vld [vmem:[%s4 + $0xa98] sm:$0xff]
  %v4033 = vld [vmem:[%s4 + $0xaa0] sm:$0xff]
  %v4034 = vld [vmem:[%s4 + $0xaa8] sm:$0xff]
  %v4035 = vld [vmem:[%s4 + $0xab0] sm:$0xff]
  %v4036 = vld [vmem:[%s4 + $0xab8] sm:$0xff]
  %v4037 = vld [vmem:[%s4 + $0xac0] sm:$0xff]
  %v4038 = vld [vmem:[%s4 + $0xac8] sm:$0xff]
  %v4039 = vld [vmem:[%s4 + $0xad0] sm:$0xff]
  %v4040 = vld [vmem:[%s4 + $0xad8] sm:$0xff]
  %v4041 = vld [vmem:[%s4 + $0xae0] sm:$0xff]
  %v4042 = vld [vmem:[%s4 + $0xae8] sm:$0xff]
  %v4043 = vld [vmem:[%s4 + $0xaf0] sm:$0xff]
  %v4044 = vld [vmem:[%s4 + $0xaf8] sm:$0xff]
  %v4045 = vld [vmem:[%s4 + $0xb00] sm:$0xff]
  %v4046 = vld [vmem:[%s4 + $0xb08] sm:$0xff]
  %v4047 = vld [vmem:[%s4 + $0xb10] sm:$0xff]
  %v4048 = vld [vmem:[%s4 + $0xb18] sm:$0xff]
  %v4049 = vld [vmem:[%s4 + $0xb20] sm:$0xff]
  %v4050 = vld [vmem:[%s4 + $0xb28] sm:$0xff]
  %v4051 = vld [vmem:[%s4 + $0xb30] sm:$0xff]
  %v4052 = vld [vmem:[%s4 + $0xb38] sm:$0xff]
  %v4053 = vld [vmem:[%s4 + $0xb40] sm:$0xff]
  %v4054 = vld [vmem:[%s4 + $0xb48] sm:$0xff]
  %v4055 = vld [vmem:[%s4 + $0xb50] sm:$0xff]
  %v4056 = vld [vmem:[%s4 + $0xb58] sm:$0xff]
  %v4057 = vld [vmem:[%s4 + $0xb60] sm:$0xff]
  %v4058 = vld [vmem:[%s4 + $0xb68] sm:$0xff]
  %v4059 = vld [vmem:[%s4 + $0xb70] sm:$0xff]
  %v4060 = vld [vmem:[%s4 + $0xb78] sm:$0xff]
  %v4061 = vld [vmem:[%s4 + $0xb80] sm:$0xff]
  %v4062 = vld [vmem:[%s4 + $0xb88] sm:$0xff]
  %v4063 = vld [vmem:[%s4 + $0xb90] sm:$0xff]
  %v4064 = vld [vmem:[%s4 + $0xb98] sm:$0xff]
  %v4065 = vld [vmem:[%s4 + $0xba0] sm:$0xff]
  %v4066 = vld [vmem:[%s4 + $0xba8] sm:$0xff]
  %v4067 = vld [vmem:[%s4 + $0xbb0] sm:$0xff]
  %v4068 = vld [vmem:[%s4 + $0xbb8] sm:$0xff]
  %v4069 = vld [vmem:[%s4 + $0xbc0] sm:$0xff]
  %v4070 = vld [vmem:[%s4 + $0xbc8] sm:$0xff]
  %v4071 = vld [vmem:[%s4 + $0xbd0] sm:$0xff]
  %v4072 = vld [vmem:[%s4 + $0xbd8] sm:$0xff]
  %v4073 = vld [vmem:[%s4 + $0xbe0] sm:$0xff]
  %v4074 = vld [vmem:[%s4 + $0xbe8] sm:$0xff]
  %v4075 = vld [vmem:[%s4 + $0xbf0] sm:$0xff]
  %v4076 = vld [vmem:[%s4 + $0xbf8] sm:$0xff]
  %v4461 = vunpack.c.l.b16 %v3693
  %v4462 = vunpack.c.h.b16 %v3693
  %v4463 = vunpack.c.l.b16 %v3694
  %v4464 = vunpack.c.h.b16 %v3694
  %v4465 = vunpack.c.l.b16 %v3695
  %v4466 = vunpack.c.h.b16 %v3695
  %v4467 = vunpack.c.l.b16 %v3696
  %v4468 = vunpack.c.h.b16 %v3696
  %v4469 = vunpack.c.l.b16 %v3697
  %v4470 = vunpack.c.h.b16 %v3697
  %v4471 = vunpack.c.l.b16 %v3698
  %v4472 = vunpack.c.h.b16 %v3698
  %v4473 = vunpack.c.l.b16 %v3699
  %v4474 = vunpack.c.h.b16 %v3699
  %v4475 = vunpack.c.l.b16 %v3700
  %v4476 = vunpack.c.h.b16 %v3700
  %v4477 = vunpack.c.l.b16 %v3701
  %v4478 = vunpack.c.h.b16 %v3701
  %v4479 = vunpack.c.l.b16 %v3702
  %v4480 = vunpack.c.h.b16 %v3702
  %v4481 = vunpack.c.l.b16 %v3703
  %v4482 = vunpack.c.h.b16 %v3703
  %v4483 = vunpack.c.l.b16 %v3704
  %v4484 = vunpack.c.h.b16 %v3704
  %v4485 = vunpack.c.l.b16 %v3705
  %v4486 = vunpack.c.h.b16 %v3705
  %v4487 = vunpack.c.l.b16 %v3706
  %v4488 = vunpack.c.h.b16 %v3706
  %v4489 = vunpack.c.l.b16 %v3707
  %v4490 = vunpack.c.h.b16 %v3707
  %v4491 = vunpack.c.l.b16 %v3708
  %v4492 = vunpack.c.h.b16 %v3708
  %v4493 = vunpack.c.l.b16 %v3709
  %v4494 = vunpack.c.h.b16 %v3709
  %v4495 = vunpack.c.l.b16 %v3710
  %v4496 = vunpack.c.h.b16 %v3710
  %v4497 = vunpack.c.l.b16 %v3711
  %v4498 = vunpack.c.h.b16 %v3711
  %v4499 = vunpack.c.l.b16 %v3712
  %v4500 = vunpack.c.h.b16 %v3712
  %v4501 = vunpack.c.l.b16 %v3713
  %v4502 = vunpack.c.h.b16 %v3713
  %v4503 = vunpack.c.l.b16 %v3714
  %v4504 = vunpack.c.h.b16 %v3714
  %v4505 = vunpack.c.l.b16 %v3715
  %v4506 = vunpack.c.h.b16 %v3715
  %v4507 = vunpack.c.l.b16 %v3716
  %v4508 = vunpack.c.h.b16 %v3716
  %v4509 = vunpack.c.l.b16 %v3717
  %v4510 = vunpack.c.h.b16 %v3717
  %v4511 = vunpack.c.l.b16 %v3718
  %v4512 = vunpack.c.h.b16 %v3718
  %v4513 = vunpack.c.l.b16 %v3719
  %v4514 = vunpack.c.h.b16 %v3719
  %v4515 = vunpack.c.l.b16 %v3720
  %v4516 = vunpack.c.h.b16 %v3720
  %v4517 = vunpack.c.l.b16 %v3721
  %v4518 = vunpack.c.h.b16 %v3721
  %v4519 = vunpack.c.l.b16 %v3722
  %v4520 = vunpack.c.h.b16 %v3722
  %v4521 = vunpack.c.l.b16 %v3723
  %v4522 = vunpack.c.h.b16 %v3723
  %v4523 = vunpack.c.l.b16 %v3724
  %v4524 = vunpack.c.h.b16 %v3724
  %v4525 = vunpack.c.l.b16 %v3725
  %v4526 = vunpack.c.h.b16 %v3725
  %v4527 = vunpack.c.l.b16 %v3726
  %v4528 = vunpack.c.h.b16 %v3726
  %v4529 = vunpack.c.l.b16 %v3727
  %v4530 = vunpack.c.h.b16 %v3727
  %v4531 = vunpack.c.l.b16 %v3728
  %v4532 = vunpack.c.h.b16 %v3728
  %v4533 = vunpack.c.l.b16 %v3729
  %v4534 = vunpack.c.h.b16 %v3729
  %v4535 = vunpack.c.l.b16 %v3730
  %v4536 = vunpack.c.h.b16 %v3730
  %v4537 = vunpack.c.l.b16 %v3731
  %v4538 = vunpack.c.h.b16 %v3731
  %v4539 = vunpack.c.l.b16 %v3732
  %v4540 = vunpack.c.h.b16 %v3732
  %v4541 = vunpack.c.l.b16 %v3733
  %v4542 = vunpack.c.h.b16 %v3733
  %v4543 = vunpack.c.l.b16 %v3734
  %v4544 = vunpack.c.h.b16 %v3734
  %v4545 = vunpack.c.l.b16 %v3735
  %v4546 = vunpack.c.h.b16 %v3735
  %v4547 = vunpack.c.l.b16 %v3736
  %v4548 = vunpack.c.h.b16 %v3736
  %v4549 = vunpack.c.l.b16 %v3737
  %v4550 = vunpack.c.h.b16 %v3737
  %v4551 = vunpack.c.l.b16 %v3738
  %v4552 = vunpack.c.h.b16 %v3738
  %v4553 = vunpack.c.l.b16 %v3739
  %v4554 = vunpack.c.h.b16 %v3739
  %v4555 = vunpack.c.l.b16 %v3740
  %v4556 = vunpack.c.h.b16 %v3740
  %v4557 = vunpack.c.l.b16 %v3741
  %v4558 = vunpack.c.h.b16 %v3741
  %v4559 = vunpack.c.l.b16 %v3742
  %v4560 = vunpack.c.h.b16 %v3742
  %v4561 = vunpack.c.l.b16 %v3743
  %v4562 = vunpack.c.h.b16 %v3743
  %v4563 = vunpack.c.l.b16 %v3744
  %v4564 = vunpack.c.h.b16 %v3744
  %v4565 = vunpack.c.l.b16 %v3745
  %v4566 = vunpack.c.h.b16 %v3745
  %v4567 = vunpack.c.l.b16 %v3746
  %v4568 = vunpack.c.h.b16 %v3746
  %v4569 = vunpack.c.l.b16 %v3747
  %v4570 = vunpack.c.h.b16 %v3747
  %v4571 = vunpack.c.l.b16 %v3748
  %v4572 = vunpack.c.h.b16 %v3748
  %v4573 = vunpack.c.l.b16 %v3749
  %v4574 = vunpack.c.h.b16 %v3749
  %v4575 = vunpack.c.l.b16 %v3750
  %v4576 = vunpack.c.h.b16 %v3750
  %v4577 = vunpack.c.l.b16 %v3751
  %v4578 = vunpack.c.h.b16 %v3751
  %v4579 = vunpack.c.l.b16 %v3752
  %v4580 = vunpack.c.h.b16 %v3752
  %v4581 = vunpack.c.l.b16 %v3753
  %v4582 = vunpack.c.h.b16 %v3753
  %v4583 = vunpack.c.l.b16 %v3754
  %v4584 = vunpack.c.h.b16 %v3754
  %v4585 = vunpack.c.l.b16 %v3755
  %v4586 = vunpack.c.h.b16 %v3755
  %v4587 = vunpack.c.l.b16 %v3756
  %v4588 = vunpack.c.h.b16 %v3756
  %v4589 = vunpack.c.l.b16 %v3757
  %v4590 = vunpack.c.h.b16 %v3757
  %v4591 = vunpack.c.l.b16 %v3758
  %v4592 = vunpack.c.h.b16 %v3758
  %v4593 = vunpack.c.l.b16 %v3759
  %v4594 = vunpack.c.h.b16 %v3759
  %v4595 = vunpack.c.l.b16 %v3760
  %v4596 = vunpack.c.h.b16 %v3760
  %v4597 = vunpack.c.l.b16 %v3761
  %v4598 = vunpack.c.h.b16 %v3761
  %v4599 = vunpack.c.l.b16 %v3762
  %v4600 = vunpack.c.h.b16 %v3762
  %v4601 = vunpack.c.l.b16 %v3763
  %v4602 = vunpack.c.h.b16 %v3763
  %v4603 = vunpack.c.l.b16 %v3764
  %v4604 = vunpack.c.h.b16 %v3764
  %v4605 = vunpack.c.l.b16 %v3765
  %v4606 = vunpack.c.h.b16 %v3765
  %v4607 = vunpack.c.l.b16 %v3766
  %v4608 = vunpack.c.h.b16 %v3766
  %v4609 = vunpack.c.l.b16 %v3767
  %v4610 = vunpack.c.h.b16 %v3767
  %v4611 = vunpack.c.l.b16 %v3768
  %v4612 = vunpack.c.h.b16 %v3768
  %v4613 = vunpack.c.l.b16 %v3769
  %v4614 = vunpack.c.h.b16 %v3769
  %v4615 = vunpack.c.l.b16 %v3770
  %v4616 = vunpack.c.h.b16 %v3770
  %v4617 = vunpack.c.l.b16 %v3771
  %v4618 = vunpack.c.h.b16 %v3771
  %v4619 = vunpack.c.l.b16 %v3772
  %v4620 = vunpack.c.h.b16 %v3772
  %v4621 = vunpack.c.l.b16 %v3773
  %v4622 = vunpack.c.h.b16 %v3773
  %v4623 = vunpack.c.l.b16 %v3774
  %v4624 = vunpack.c.h.b16 %v3774
  %v4625 = vunpack.c.l.b16 %v3775
  %v4626 = vunpack.c.h.b16 %v3775
  %v4627 = vunpack.c.l.b16 %v3776
  %v4628 = vunpack.c.h.b16 %v3776
  %v4629 = vunpack.c.l.b16 %v3777
  %v4630 = vunpack.c.h.b16 %v3777
  %v4631 = vunpack.c.l.b16 %v3778
  %v4632 = vunpack.c.h.b16 %v3778
  %v4633 = vunpack.c.l.b16 %v3779
  %v4634 = vunpack.c.h.b16 %v3779
  %v4635 = vunpack.c.l.b16 %v3780
  %v4636 = vunpack.c.h.b16 %v3780
  %v4637 = vunpack.c.l.b16 %v3781
  %v4638 = vunpack.c.h.b16 %v3781
  %v4639 = vunpack.c.l.b16 %v3782
  %v4640 = vunpack.c.h.b16 %v3782
  %v4641 = vunpack.c.l.b16 %v3783
  %v4642 = vunpack.c.h.b16 %v3783
  %v4643 = vunpack.c.l.b16 %v3784
  %v4644 = vunpack.c.h.b16 %v3784
  %v4645 = vunpack.c.l.b16 %v3785
  %v4646 = vunpack.c.h.b16 %v3785
  %v4647 = vunpack.c.l.b16 %v3786
  %v4648 = vunpack.c.h.b16 %v3786
  %v4649 = vunpack.c.l.b16 %v3787
  %v4650 = vunpack.c.h.b16 %v3787
  %v4651 = vunpack.c.l.b16 %v3788
  %v4652 = vunpack.c.h.b16 %v3788
  %v4653 = vunpack.c.l.b16 %v3789
  %v4654 = vunpack.c.h.b16 %v3789
  %v4655 = vunpack.c.l.b16 %v3790
  %v4656 = vunpack.c.h.b16 %v3790
  %v4657 = vunpack.c.l.b16 %v3791
  %v4658 = vunpack.c.h.b16 %v3791
  %v4659 = vunpack.c.l.b16 %v3792
  %v4660 = vunpack.c.h.b16 %v3792
  %v4661 = vunpack.c.l.b16 %v3793
  %v4662 = vunpack.c.h.b16 %v3793
  %v4663 = vunpack.c.l.b16 %v3794
  %v4664 = vunpack.c.h.b16 %v3794
  %v4665 = vunpack.c.l.b16 %v3795
  %v4666 = vunpack.c.h.b16 %v3795
  %v4667 = vunpack.c.l.b16 %v3796
  %v4668 = vunpack.c.h.b16 %v3796
  %v4669 = vunpack.c.l.b16 %v3797
  %v4670 = vunpack.c.h.b16 %v3797
  %v4671 = vunpack.c.l.b16 %v3798
  %v4672 = vunpack.c.h.b16 %v3798
  %v4673 = vunpack.c.l.b16 %v3799
  %v4674 = vunpack.c.h.b16 %v3799
  %v4675 = vunpack.c.l.b16 %v3800
  %v4676 = vunpack.c.h.b16 %v3800
  %v4677 = vunpack.c.l.b16 %v3801
  %v4678 = vunpack.c.h.b16 %v3801
  %v4679 = vunpack.c.l.b16 %v3802
  %v4680 = vunpack.c.h.b16 %v3802
  %v4681 = vunpack.c.l.b16 %v3803
  %v4682 = vunpack.c.h.b16 %v3803
  %v4683 = vunpack.c.l.b16 %v3804
  %v4684 = vunpack.c.h.b16 %v3804
  %v4685 = vunpack.c.l.b16 %v3805
  %v4686 = vunpack.c.h.b16 %v3805
  %v4687 = vunpack.c.l.b16 %v3806
  %v4688 = vunpack.c.h.b16 %v3806
  %v4689 = vunpack.c.l.b16 %v3807
  %v4690 = vunpack.c.h.b16 %v3807
  %v4691 = vunpack.c.l.b16 %v3808
  %v4692 = vunpack.c.h.b16 %v3808
  %v4693 = vunpack.c.l.b16 %v3809
  %v4694 = vunpack.c.h.b16 %v3809
  %v4695 = vunpack.c.l.b16 %v3810
  %v4696 = vunpack.c.h.b16 %v3810
  %v4697 = vunpack.c.l.b16 %v3811
  %v4698 = vunpack.c.h.b16 %v3811
  %v4699 = vunpack.c.l.b16 %v3812
  %v4700 = vunpack.c.h.b16 %v3812
  %v4701 = vunpack.c.l.b16 %v3813
  %v4702 = vunpack.c.h.b16 %v3813
  %v4703 = vunpack.c.l.b16 %v3814
  %v4704 = vunpack.c.h.b16 %v3814
  %v4705 = vunpack.c.l.b16 %v3815
  %v4706 = vunpack.c.h.b16 %v3815
  %v4707 = vunpack.c.l.b16 %v3816
  %v4708 = vunpack.c.h.b16 %v3816
  %v4709 = vunpack.c.l.b16 %v3817
  %v4710 = vunpack.c.h.b16 %v3817
  %v4711 = vunpack.c.l.b16 %v3818
  %v4712 = vunpack.c.h.b16 %v3818
  %v4713 = vunpack.c.l.b16 %v3819
  %v4714 = vunpack.c.h.b16 %v3819
  %v4715 = vunpack.c.l.b16 %v3820
  %v4716 = vunpack.c.h.b16 %v3820
  %v4717 = vunpack.c.l.b16 %v3821
  %v4718 = vunpack.c.h.b16 %v3821
  %v4719 = vunpack.c.l.b16 %v3822
  %v4720 = vunpack.c.h.b16 %v3822
  %v4721 = vunpack.c.l.b16 %v3823
  %v4722 = vunpack.c.h.b16 %v3823
  %v4723 = vunpack.c.l.b16 %v3824
  %v4724 = vunpack.c.h.b16 %v3824
  %v4725 = vunpack.c.l.b16 %v3825
  %v4726 = vunpack.c.h.b16 %v3825
  %v4727 = vunpack.c.l.b16 %v3826
  %v4728 = vunpack.c.h.b16 %v3826
  %v4729 = vunpack.c.l.b16 %v3827
  %v4730 = vunpack.c.h.b16 %v3827
  %v4731 = vunpack.c.l.b16 %v3828
  %v4732 = vunpack.c.h.b16 %v3828
  %v4733 = vunpack.c.l.b16 %v3829
  %v4734 = vunpack.c.h.b16 %v3829
  %v4735 = vunpack.c.l.b16 %v3830
  %v4736 = vunpack.c.h.b16 %v3830
  %v4737 = vunpack.c.l.b16 %v3831
  %v4738 = vunpack.c.h.b16 %v3831
  %v4739 = vunpack.c.l.b16 %v3832
  %v4740 = vunpack.c.h.b16 %v3832
  %v4741 = vunpack.c.l.b16 %v3833
  %v4742 = vunpack.c.h.b16 %v3833
  %v4743 = vunpack.c.l.b16 %v3834
  %v4744 = vunpack.c.h.b16 %v3834
  %v4745 = vunpack.c.l.b16 %v3835
  %v4746 = vunpack.c.h.b16 %v3835
  %v4747 = vunpack.c.l.b16 %v3836
  %v4748 = vunpack.c.h.b16 %v3836
  %v4749 = vunpack.c.l.b16 %v3837
  %v4750 = vunpack.c.h.b16 %v3837
  %v4751 = vunpack.c.l.b16 %v3838
  %v4752 = vunpack.c.h.b16 %v3838
  %v4753 = vunpack.c.l.b16 %v3839
  %v4754 = vunpack.c.h.b16 %v3839
  %v4755 = vunpack.c.l.b16 %v3840
  %v4756 = vunpack.c.h.b16 %v3840
  %v4757 = vunpack.c.l.b16 %v3841
  %v4758 = vunpack.c.h.b16 %v3841
  %v4759 = vunpack.c.l.b16 %v3842
  %v4760 = vunpack.c.h.b16 %v3842
  %v4761 = vunpack.c.l.b16 %v3843
  %v4762 = vunpack.c.h.b16 %v3843
  %v4763 = vunpack.c.l.b16 %v3844
  %v4764 = vunpack.c.h.b16 %v3844
  %v4765 = vunpack.c.l.b16 %v3845
  %v4766 = vunpack.c.h.b16 %v3845
  %v4767 = vunpack.c.l.b16 %v3846
  %v4768 = vunpack.c.h.b16 %v3846
  %v4769 = vunpack.c.l.b16 %v3847
  %v4770 = vunpack.c.h.b16 %v3847
  %v4771 = vunpack.c.l.b16 %v3848
  %v4772 = vunpack.c.h.b16 %v3848
  %v4773 = vunpack.c.l.b16 %v3849
  %v4774 = vunpack.c.h.b16 %v3849
  %v4775 = vunpack.c.l.b16 %v3850
  %v4776 = vunpack.c.h.b16 %v3850
  %v4777 = vunpack.c.l.b16 %v3851
  %v4778 = vunpack.c.h.b16 %v3851
  %v4779 = vunpack.c.l.b16 %v3852
  %v4780 = vunpack.c.h.b16 %v3852
  %v4781 = vunpack.c.l.b16 %v3853
  %v4782 = vunpack.c.h.b16 %v3853
  %v4783 = vunpack.c.l.b16 %v3854
  %v4784 = vunpack.c.h.b16 %v3854
  %v4785 = vunpack.c.l.b16 %v3855
  %v4786 = vunpack.c.h.b16 %v3855
  %v4787 = vunpack.c.l.b16 %v3856
  %v4788 = vunpack.c.h.b16 %v3856
  %v4789 = vunpack.c.l.b16 %v3857
  %v4790 = vunpack.c.h.b16 %v3857
  %v4791 = vunpack.c.l.b16 %v3858
  %v4792 = vunpack.c.h.b16 %v3858
  %v4793 = vunpack.c.l.b16 %v3859
  %v4794 = vunpack.c.h.b16 %v3859
  %v4795 = vunpack.c.l.b16 %v3860
  %v4796 = vunpack.c.h.b16 %v3860
  %v4797 = vunpack.c.l.b16 %v3861
  %v4798 = vunpack.c.h.b16 %v3861
  %v4799 = vunpack.c.l.b16 %v3862
  %v4800 = vunpack.c.h.b16 %v3862
  %v4801 = vunpack.c.l.b16 %v3863
  %v4802 = vunpack.c.h.b16 %v3863
  %v4803 = vunpack.c.l.b16 %v3864
  %v4804 = vunpack.c.h.b16 %v3864
  %v4805 = vunpack.c.l.b16 %v3865
  %v4806 = vunpack.c.h.b16 %v3865
  %v4807 = vunpack.c.l.b16 %v3866
  %v4808 = vunpack.c.h.b16 %v3866
  %v4809 = vunpack.c.l.b16 %v3867
  %v4810 = vunpack.c.h.b16 %v3867
  %v4811 = vunpack.c.l.b16 %v3868
  %v4812 = vunpack.c.h.b16 %v3868
  %v4813 = vunpack.c.l.b16 %v3869
  %v4814 = vunpack.c.h.b16 %v3869
  %v4815 = vunpack.c.l.b16 %v3870
  %v4816 = vunpack.c.h.b16 %v3870
  %v4817 = vunpack.c.l.b16 %v3871
  %v4818 = vunpack.c.h.b16 %v3871
  %v4819 = vunpack.c.l.b16 %v3872
  %v4820 = vunpack.c.h.b16 %v3872
  %v4821 = vunpack.c.l.b16 %v3873
  %v4822 = vunpack.c.h.b16 %v3873
  %v4823 = vunpack.c.l.b16 %v3874
  %v4824 = vunpack.c.h.b16 %v3874
  %v4825 = vunpack.c.l.b16 %v3875
  %v4826 = vunpack.c.h.b16 %v3875
  %v4827 = vunpack.c.l.b16 %v3876
  %v4828 = vunpack.c.h.b16 %v3876
  %v4829 = vunpack.c.l.b16 %v3877
  %v4830 = vunpack.c.h.b16 %v3877
  %v4831 = vunpack.c.l.b16 %v3878
  %v4832 = vunpack.c.h.b16 %v3878
  %v4833 = vunpack.c.l.b16 %v3879
  %v4834 = vunpack.c.h.b16 %v3879
  %v4835 = vunpack.c.l.b16 %v3880
  %v4836 = vunpack.c.h.b16 %v3880
  %v4837 = vunpack.c.l.b16 %v3881
  %v4838 = vunpack.c.h.b16 %v3881
  %v4839 = vunpack.c.l.b16 %v3882
  %v4840 = vunpack.c.h.b16 %v3882
  %v4841 = vunpack.c.l.b16 %v3883
  %v4842 = vunpack.c.h.b16 %v3883
  %v4843 = vunpack.c.l.b16 %v3884
  %v4844 = vunpack.c.h.b16 %v3884
  %v4845 = vunpack.c.l.b16 %v3885
  %v4846 = vunpack.c.h.b16 %v3885
  %v4847 = vunpack.c.l.b16 %v3886
  %v4848 = vunpack.c.h.b16 %v3886
  %v4849 = vunpack.c.l.b16 %v3887
  %v4850 = vunpack.c.h.b16 %v3887
  %v4851 = vunpack.c.l.b16 %v3888
  %v4852 = vunpack.c.h.b16 %v3888
  %v4853 = vunpack.c.l.b16 %v3889
  %v4854 = vunpack.c.h.b16 %v3889
  %v4855 = vunpack.c.l.b16 %v3890
  %v4856 = vunpack.c.h.b16 %v3890
  %v4857 = vunpack.c.l.b16 %v3891
  %v4858 = vunpack.c.h.b16 %v3891
  %v4859 = vunpack.c.l.b16 %v3892
  %v4860 = vunpack.c.h.b16 %v3892
  %v4861 = vunpack.c.l.b16 %v3893
  %v4862 = vunpack.c.h.b16 %v3893
  %v4863 = vunpack.c.l.b16 %v3894
  %v4864 = vunpack.c.h.b16 %v3894
  %v4865 = vunpack.c.l.b16 %v3895
  %v4866 = vunpack.c.h.b16 %v3895
  %v4867 = vunpack.c.l.b16 %v3896
  %v4868 = vunpack.c.h.b16 %v3896
  %v4869 = vunpack.c.l.b16 %v3897
  %v4870 = vunpack.c.h.b16 %v3897
  %v4871 = vunpack.c.l.b16 %v3898
  %v4872 = vunpack.c.h.b16 %v3898
  %v4873 = vunpack.c.l.b16 %v3899
  %v4874 = vunpack.c.h.b16 %v3899
  %v4875 = vunpack.c.l.b16 %v3900
  %v4876 = vunpack.c.h.b16 %v3900
  %v4877 = vunpack.c.l.b16 %v3901
  %v4878 = vunpack.c.h.b16 %v3901
  %v4879 = vunpack.c.l.b16 %v3902
  %v4880 = vunpack.c.h.b16 %v3902
  %v4881 = vunpack.c.l.b16 %v3903
  %v4882 = vunpack.c.h.b16 %v3903
  %v4883 = vunpack.c.l.b16 %v3904
  %v4884 = vunpack.c.h.b16 %v3904
  %v4885 = vunpack.c.l.b16 %v3905
  %v4886 = vunpack.c.h.b16 %v3905
  %v4887 = vunpack.c.l.b16 %v3906
  %v4888 = vunpack.c.h.b16 %v3906
  %v4889 = vunpack.c.l.b16 %v3907
  %v4890 = vunpack.c.h.b16 %v3907
  %v4891 = vunpack.c.l.b16 %v3908
  %v4892 = vunpack.c.h.b16 %v3908
  %v4893 = vunpack.c.l.b16 %v3909
  %v4894 = vunpack.c.h.b16 %v3909
  %v4895 = vunpack.c.l.b16 %v3910
  %v4896 = vunpack.c.h.b16 %v3910
  %v4897 = vunpack.c.l.b16 %v3911
  %v4898 = vunpack.c.h.b16 %v3911
  %v4899 = vunpack.c.l.b16 %v3912
  %v4900 = vunpack.c.h.b16 %v3912
  %v4901 = vunpack.c.l.b16 %v3913
  %v4902 = vunpack.c.h.b16 %v3913
  %v4903 = vunpack.c.l.b16 %v3914
  %v4904 = vunpack.c.h.b16 %v3914
  %v4905 = vunpack.c.l.b16 %v3915
  %v4906 = vunpack.c.h.b16 %v3915
  %v4907 = vunpack.c.l.b16 %v3916
  %v4908 = vunpack.c.h.b16 %v3916
  %v4909 = vunpack.c.l.b16 %v3917
  %v4910 = vunpack.c.h.b16 %v3917
  %v4911 = vunpack.c.l.b16 %v3918
  %v4912 = vunpack.c.h.b16 %v3918
  %v4913 = vunpack.c.l.b16 %v3919
  %v4914 = vunpack.c.h.b16 %v3919
  %v4915 = vunpack.c.l.b16 %v3920
  %v4916 = vunpack.c.h.b16 %v3920
  %v4917 = vunpack.c.l.b16 %v3921
  %v4918 = vunpack.c.h.b16 %v3921
  %v4919 = vunpack.c.l.b16 %v3922
  %v4920 = vunpack.c.h.b16 %v3922
  %v4921 = vunpack.c.l.b16 %v3923
  %v4922 = vunpack.c.h.b16 %v3923
  %v4923 = vunpack.c.l.b16 %v3924
  %v4924 = vunpack.c.h.b16 %v3924
  %v4925 = vunpack.c.l.b16 %v3925
  %v4926 = vunpack.c.h.b16 %v3925
  %v4927 = vunpack.c.l.b16 %v3926
  %v4928 = vunpack.c.h.b16 %v3926
  %v4929 = vunpack.c.l.b16 %v3927
  %v4930 = vunpack.c.h.b16 %v3927
  %v4931 = vunpack.c.l.b16 %v3928
  %v4932 = vunpack.c.h.b16 %v3928
  %v4933 = vunpack.c.l.b16 %v3929
  %v4934 = vunpack.c.h.b16 %v3929
  %v4935 = vunpack.c.l.b16 %v3930
  %v4936 = vunpack.c.h.b16 %v3930
  %v4937 = vunpack.c.l.b16 %v3931
  %v4938 = vunpack.c.h.b16 %v3931
  %v4939 = vunpack.c.l.b16 %v3932
  %v4940 = vunpack.c.h.b16 %v3932
  %v4941 = vunpack.c.l.b16 %v3933
  %v4942 = vunpack.c.h.b16 %v3933
  %v4943 = vunpack.c.l.b16 %v3934
  %v4944 = vunpack.c.h.b16 %v3934
  %v4945 = vunpack.c.l.b16 %v3935
  %v4946 = vunpack.c.h.b16 %v3935
  %v4947 = vunpack.c.l.b16 %v3936
  %v4948 = vunpack.c.h.b16 %v3936
  %v4949 = vunpack.c.l.b16 %v3937
  %v4950 = vunpack.c.h.b16 %v3937
  %v4951 = vunpack.c.l.b16 %v3938
  %v4952 = vunpack.c.h.b16 %v3938
  %v4953 = vunpack.c.l.b16 %v3939
  %v4954 = vunpack.c.h.b16 %v3939
  %v4955 = vunpack.c.l.b16 %v3940
  %v4956 = vunpack.c.h.b16 %v3940
  %v4957 = vunpack.c.l.b16 %v3941
  %v4958 = vunpack.c.h.b16 %v3941
  %v4959 = vunpack.c.l.b16 %v3942
  %v4960 = vunpack.c.h.b16 %v3942
  %v4961 = vunpack.c.l.b16 %v3943
  %v4962 = vunpack.c.h.b16 %v3943
  %v4963 = vunpack.c.l.b16 %v3944
  %v4964 = vunpack.c.h.b16 %v3944
  %v4965 = vunpack.c.l.b16 %v3945
  %v4966 = vunpack.c.h.b16 %v3945
  %v4967 = vunpack.c.l.b16 %v3946
  %v4968 = vunpack.c.h.b16 %v3946
  %v4969 = vunpack.c.l.b16 %v3947
  %v4970 = vunpack.c.h.b16 %v3947
  %v4971 = vunpack.c.l.b16 %v3948
  %v4972 = vunpack.c.h.b16 %v3948
  %v4973 = vunpack.c.l.b16 %v3949
  %v4974 = vunpack.c.h.b16 %v3949
  %v4975 = vunpack.c.l.b16 %v3950
  %v4976 = vunpack.c.h.b16 %v3950
  %v4977 = vunpack.c.l.b16 %v3951
  %v4978 = vunpack.c.h.b16 %v3951
  %v4979 = vunpack.c.l.b16 %v3952
  %v4980 = vunpack.c.h.b16 %v3952
  %v4981 = vunpack.c.l.b16 %v3953
  %v4982 = vunpack.c.h.b16 %v3953
  %v4983 = vunpack.c.l.b16 %v3954
  %v4984 = vunpack.c.h.b16 %v3954
  %v4985 = vunpack.c.l.b16 %v3955
  %v4986 = vunpack.c.h.b16 %v3955
  %v4987 = vunpack.c.l.b16 %v3956
  %v4988 = vunpack.c.h.b16 %v3956
  %v4989 = vunpack.c.l.b16 %v3957
  %v4990 = vunpack.c.h.b16 %v3957
  %v4991 = vunpack.c.l.b16 %v3958
  %v4992 = vunpack.c.h.b16 %v3958
  %v4993 = vunpack.c.l.b16 %v3959
  %v4994 = vunpack.c.h.b16 %v3959
  %v4995 = vunpack.c.l.b16 %v3960
  %v4996 = vunpack.c.h.b16 %v3960
  %v4997 = vunpack.c.l.b16 %v3961
  %v4998 = vunpack.c.h.b16 %v3961
  %v4999 = vunpack.c.l.b16 %v3962
  %v5000 = vunpack.c.h.b16 %v3962
  %v5001 = vunpack.c.l.b16 %v3963
  %v5002 = vunpack.c.h.b16 %v3963
  %v5003 = vunpack.c.l.b16 %v3964
  %v5004 = vunpack.c.h.b16 %v3964
  %v5005 = vunpack.c.l.b16 %v3965
  %v5006 = vunpack.c.h.b16 %v3965
  %v5007 = vunpack.c.l.b16 %v3966
  %v5008 = vunpack.c.h.b16 %v3966
  %v5009 = vunpack.c.l.b16 %v3967
  %v5010 = vunpack.c.h.b16 %v3967
  %v5011 = vunpack.c.l.b16 %v3968
  %v5012 = vunpack.c.h.b16 %v3968
  %v5013 = vunpack.c.l.b16 %v3969
  %v5014 = vunpack.c.h.b16 %v3969
  %v5015 = vunpack.c.l.b16 %v3970
  %v5016 = vunpack.c.h.b16 %v3970
  %v5017 = vunpack.c.l.b16 %v3971
  %v5018 = vunpack.c.h.b16 %v3971
  %v5019 = vunpack.c.l.b16 %v3972
  %v5020 = vunpack.c.h.b16 %v3972
  %v5021 = vunpack.c.l.b16 %v3973
  %v5022 = vunpack.c.h.b16 %v3973
  %v5023 = vunpack.c.l.b16 %v3974
  %v5024 = vunpack.c.h.b16 %v3974
  %v5025 = vunpack.c.l.b16 %v3975
  %v5026 = vunpack.c.h.b16 %v3975
  %v5027 = vunpack.c.l.b16 %v3976
  %v5028 = vunpack.c.h.b16 %v3976
  %v5029 = vunpack.c.l.b16 %v3977
  %v5030 = vunpack.c.h.b16 %v3977
  %v5031 = vunpack.c.l.b16 %v3978
  %v5032 = vunpack.c.h.b16 %v3978
  %v5033 = vunpack.c.l.b16 %v3979
  %v5034 = vunpack.c.h.b16 %v3979
  %v5035 = vunpack.c.l.b16 %v3980
  %v5036 = vunpack.c.h.b16 %v3980
  %v5037 = vunpack.c.l.b16 %v3981
  %v5038 = vunpack.c.h.b16 %v3981
  %v5039 = vunpack.c.l.b16 %v3982
  %v5040 = vunpack.c.h.b16 %v3982
  %v5041 = vunpack.c.l.b16 %v3983
  %v5042 = vunpack.c.h.b16 %v3983
  %v5043 = vunpack.c.l.b16 %v3984
  %v5044 = vunpack.c.h.b16 %v3984
  %v5045 = vunpack.c.l.b16 %v3985
  %v5046 = vunpack.c.h.b16 %v3985
  %v5047 = vunpack.c.l.b16 %v3986
  %v5048 = vunpack.c.h.b16 %v3986
  %v5049 = vunpack.c.l.b16 %v3987
  %v5050 = vunpack.c.h.b16 %v3987
  %v5051 = vunpack.c.l.b16 %v3988
  %v5052 = vunpack.c.h.b16 %v3988
  %v5053 = vunpack.c.l.b16 %v3989
  %v5054 = vunpack.c.h.b16 %v3989
  %v5055 = vunpack.c.l.b16 %v3990
  %v5056 = vunpack.c.h.b16 %v3990
  %v5057 = vunpack.c.l.b16 %v3991
  %v5058 = vunpack.c.h.b16 %v3991
  %v5059 = vunpack.c.l.b16 %v3992
  %v5060 = vunpack.c.h.b16 %v3992
  %v5061 = vunpack.c.l.b16 %v3993
  %v5062 = vunpack.c.h.b16 %v3993
  %v5063 = vunpack.c.l.b16 %v3994
  %v5064 = vunpack.c.h.b16 %v3994
  %v5065 = vunpack.c.l.b16 %v3995
  %v5066 = vunpack.c.h.b16 %v3995
  %v5067 = vunpack.c.l.b16 %v3996
  %v5068 = vunpack.c.h.b16 %v3996
  %v5069 = vunpack.c.l.b16 %v3997
  %v5070 = vunpack.c.h.b16 %v3997
  %v5071 = vunpack.c.l.b16 %v3998
  %v5072 = vunpack.c.h.b16 %v3998
  %v5073 = vunpack.c.l.b16 %v3999
  %v5074 = vunpack.c.h.b16 %v3999
  %v5075 = vunpack.c.l.b16 %v4000
  %v5076 = vunpack.c.h.b16 %v4000
  %v5077 = vunpack.c.l.b16 %v4001
  %v5078 = vunpack.c.h.b16 %v4001
  %v5079 = vunpack.c.l.b16 %v4002
  %v5080 = vunpack.c.h.b16 %v4002
  %v5081 = vunpack.c.l.b16 %v4003
  %v5082 = vunpack.c.h.b16 %v4003
  %v5083 = vunpack.c.l.b16 %v4004
  %v5084 = vunpack.c.h.b16 %v4004
  %v5085 = vunpack.c.l.b16 %v4005
  %v5086 = vunpack.c.h.b16 %v4005
  %v5087 = vunpack.c.l.b16 %v4006
  %v5088 = vunpack.c.h.b16 %v4006
  %v5089 = vunpack.c.l.b16 %v4007
  %v5090 = vunpack.c.h.b16 %v4007
  %v5091 = vunpack.c.l.b16 %v4008
  %v5092 = vunpack.c.h.b16 %v4008
  %v5093 = vunpack.c.l.b16 %v4009
  %v5094 = vunpack.c.h.b16 %v4009
  %v5095 = vunpack.c.l.b16 %v4010
  %v5096 = vunpack.c.h.b16 %v4010
  %v5097 = vunpack.c.l.b16 %v4011
  %v5098 = vunpack.c.h.b16 %v4011
  %v5099 = vunpack.c.l.b16 %v4012
  %v5100 = vunpack.c.h.b16 %v4012
  %v5101 = vunpack.c.l.b16 %v4013
  %v5102 = vunpack.c.h.b16 %v4013
  %v5103 = vunpack.c.l.b16 %v4014
  %v5104 = vunpack.c.h.b16 %v4014
  %v5105 = vunpack.c.l.b16 %v4015
  %v5106 = vunpack.c.h.b16 %v4015
  %v5107 = vunpack.c.l.b16 %v4016
  %v5108 = vunpack.c.h.b16 %v4016
  %v5109 = vunpack.c.l.b16 %v4017
  %v5110 = vunpack.c.h.b16 %v4017
  %v5111 = vunpack.c.l.b16 %v4018
  %v5112 = vunpack.c.h.b16 %v4018
  %v5113 = vunpack.c.l.b16 %v4019
  %v5114 = vunpack.c.h.b16 %v4019
  %v5115 = vunpack.c.l.b16 %v4020
  %v5116 = vunpack.c.h.b16 %v4020
  %v5117 = vunpack.c.l.b16 %v4021
  %v5118 = vunpack.c.h.b16 %v4021
  %v5119 = vunpack.c.l.b16 %v4022
  %v5120 = vunpack.c.h.b16 %v4022
  %v5121 = vunpack.c.l.b16 %v4023
  %v5122 = vunpack.c.h.b16 %v4023
  %v5123 = vunpack.c.l.b16 %v4024
  %v5124 = vunpack.c.h.b16 %v4024
  %v5125 = vunpack.c.l.b16 %v4025
  %v5126 = vunpack.c.h.b16 %v4025
  %v5127 = vunpack.c.l.b16 %v4026
  %v5128 = vunpack.c.h.b16 %v4026
  %v5129 = vunpack.c.l.b16 %v4027
  %v5130 = vunpack.c.h.b16 %v4027
  %v5131 = vunpack.c.l.b16 %v4028
  %v5132 = vunpack.c.h.b16 %v4028
  %v5133 = vunpack.c.l.b16 %v4029
  %v5134 = vunpack.c.h.b16 %v4029
  %v5135 = vunpack.c.l.b16 %v4030
  %v5136 = vunpack.c.h.b16 %v4030
  %v5137 = vunpack.c.l.b16 %v4031
  %v5138 = vunpack.c.h.b16 %v4031
  %v5139 = vunpack.c.l.b16 %v4032
  %v5140 = vunpack.c.h.b16 %v4032
  %v5141 = vunpack.c.l.b16 %v4033
  %v5142 = vunpack.c.h.b16 %v4033
  %v5143 = vunpack.c.l.b16 %v4034
  %v5144 = vunpack.c.h.b16 %v4034
  %v5145 = vunpack.c.l.b16 %v4035
  %v5146 = vunpack.c.h.b16 %v4035
  %v5147 = vunpack.c.l.b16 %v4036
  %v5148 = vunpack.c.h.b16 %v4036
  %v5149 = vunpack.c.l.b16 %v4037
  %v5150 = vunpack.c.h.b16 %v4037
  %v5151 = vunpack.c.l.b16 %v4038
  %v5152 = vunpack.c.h.b16 %v4038
  %v5153 = vunpack.c.l.b16 %v4039
  %v5154 = vunpack.c.h.b16 %v4039
  %v5155 = vunpack.c.l.b16 %v4040
  %v5156 = vunpack.c.h.b16 %v4040
  %v5157 = vunpack.c.l.b16 %v4041
  %v5158 = vunpack.c.h.b16 %v4041
  %v5159 = vunpack.c.l.b16 %v4042
  %v5160 = vunpack.c.h.b16 %v4042
  %v5161 = vunpack.c.l.b16 %v4043
  %v5162 = vunpack.c.h.b16 %v4043
  %v5163 = vunpack.c.l.b16 %v4044
  %v5164 = vunpack.c.h.b16 %v4044
  %v5165 = vunpack.c.l.b16 %v4045
  %v5166 = vunpack.c.h.b16 %v4045
  %v5167 = vunpack.c.l.b16 %v4046
  %v5168 = vunpack.c.h.b16 %v4046
  %v5169 = vunpack.c.l.b16 %v4047
  %v5170 = vunpack.c.h.b16 %v4047
  %v5171 = vunpack.c.l.b16 %v4048
  %v5172 = vunpack.c.h.b16 %v4048
  %v5173 = vunpack.c.l.b16 %v4049
  %v5174 = vunpack.c.h.b16 %v4049
  %v5175 = vunpack.c.l.b16 %v4050
  %v5176 = vunpack.c.h.b16 %v4050
  %v5177 = vunpack.c.l.b16 %v4051
  %v5178 = vunpack.c.h.b16 %v4051
  %v5179 = vunpack.c.l.b16 %v4052
  %v5180 = vunpack.c.h.b16 %v4052
  %v5181 = vunpack.c.l.b16 %v4053
  %v5182 = vunpack.c.h.b16 %v4053
  %v5183 = vunpack.c.l.b16 %v4054
  %v5184 = vunpack.c.h.b16 %v4054
  %v5185 = vunpack.c.l.b16 %v4055
  %v5186 = vunpack.c.h.b16 %v4055
  %v5187 = vunpack.c.l.b16 %v4056
  %v5188 = vunpack.c.h.b16 %v4056
  %v5189 = vunpack.c.l.b16 %v4057
  %v5190 = vunpack.c.h.b16 %v4057
  %v5191 = vunpack.c.l.b16 %v4058
  %v5192 = vunpack.c.h.b16 %v4058
  %v5193 = vunpack.c.l.b16 %v4059
  %v5194 = vunpack.c.h.b16 %v4059
  %v5195 = vunpack.c.l.b16 %v4060
  %v5196 = vunpack.c.h.b16 %v4060
  %v5197 = vunpack.c.l.b16 %v4061
  %v5198 = vunpack.c.h.b16 %v4061
  %v5199 = vunpack.c.l.b16 %v4062
  %v5200 = vunpack.c.h.b16 %v4062
  %v5201 = vunpack.c.l.b16 %v4063
  %v5202 = vunpack.c.h.b16 %v4063
  %v5203 = vunpack.c.l.b16 %v4064
  %v5204 = vunpack.c.h.b16 %v4064
  %v5205 = vunpack.c.l.b16 %v4065
  %v5206 = vunpack.c.h.b16 %v4065
  %v5207 = vunpack.c.l.b16 %v4066
  %v5208 = vunpack.c.h.b16 %v4066
  %v5209 = vunpack.c.l.b16 %v4067
  %v5210 = vunpack.c.h.b16 %v4067
  %v5211 = vunpack.c.l.b16 %v4068
  %v5212 = vunpack.c.h.b16 %v4068
  %v5213 = vunpack.c.l.b16 %v4069
  %v5214 = vunpack.c.h.b16 %v4069
  %v5215 = vunpack.c.l.b16 %v4070
  %v5216 = vunpack.c.h.b16 %v4070
  %v5217 = vunpack.c.l.b16 %v4071
  %v5218 = vunpack.c.h.b16 %v4071
  %v5219 = vunpack.c.l.b16 %v4072
  %v5220 = vunpack.c.h.b16 %v4072
  %v5221 = vunpack.c.l.b16 %v4073
  %v5222 = vunpack.c.h.b16 %v4073
  %v5223 = vunpack.c.l.b16 %v4074
  %v5224 = vunpack.c.h.b16 %v4074
  %v5225 = vunpack.c.l.b16 %v4075
  %v5226 = vunpack.c.h.b16 %v4075
  %v5227 = vunpack.c.l.b16 %v4076
  %v5228 = vunpack.c.h.b16 %v4076
  %v5229 = vpack.c.b16 %v4465, %v4461
  %v5230 = vpack.c.b16 %v4466, %v4462
  %v5231 = vpack.c.b16 %v4467, %v4463
  %v5232 = vpack.c.b16 %v4468, %v4464
  %v5233 = vpack.c.b16 %v4473, %v4469
  %v5234 = vpack.c.b16 %v4474, %v4470
  %v5235 = vpack.c.b16 %v4475, %v4471
  %v5236 = vpack.c.b16 %v4476, %v4472
  %v5237 = vpack.c.b16 %v4481, %v4477
  %v5238 = vpack.c.b16 %v4482, %v4478
  %v5239 = vpack.c.b16 %v4483, %v4479
  %v5240 = vpack.c.b16 %v4484, %v4480
  %v5241 = vpack.c.b16 %v4489, %v4485
  %v5242 = vpack.c.b16 %v4490, %v4486
  %v5243 = vpack.c.b16 %v4491, %v4487
  %v5244 = vpack.c.b16 %v4492, %v4488
  %v5245 = vpack.c.b16 %v4497, %v4493
  %v5246 = vpack.c.b16 %v4498, %v4494
  %v5247 = vpack.c.b16 %v4499, %v4495
  %v5248 = vpack.c.b16 %v4500, %v4496
  %v5249 = vpack.c.b16 %v4505, %v4501
  %v5250 = vpack.c.b16 %v4506, %v4502
  %v5251 = vpack.c.b16 %v4507, %v4503
  %v5252 = vpack.c.b16 %v4508, %v4504
  %v5253 = vpack.c.b16 %v4513, %v4509
  %v5254 = vpack.c.b16 %v4514, %v4510
  %v5255 = vpack.c.b16 %v4515, %v4511
  %v5256 = vpack.c.b16 %v4516, %v4512
  %v5257 = vpack.c.b16 %v4521, %v4517
  %v5258 = vpack.c.b16 %v4522, %v4518
  %v5259 = vpack.c.b16 %v4523, %v4519
  %v5260 = vpack.c.b16 %v4524, %v4520
  %v5261 = vpack.c.b16 %v4529, %v4525
  %v5262 = vpack.c.b16 %v4530, %v4526
  %v5263 = vpack.c.b16 %v4531, %v4527
  %v5264 = vpack.c.b16 %v4532, %v4528
  %v5265 = vpack.c.b16 %v4537, %v4533
  %v5266 = vpack.c.b16 %v4538, %v4534
  %v5267 = vpack.c.b16 %v4539, %v4535
  %v5268 = vpack.c.b16 %v4540, %v4536
  %v5269 = vpack.c.b16 %v4545, %v4541
  %v5270 = vpack.c.b16 %v4546, %v4542
  %v5271 = vpack.c.b16 %v4547, %v4543
  %v5272 = vpack.c.b16 %v4548, %v4544
  %v5273 = vpack.c.b16 %v4553, %v4549
  %v5274 = vpack.c.b16 %v4554, %v4550
  %v5275 = vpack.c.b16 %v4555, %v4551
  %v5276 = vpack.c.b16 %v4556, %v4552
  %v5277 = vpack.c.b16 %v4561, %v4557
  %v5278 = vpack.c.b16 %v4562, %v4558
  %v5279 = vpack.c.b16 %v4563, %v4559
  %v5280 = vpack.c.b16 %v4564, %v4560
  %v5281 = vpack.c.b16 %v4569, %v4565
  %v5282 = vpack.c.b16 %v4570, %v4566
  %v5283 = vpack.c.b16 %v4571, %v4567
  %v5284 = vpack.c.b16 %v4572, %v4568
  %v5285 = vpack.c.b16 %v4577, %v4573
  %v5286 = vpack.c.b16 %v4578, %v4574
  %v5287 = vpack.c.b16 %v4579, %v4575
  %v5288 = vpack.c.b16 %v4580, %v4576
  %v5289 = vpack.c.b16 %v4585, %v4581
  %v5290 = vpack.c.b16 %v4586, %v4582
  %v5291 = vpack.c.b16 %v4587, %v4583
  %v5292 = vpack.c.b16 %v4588, %v4584
  %v5293 = vpack.c.b16 %v4593, %v4589
  %v5294 = vpack.c.b16 %v4594, %v4590
  %v5295 = vpack.c.b16 %v4595, %v4591
  %v5296 = vpack.c.b16 %v4596, %v4592
  %v5297 = vpack.c.b16 %v4601, %v4597
  %v5298 = vpack.c.b16 %v4602, %v4598
  %v5299 = vpack.c.b16 %v4603, %v4599
  %v5300 = vpack.c.b16 %v4604, %v4600
  %v5301 = vpack.c.b16 %v4609, %v4605
  %v5302 = vpack.c.b16 %v4610, %v4606
  %v5303 = vpack.c.b16 %v4611, %v4607
  %v5304 = vpack.c.b16 %v4612, %v4608
  %v5305 = vpack.c.b16 %v4617, %v4613
  %v5306 = vpack.c.b16 %v4618, %v4614
  %v5307 = vpack.c.b16 %v4619, %v4615
  %v5308 = vpack.c.b16 %v4620, %v4616
  %v5309 = vpack.c.b16 %v4625, %v4621
  %v5310 = vpack.c.b16 %v4626, %v4622
  %v5311 = vpack.c.b16 %v4627, %v4623
  %v5312 = vpack.c.b16 %v4628, %v4624
  %v5313 = vpack.c.b16 %v4633, %v4629
  %v5314 = vpack.c.b16 %v4634, %v4630
  %v5315 = vpack.c.b16 %v4635, %v4631
  %v5316 = vpack.c.b16 %v4636, %v4632
  %v5317 = vpack.c.b16 %v4641, %v4637
  %v5318 = vpack.c.b16 %v4642, %v4638
  %v5319 = vpack.c.b16 %v4643, %v4639
  %v5320 = vpack.c.b16 %v4644, %v4640
  %v5321 = vpack.c.b16 %v4649, %v4645
  %v5322 = vpack.c.b16 %v4650, %v4646
  %v5323 = vpack.c.b16 %v4651, %v4647
  %v5324 = vpack.c.b16 %v4652, %v4648
  %v5325 = vpack.c.b16 %v4657, %v4653
  %v5326 = vpack.c.b16 %v4658, %v4654
  %v5327 = vpack.c.b16 %v4659, %v4655
  %v5328 = vpack.c.b16 %v4660, %v4656
  %v5329 = vpack.c.b16 %v4665, %v4661
  %v5330 = vpack.c.b16 %v4666, %v4662
  %v5331 = vpack.c.b16 %v4667, %v4663
  %v5332 = vpack.c.b16 %v4668, %v4664
  %v5333 = vpack.c.b16 %v4673, %v4669
  %v5334 = vpack.c.b16 %v4674, %v4670
  %v5335 = vpack.c.b16 %v4675, %v4671
  %v5336 = vpack.c.b16 %v4676, %v4672
  %v5337 = vpack.c.b16 %v4681, %v4677
  %v5338 = vpack.c.b16 %v4682, %v4678
  %v5339 = vpack.c.b16 %v4683, %v4679
  %v5340 = vpack.c.b16 %v4684, %v4680
  %v5341 = vpack.c.b16 %v4689, %v4685
  %v5342 = vpack.c.b16 %v4690, %v4686
  %v5343 = vpack.c.b16 %v4691, %v4687
  %v5344 = vpack.c.b16 %v4692, %v4688
  %v5345 = vpack.c.b16 %v4697, %v4693
  %v5346 = vpack.c.b16 %v4698, %v4694
  %v5347 = vpack.c.b16 %v4699, %v4695
  %v5348 = vpack.c.b16 %v4700, %v4696
  %v5349 = vpack.c.b16 %v4705, %v4701
  %v5350 = vpack.c.b16 %v4706, %v4702
  %v5351 = vpack.c.b16 %v4707, %v4703
  %v5352 = vpack.c.b16 %v4708, %v4704
  %v5353 = vpack.c.b16 %v4713, %v4709
  %v5354 = vpack.c.b16 %v4714, %v4710
  %v5355 = vpack.c.b16 %v4715, %v4711
  %v5356 = vpack.c.b16 %v4716, %v4712
  %v5357 = vpack.c.b16 %v4721, %v4717
  %v5358 = vpack.c.b16 %v4722, %v4718
  %v5359 = vpack.c.b16 %v4723, %v4719
  %v5360 = vpack.c.b16 %v4724, %v4720
  %v5361 = vpack.c.b16 %v4729, %v4725
  %v5362 = vpack.c.b16 %v4730, %v4726
  %v5363 = vpack.c.b16 %v4731, %v4727
  %v5364 = vpack.c.b16 %v4732, %v4728
  %v5365 = vpack.c.b16 %v4737, %v4733
  %v5366 = vpack.c.b16 %v4738, %v4734
  %v5367 = vpack.c.b16 %v4739, %v4735
  %v5368 = vpack.c.b16 %v4740, %v4736
  %v5369 = vpack.c.b16 %v4745, %v4741
  %v5370 = vpack.c.b16 %v4746, %v4742
  %v5371 = vpack.c.b16 %v4747, %v4743
  %v5372 = vpack.c.b16 %v4748, %v4744
  %v5373 = vpack.c.b16 %v4753, %v4749
  %v5374 = vpack.c.b16 %v4754, %v4750
  %v5375 = vpack.c.b16 %v4755, %v4751
  %v5376 = vpack.c.b16 %v4756, %v4752
  %v5377 = vpack.c.b16 %v4761, %v4757
  %v5378 = vpack.c.b16 %v4762, %v4758
  %v5379 = vpack.c.b16 %v4763, %v4759
  %v5380 = vpack.c.b16 %v4764, %v4760
  %v5381 = vpack.c.b16 %v4769, %v4765
  %v5382 = vpack.c.b16 %v4770, %v4766
  %v5383 = vpack.c.b16 %v4771, %v4767
  %v5384 = vpack.c.b16 %v4772, %v4768
  %v5385 = vpack.c.b16 %v4777, %v4773
  %v5386 = vpack.c.b16 %v4778, %v4774
  %v5387 = vpack.c.b16 %v4779, %v4775
  %v5388 = vpack.c.b16 %v4780, %v4776
  %v5389 = vpack.c.b16 %v4785, %v4781
  %v5390 = vpack.c.b16 %v4786, %v4782
  %v5391 = vpack.c.b16 %v4787, %v4783
  %v5392 = vpack.c.b16 %v4788, %v4784
  %v5393 = vpack.c.b16 %v4793, %v4789
  %v5394 = vpack.c.b16 %v4794, %v4790
  %v5395 = vpack.c.b16 %v4795, %v4791
  %v5396 = vpack.c.b16 %v4796, %v4792
  %v5397 = vpack.c.b16 %v4801, %v4797
  %v5398 = vpack.c.b16 %v4802, %v4798
  %v5399 = vpack.c.b16 %v4803, %v4799
  %v5400 = vpack.c.b16 %v4804, %v4800
  %v5401 = vpack.c.b16 %v4809, %v4805
  %v5402 = vpack.c.b16 %v4810, %v4806
  %v5403 = vpack.c.b16 %v4811, %v4807
  %v5404 = vpack.c.b16 %v4812, %v4808
  %v5405 = vpack.c.b16 %v4817, %v4813
  %v5406 = vpack.c.b16 %v4818, %v4814
  %v5407 = vpack.c.b16 %v4819, %v4815
  %v5408 = vpack.c.b16 %v4820, %v4816
  %v5409 = vpack.c.b16 %v4825, %v4821
  %v5410 = vpack.c.b16 %v4826, %v4822
  %v5411 = vpack.c.b16 %v4827, %v4823
  %v5412 = vpack.c.b16 %v4828, %v4824
  %v5413 = vpack.c.b16 %v4833, %v4829
  %v5414 = vpack.c.b16 %v4834, %v4830
  %v5415 = vpack.c.b16 %v4835, %v4831
  %v5416 = vpack.c.b16 %v4836, %v4832
  %v5417 = vpack.c.b16 %v4841, %v4837
  %v5418 = vpack.c.b16 %v4842, %v4838
  %v5419 = vpack.c.b16 %v4843, %v4839
  %v5420 = vpack.c.b16 %v4844, %v4840
  %v5421 = vpack.c.b16 %v4849, %v4845
  %v5422 = vpack.c.b16 %v4850, %v4846
  %v5423 = vpack.c.b16 %v4851, %v4847
  %v5424 = vpack.c.b16 %v4852, %v4848
  %v5425 = vpack.c.b16 %v4857, %v4853
  %v5426 = vpack.c.b16 %v4858, %v4854
  %v5427 = vpack.c.b16 %v4859, %v4855
  %v5428 = vpack.c.b16 %v4860, %v4856
  %v5429 = vpack.c.b16 %v4865, %v4861
  %v5430 = vpack.c.b16 %v4866, %v4862
  %v5431 = vpack.c.b16 %v4867, %v4863
  %v5432 = vpack.c.b16 %v4868, %v4864
  %v5433 = vpack.c.b16 %v4873, %v4869
  %v5434 = vpack.c.b16 %v4874, %v4870
  %v5435 = vpack.c.b16 %v4875, %v4871
  %v5436 = vpack.c.b16 %v4876, %v4872
  %v5437 = vpack.c.b16 %v4881, %v4877
  %v5438 = vpack.c.b16 %v4882, %v4878
  %v5439 = vpack.c.b16 %v4883, %v4879
  %v5440 = vpack.c.b16 %v4884, %v4880
  %v5441 = vpack.c.b16 %v4889, %v4885
  %v5442 = vpack.c.b16 %v4890, %v4886
  %v5443 = vpack.c.b16 %v4891, %v4887
  %v5444 = vpack.c.b16 %v4892, %v4888
  %v5445 = vpack.c.b16 %v4897, %v4893
  %v5446 = vpack.c.b16 %v4898, %v4894
  %v5447 = vpack.c.b16 %v4899, %v4895
  %v5448 = vpack.c.b16 %v4900, %v4896
  %v5449 = vpack.c.b16 %v4905, %v4901
  %v5450 = vpack.c.b16 %v4906, %v4902
  %v5451 = vpack.c.b16 %v4907, %v4903
  %v5452 = vpack.c.b16 %v4908, %v4904
  %v5453 = vpack.c.b16 %v4913, %v4909
  %v5454 = vpack.c.b16 %v4914, %v4910
  %v5455 = vpack.c.b16 %v4915, %v4911
  %v5456 = vpack.c.b16 %v4916, %v4912
  %v5457 = vpack.c.b16 %v4921, %v4917
  %v5458 = vpack.c.b16 %v4922, %v4918
  %v5459 = vpack.c.b16 %v4923, %v4919
  %v5460 = vpack.c.b16 %v4924, %v4920
  %v5461 = vpack.c.b16 %v4929, %v4925
  %v5462 = vpack.c.b16 %v4930, %v4926
  %v5463 = vpack.c.b16 %v4931, %v4927
  %v5464 = vpack.c.b16 %v4932, %v4928
  %v5465 = vpack.c.b16 %v4937, %v4933
  %v5466 = vpack.c.b16 %v4938, %v4934
  %v5467 = vpack.c.b16 %v4939, %v4935
  %v5468 = vpack.c.b16 %v4940, %v4936
  %v5469 = vpack.c.b16 %v4945, %v4941
  %v5470 = vpack.c.b16 %v4946, %v4942
  %v5471 = vpack.c.b16 %v4947, %v4943
  %v5472 = vpack.c.b16 %v4948, %v4944
  %v5473 = vpack.c.b16 %v4953, %v4949
  %v5474 = vpack.c.b16 %v4954, %v4950
  %v5475 = vpack.c.b16 %v4955, %v4951
  %v5476 = vpack.c.b16 %v4956, %v4952
  %v5477 = vpack.c.b16 %v4961, %v4957
  %v5478 = vpack.c.b16 %v4962, %v4958
  %v5479 = vpack.c.b16 %v4963, %v4959
  %v5480 = vpack.c.b16 %v4964, %v4960
  %v5481 = vpack.c.b16 %v4969, %v4965
  %v5482 = vpack.c.b16 %v4970, %v4966
  %v5483 = vpack.c.b16 %v4971, %v4967
  %v5484 = vpack.c.b16 %v4972, %v4968
  %v5485 = vpack.c.b16 %v4977, %v4973
  %v5486 = vpack.c.b16 %v4978, %v4974
  %v5487 = vpack.c.b16 %v4979, %v4975
  %v5488 = vpack.c.b16 %v4980, %v4976
  %v5489 = vpack.c.b16 %v4985, %v4981
  %v5490 = vpack.c.b16 %v4986, %v4982
  %v5491 = vpack.c.b16 %v4987, %v4983
  %v5492 = vpack.c.b16 %v4988, %v4984
  %v5493 = vpack.c.b16 %v4993, %v4989
  %v5494 = vpack.c.b16 %v4994, %v4990
  %v5495 = vpack.c.b16 %v4995, %v4991
  %v5496 = vpack.c.b16 %v4996, %v4992
  %v5497 = vpack.c.b16 %v5001, %v4997
  %v5498 = vpack.c.b16 %v5002, %v4998
  %v5499 = vpack.c.b16 %v5003, %v4999
  %v5500 = vpack.c.b16 %v5004, %v5000
  %v5501 = vpack.c.b16 %v5009, %v5005
  %v5502 = vpack.c.b16 %v5010, %v5006
  %v5503 = vpack.c.b16 %v5011, %v5007
  %v5504 = vpack.c.b16 %v5012, %v5008
  %v5505 = vpack.c.b16 %v5017, %v5013
  %v5506 = vpack.c.b16 %v5018, %v5014
  %v5507 = vpack.c.b16 %v5019, %v5015
  %v5508 = vpack.c.b16 %v5020, %v5016
  %v5509 = vpack.c.b16 %v5025, %v5021
  %v5510 = vpack.c.b16 %v5026, %v5022
  %v5511 = vpack.c.b16 %v5027, %v5023
  %v5512 = vpack.c.b16 %v5028, %v5024
  %v5513 = vpack.c.b16 %v5033, %v5029
  %v5514 = vpack.c.b16 %v5034, %v5030
  %v5515 = vpack.c.b16 %v5035, %v5031
  %v5516 = vpack.c.b16 %v5036, %v5032
  %v5517 = vpack.c.b16 %v5041, %v5037
  %v5518 = vpack.c.b16 %v5042, %v5038
  %v5519 = vpack.c.b16 %v5043, %v5039
  %v5520 = vpack.c.b16 %v5044, %v5040
  %v5521 = vpack.c.b16 %v5049, %v5045
  %v5522 = vpack.c.b16 %v5050, %v5046
  %v5523 = vpack.c.b16 %v5051, %v5047
  %v5524 = vpack.c.b16 %v5052, %v5048
  %v5525 = vpack.c.b16 %v5057, %v5053
  %v5526 = vpack.c.b16 %v5058, %v5054
  %v5527 = vpack.c.b16 %v5059, %v5055
  %v5528 = vpack.c.b16 %v5060, %v5056
  %v5529 = vpack.c.b16 %v5065, %v5061
  %v5530 = vpack.c.b16 %v5066, %v5062
  %v5531 = vpack.c.b16 %v5067, %v5063
  %v5532 = vpack.c.b16 %v5068, %v5064
  %v5533 = vpack.c.b16 %v5073, %v5069
  %v5534 = vpack.c.b16 %v5074, %v5070
  %v5535 = vpack.c.b16 %v5075, %v5071
  %v5536 = vpack.c.b16 %v5076, %v5072
  %v5537 = vpack.c.b16 %v5081, %v5077
  %v5538 = vpack.c.b16 %v5082, %v5078
  %v5539 = vpack.c.b16 %v5083, %v5079
  %v5540 = vpack.c.b16 %v5084, %v5080
  %v5541 = vpack.c.b16 %v5089, %v5085
  %v5542 = vpack.c.b16 %v5090, %v5086
  %v5543 = vpack.c.b16 %v5091, %v5087
  %v5544 = vpack.c.b16 %v5092, %v5088
  %v5545 = vpack.c.b16 %v5097, %v5093
  %v5546 = vpack.c.b16 %v5098, %v5094
  %v5547 = vpack.c.b16 %v5099, %v5095
  %v5548 = vpack.c.b16 %v5100, %v5096
  %v5549 = vpack.c.b16 %v5105, %v5101
  %v5550 = vpack.c.b16 %v5106, %v5102
  %v5551 = vpack.c.b16 %v5107, %v5103
  %v5552 = vpack.c.b16 %v5108, %v5104
  %v5553 = vpack.c.b16 %v5113, %v5109
  %v5554 = vpack.c.b16 %v5114, %v5110
  %v5555 = vpack.c.b16 %v5115, %v5111
  %v5556 = vpack.c.b16 %v5116, %v5112
  %v5557 = vpack.c.b16 %v5121, %v5117
  %v5558 = vpack.c.b16 %v5122, %v5118
  %v5559 = vpack.c.b16 %v5123, %v5119
  %v5560 = vpack.c.b16 %v5124, %v5120
  %v5561 = vpack.c.b16 %v5129, %v5125
  %v5562 = vpack.c.b16 %v5130, %v5126
  %v5563 = vpack.c.b16 %v5131, %v5127
  %v5564 = vpack.c.b16 %v5132, %v5128
  %v5565 = vpack.c.b16 %v5137, %v5133
  %v5566 = vpack.c.b16 %v5138, %v5134
  %v5567 = vpack.c.b16 %v5139, %v5135
  %v5568 = vpack.c.b16 %v5140, %v5136
  %v5569 = vpack.c.b16 %v5145, %v5141
  %v5570 = vpack.c.b16 %v5146, %v5142
  %v5571 = vpack.c.b16 %v5147, %v5143
  %v5572 = vpack.c.b16 %v5148, %v5144
  %v5573 = vpack.c.b16 %v5153, %v5149
  %v5574 = vpack.c.b16 %v5154, %v5150
  %v5575 = vpack.c.b16 %v5155, %v5151
  %v5576 = vpack.c.b16 %v5156, %v5152
  %v5577 = vpack.c.b16 %v5161, %v5157
  %v5578 = vpack.c.b16 %v5162, %v5158
  %v5579 = vpack.c.b16 %v5163, %v5159
  %v5580 = vpack.c.b16 %v5164, %v5160
  %v5581 = vpack.c.b16 %v5169, %v5165
  %v5582 = vpack.c.b16 %v5170, %v5166
  %v5583 = vpack.c.b16 %v5171, %v5167
  %v5584 = vpack.c.b16 %v5172, %v5168
  %v5585 = vpack.c.b16 %v5177, %v5173
  %v5586 = vpack.c.b16 %v5178, %v5174
  %v5587 = vpack.c.b16 %v5179, %v5175
  %v5588 = vpack.c.b16 %v5180, %v5176
  %v5589 = vpack.c.b16 %v5185, %v5181
  %v5590 = vpack.c.b16 %v5186, %v5182
  %v5591 = vpack.c.b16 %v5187, %v5183
  %v5592 = vpack.c.b16 %v5188, %v5184
  %v5593 = vpack.c.b16 %v5193, %v5189
  %v5594 = vpack.c.b16 %v5194, %v5190
  %v5595 = vpack.c.b16 %v5195, %v5191
  %v5596 = vpack.c.b16 %v5196, %v5192
  %v5597 = vpack.c.b16 %v5201, %v5197
  %v5598 = vpack.c.b16 %v5202, %v5198
  %v5599 = vpack.c.b16 %v5203, %v5199
  %v5600 = vpack.c.b16 %v5204, %v5200
  %v5601 = vpack.c.b16 %v5209, %v5205
  %v5602 = vpack.c.b16 %v5210, %v5206
  %v5603 = vpack.c.b16 %v5211, %v5207
  %v5604 = vpack.c.b16 %v5212, %v5208
  %v5605 = vpack.c.b16 %v5217, %v5213
  %v5606 = vpack.c.b16 %v5218, %v5214
  %v5607 = vpack.c.b16 %v5219, %v5215
  %v5608 = vpack.c.b16 %v5220, %v5216
  %v5609 = vpack.c.b16 %v5225, %v5221
  %v5610 = vpack.c.b16 %v5226, %v5222
  %v5611 = vpack.c.b16 %v5227, %v5223
  %v5612 = vpack.c.b16 %v5228, %v5224
  %5997 = vmatprep.subr.bf16.mxu0 %v5258
  %5998 = vmatpush1.bf16.msra.mxu0 %v5257
  %5999 = vmatprep.subr.bf16.mxu0 %v5254
  %6000 = vmatpush1.bf16.msra.mxu0 %v5253
  %6001 = vmatprep.subr.bf16.mxu0 %v5250
  %6002 = vmatpush1.bf16.msra.mxu0 %v5249
  %6003 = vmatprep.subr.bf16.mxu0 %v5246
  %6004 = vmatpush1.bf16.msra.mxu0 %v5245
  %6005 = vmatprep.subr.bf16.mxu0 %v5242
  %6006 = vmatpush1.bf16.msra.mxu0 %v5241
  %6007 = vmatprep.subr.bf16.mxu0 %v5238
  %6008 = vmatpush1.bf16.msra.mxu0 %v5237
  %6009 = vmatprep.subr.bf16.mxu0 %v5234
  %6010 = vmatpush1.bf16.msra.mxu0 %v5233
  %6011 = vmatprep.subr.bf16.mxu0 %v5230
  %6012 = vmatpush1.bf16.msra.mxu0 %v5229
  %6013 = vmatprep.subr.bf16.mxu0 %v5290
  %6014 = vmatpush2.bf16.msra.mxu0 %v5289
  %6015 = vmatprep.subr.bf16.mxu0 %v5286
  %6016 = vmatpush2.bf16.msra.mxu0 %v5285
  %6017 = vmatprep.subr.bf16.mxu0 %v5282
  %6018 = vmatpush2.bf16.msra.mxu0 %v5281
  %6019 = vmatprep.subr.bf16.mxu0 %v5278
  %6020 = vmatpush2.bf16.msra.mxu0 %v5277
  %6021 = vmatprep.subr.bf16.mxu0 %v5274
  %6022 = vmatpush2.bf16.msra.mxu0 %v5273
  %6023 = vmatprep.subr.bf16.mxu0 %v5270
  %6024 = vmatpush2.bf16.msra.mxu0 %v5269
  %6025 = vmatprep.subr.bf16.mxu0 %v5266
  %6026 = vmatpush2.bf16.msra.mxu0 %v5265
  %6027 = vmatprep.subr.bf16.mxu0 %v5262
  %6028 = vmatpush2.bf16.msra.mxu0 %v5261
  %6029 = vmatprep.mubr.bf16.mxu0 %v3670
  %6030 = vmatmul.mubr.bf16.gmra.mxu0 %v3669
  %v6031 = vpop.f32.mrf.mxu0
  %v6032 = vadd.f32 0.0, %v6031
  %v6033 = vpop.f32.mrf.mxu0
  %v6034 = vadd.f32 0.0, %v6033
  %v6035 = vpop.f32.mrf.mxu0
  %v6036 = vadd.f32 0.0, %v6035
  %v6037 = vpop.f32.mrf.mxu0
  %v6038 = vadd.f32 0.0, %v6037
  %6039 = vmatprep.mubr.bf16.mxu0 %v3674
  %6040 = vmatmul.mubr.bf16.gmra.mxu0 %v3673
  %v6041 = vpop.f32.mrf.mxu0
  %v6042 = vadd.f32 0.0, %v6041
  %v6043 = vpop.f32.mrf.mxu0
  %v6044 = vadd.f32 0.0, %v6043
  %v6045 = vpop.f32.mrf.mxu0
  %v6046 = vadd.f32 0.0, %v6045
  %v6047 = vpop.f32.mrf.mxu0
  %v6048 = vadd.f32 0.0, %v6047
  %6049 = vdwg.mxu0
  %6050 = vmatprep.subr.bf16.mxu0 %v5322
  %6051 = vmatpush1.bf16.msra.mxu0 %v5321
  %6052 = vmatprep.subr.bf16.mxu0 %v5318
  %6053 = vmatpush1.bf16.msra.mxu0 %v5317
  %6054 = vmatprep.subr.bf16.mxu0 %v5314
  %6055 = vmatpush1.bf16.msra.mxu0 %v5313
  %6056 = vmatprep.subr.bf16.mxu0 %v5310
  %6057 = vmatpush1.bf16.msra.mxu0 %v5309
  %6058 = vmatprep.subr.bf16.mxu0 %v5306
  %6059 = vmatpush1.bf16.msra.mxu0 %v5305
  %6060 = vmatprep.subr.bf16.mxu0 %v5302
  %6061 = vmatpush1.bf16.msra.mxu0 %v5301
  %6062 = vmatprep.subr.bf16.mxu0 %v5298
  %6063 = vmatpush1.bf16.msra.mxu0 %v5297
  %6064 = vmatprep.subr.bf16.mxu0 %v5294
  %6065 = vmatpush1.bf16.msra.mxu0 %v5293
  %6066 = vmatprep.subr.bf16.mxu0 %v5354
  %6067 = vmatpush2.bf16.msra.mxu0 %v5353
  %6068 = vmatprep.subr.bf16.mxu0 %v5350
  %6069 = vmatpush2.bf16.msra.mxu0 %v5349
  %6070 = vmatprep.subr.bf16.mxu0 %v5346
  %6071 = vmatpush2.bf16.msra.mxu0 %v5345
  %6072 = vmatprep.subr.bf16.mxu0 %v5342
  %6073 = vmatpush2.bf16.msra.mxu0 %v5341
  %6074 = vmatprep.subr.bf16.mxu0 %v5338
  %6075 = vmatpush2.bf16.msra.mxu0 %v5337
  %6076 = vmatprep.subr.bf16.mxu0 %v5334
  %6077 = vmatpush2.bf16.msra.mxu0 %v5333
  %6078 = vmatprep.subr.bf16.mxu0 %v5330
  %6079 = vmatpush2.bf16.msra.mxu0 %v5329
  %6080 = vmatprep.subr.bf16.mxu0 %v5326
  %6081 = vmatpush2.bf16.msra.mxu0 %v5325
  %6082 = vmatprep.mubr.bf16.mxu0 %v3672
  %6083 = vmatmul.mubr.bf16.gmra.mxu0 %v3671
  %v6084 = vpop.f32.mrf.mxu0
  %v6085 = vadd.f32 %v6032, %v6084
  %v6086 = vpop.f32.mrf.mxu0
  %v6087 = vadd.f32 %v6034, %v6086
  %v6088 = vpop.f32.mrf.mxu0
  %v6089 = vadd.f32 %v6036, %v6088
  %v6090 = vpop.f32.mrf.mxu0
  %v6091 = vadd.f32 %v6038, %v6090
  %6092 = vmatprep.mubr.bf16.mxu0 %v3676
  %6093 = vmatmul.mubr.bf16.gmra.mxu0 %v3675
  %v6094 = vpop.f32.mrf.mxu0
  %v6095 = vadd.f32 %v6042, %v6094
  %v6096 = vpop.f32.mrf.mxu0
  %v6097 = vadd.f32 %v6044, %v6096
  %v6098 = vpop.f32.mrf.mxu0
  %v6099 = vadd.f32 %v6046, %v6098
  %v6100 = vpop.f32.mrf.mxu0
  %v6101 = vadd.f32 %v6048, %v6100
  %6102 = vdwg.mxu0
  %6103 = vmatprep.subr.bf16.mxu0 %v5386
  %6104 = vmatpush1.bf16.msra.mxu0 %v5385
  %6105 = vmatprep.subr.bf16.mxu0 %v5382
  %6106 = vmatpush1.bf16.msra.mxu0 %v5381
  %6107 = vmatprep.subr.bf16.mxu0 %v5378
  %6108 = vmatpush1.bf16.msra.mxu0 %v5377
  %6109 = vmatprep.subr.bf16.mxu0 %v5374
  %6110 = vmatpush1.bf16.msra.mxu0 %v5373
  %6111 = vmatprep.subr.bf16.mxu0 %v5370
  %6112 = vmatpush1.bf16.msra.mxu0 %v5369
  %6113 = vmatprep.subr.bf16.mxu0 %v5366
  %6114 = vmatpush1.bf16.msra.mxu0 %v5365
  %6115 = vmatprep.subr.bf16.mxu0 %v5362
  %6116 = vmatpush1.bf16.msra.mxu0 %v5361
  %6117 = vmatprep.subr.bf16.mxu0 %v5358
  %6118 = vmatpush1.bf16.msra.mxu0 %v5357
  %6119 = vmatprep.subr.bf16.mxu0 %v5418
  %6120 = vmatpush2.bf16.msra.mxu0 %v5417
  %6121 = vmatprep.subr.bf16.mxu0 %v5414
  %6122 = vmatpush2.bf16.msra.mxu0 %v5413
  %6123 = vmatprep.subr.bf16.mxu0 %v5410
  %6124 = vmatpush2.bf16.msra.mxu0 %v5409
  %6125 = vmatprep.subr.bf16.mxu0 %v5406
  %6126 = vmatpush2.bf16.msra.mxu0 %v5405
  %6127 = vmatprep.subr.bf16.mxu0 %v5402
  %6128 = vmatpush2.bf16.msra.mxu0 %v5401
  %6129 = vmatprep.subr.bf16.mxu0 %v5398
  %6130 = vmatpush2.bf16.msra.mxu0 %v5397
  %6131 = vmatprep.subr.bf16.mxu0 %v5394
  %6132 = vmatpush2.bf16.msra.mxu0 %v5393
  %6133 = vmatprep.subr.bf16.mxu0 %v5390
  %6134 = vmatpush2.bf16.msra.mxu0 %v5389
  %6135 = vmatprep.mubr.bf16.mxu0 %v3678
  %6136 = vmatmul.mubr.bf16.gmra.mxu0 %v3677
  %v6137 = vpop.f32.mrf.mxu0
  %v6138 = vadd.f32 %v6085, %v6137
  %v6139 = vpop.f32.mrf.mxu0
  %v6140 = vadd.f32 %v6087, %v6139
  %v6141 = vpop.f32.mrf.mxu0
  %v6142 = vadd.f32 %v6089, %v6141
  %v6143 = vpop.f32.mrf.mxu0
  %v6144 = vadd.f32 %v6091, %v6143
  %6145 = vmatprep.mubr.bf16.mxu0 %v3682
  %6146 = vmatmul.mubr.bf16.gmra.mxu0 %v3681
  %v6147 = vpop.f32.mrf.mxu0
  %v6148 = vadd.f32 %v6095, %v6147
  %v6149 = vpop.f32.mrf.mxu0
  %v6150 = vadd.f32 %v6097, %v6149
  %v6151 = vpop.f32.mrf.mxu0
  %v6152 = vadd.f32 %v6099, %v6151
  %v6153 = vpop.f32.mrf.mxu0
  %v6154 = vadd.f32 %v6101, %v6153
  %6155 = vdwg.mxu0
  %6156 = vmatprep.subr.bf16.mxu0 %v5450
  %6157 = vmatpush1.bf16.msra.mxu0 %v5449
  %6158 = vmatprep.subr.bf16.mxu0 %v5446
  %6159 = vmatpush1.bf16.msra.mxu0 %v5445
  %6160 = vmatprep.subr.bf16.mxu0 %v5442
  %6161 = vmatpush1.bf16.msra.mxu0 %v5441
  %6162 = vmatprep.subr.bf16.mxu0 %v5438
  %6163 = vmatpush1.bf16.msra.mxu0 %v5437
  %6164 = vmatprep.subr.bf16.mxu0 %v5434
  %6165 = vmatpush1.bf16.msra.mxu0 %v5433
  %6166 = vmatprep.subr.bf16.mxu0 %v5430
  %6167 = vmatpush1.bf16.msra.mxu0 %v5429
  %6168 = vmatprep.subr.bf16.mxu0 %v5426
  %6169 = vmatpush1.bf16.msra.mxu0 %v5425
  %6170 = vmatprep.subr.bf16.mxu0 %v5422
  %6171 = vmatpush1.bf16.msra.mxu0 %v5421
  %6172 = vmatprep.subr.bf16.mxu0 %v5482
  %6173 = vmatpush2.bf16.msra.mxu0 %v5481
  %6174 = vmatprep.subr.bf16.mxu0 %v5478
  %6175 = vmatpush2.bf16.msra.mxu0 %v5477
  %6176 = vmatprep.subr.bf16.mxu0 %v5474
  %6177 = vmatpush2.bf16.msra.mxu0 %v5473
  %6178 = vmatprep.subr.bf16.mxu0 %v5470
  %6179 = vmatpush2.bf16.msra.mxu0 %v5469
  %6180 = vmatprep.subr.bf16.mxu0 %v5466
  %6181 = vmatpush2.bf16.msra.mxu0 %v5465
  %6182 = vmatprep.subr.bf16.mxu0 %v5462
  %6183 = vmatpush2.bf16.msra.mxu0 %v5461
  %6184 = vmatprep.subr.bf16.mxu0 %v5458
  %6185 = vmatpush2.bf16.msra.mxu0 %v5457
  %6186 = vmatprep.subr.bf16.mxu0 %v5454
  %6187 = vmatpush2.bf16.msra.mxu0 %v5453
  %6188 = vmatprep.mubr.bf16.mxu0 %v3680
  %6189 = vmatmul.mubr.bf16.gmra.mxu0 %v3679
  %v6190 = vpop.f32.mrf.mxu0
  %v6191 = vadd.f32 %v6138, %v6190
  %v6192 = vpop.f32.mrf.mxu0
  %v6193 = vadd.f32 %v6140, %v6192
  %v6194 = vpop.f32.mrf.mxu0
  %v6195 = vadd.f32 %v6142, %v6194
  %v6196 = vpop.f32.mrf.mxu0
  %v6197 = vadd.f32 %v6144, %v6196
  %6198 = vmatprep.mubr.bf16.mxu0 %v3684
  %6199 = vmatmul.mubr.bf16.gmra.mxu0 %v3683
  %v6200 = vpop.f32.mrf.mxu0
  %v6201 = vadd.f32 %v6148, %v6200
  %v6202 = vpop.f32.mrf.mxu0
  %v6203 = vadd.f32 %v6150, %v6202
  %v6204 = vpop.f32.mrf.mxu0
  %v6205 = vadd.f32 %v6152, %v6204
  %v6206 = vpop.f32.mrf.mxu0
  %v6207 = vadd.f32 %v6154, %v6206
  %6208 = vdwg.mxu0
  %6209 = vmatprep.subr.bf16.mxu0 %v5514
  %6210 = vmatpush1.bf16.msra.mxu0 %v5513
  %6211 = vmatprep.subr.bf16.mxu0 %v5510
  %6212 = vmatpush1.bf16.msra.mxu0 %v5509
  %6213 = vmatprep.subr.bf16.mxu0 %v5506
  %6214 = vmatpush1.bf16.msra.mxu0 %v5505
  %6215 = vmatprep.subr.bf16.mxu0 %v5502
  %6216 = vmatpush1.bf16.msra.mxu0 %v5501
  %6217 = vmatprep.subr.bf16.mxu0 %v5498
  %6218 = vmatpush1.bf16.msra.mxu0 %v5497
  %6219 = vmatprep.subr.bf16.mxu0 %v5494
  %6220 = vmatpush1.bf16.msra.mxu0 %v5493
  %6221 = vmatprep.subr.bf16.mxu0 %v5490
  %6222 = vmatpush1.bf16.msra.mxu0 %v5489
  %6223 = vmatprep.subr.bf16.mxu0 %v5486
  %6224 = vmatpush1.bf16.msra.mxu0 %v5485
  %6225 = vmatprep.subr.bf16.mxu0 %v5546
  %6226 = vmatpush2.bf16.msra.mxu0 %v5545
  %6227 = vmatprep.subr.bf16.mxu0 %v5542
  %6228 = vmatpush2.bf16.msra.mxu0 %v5541
  %6229 = vmatprep.subr.bf16.mxu0 %v5538
  %6230 = vmatpush2.bf16.msra.mxu0 %v5537
  %6231 = vmatprep.subr.bf16.mxu0 %v5534
  %6232 = vmatpush2.bf16.msra.mxu0 %v5533
  %6233 = vmatprep.subr.bf16.mxu0 %v5530
  %6234 = vmatpush2.bf16.msra.mxu0 %v5529
  %6235 = vmatprep.subr.bf16.mxu0 %v5526
  %6236 = vmatpush2.bf16.msra.mxu0 %v5525
  %6237 = vmatprep.subr.bf16.mxu0 %v5522
  %6238 = vmatpush2.bf16.msra.mxu0 %v5521
  %6239 = vmatprep.subr.bf16.mxu0 %v5518
  %6240 = vmatpush2.bf16.msra.mxu0 %v5517
  %6241 = vmatprep.mubr.bf16.mxu0 %v3686
  %6242 = vmatmul.mubr.bf16.gmra.mxu0 %v3685
  %v6243 = vpop.f32.mrf.mxu0
  %v6244 = vadd.f32 %v6191, %v6243
  %v6245 = vpop.f32.mrf.mxu0
  %v6246 = vadd.f32 %v6193, %v6245
  %v6247 = vpop.f32.mrf.mxu0
  %v6248 = vadd.f32 %v6195, %v6247
  %v6249 = vpop.f32.mrf.mxu0
  %v6250 = vadd.f32 %v6197, %v6249
  %6251 = vmatprep.mubr.bf16.mxu0 %v3690
  %6252 = vmatmul.mubr.bf16.gmra.mxu0 %v3689
  %v6253 = vpop.f32.mrf.mxu0
  %v6254 = vadd.f32 %v6201, %v6253
  %v6255 = vpop.f32.mrf.mxu0
  %v6256 = vadd.f32 %v6203, %v6255
  %v6257 = vpop.f32.mrf.mxu0
  %v6258 = vadd.f32 %v6205, %v6257
  %v6259 = vpop.f32.mrf.mxu0
  %v6260 = vadd.f32 %v6207, %v6259
  %6261 = vdwg.mxu0
  %6262 = vmatprep.subr.bf16.mxu0 %v5578
  %6263 = vmatpush1.bf16.msra.mxu0 %v5577
  %6264 = vmatprep.subr.bf16.mxu0 %v5574
  %6265 = vmatpush1.bf16.msra.mxu0 %v5573
  %6266 = vmatprep.subr.bf16.mxu0 %v5570
  %6267 = vmatpush1.bf16.msra.mxu0 %v5569
  %6268 = vmatprep.subr.bf16.mxu0 %v5566
  %6269 = vmatpush1.bf16.msra.mxu0 %v5565
  %6270 = vmatprep.subr.bf16.mxu0 %v5562
  %6271 = vmatpush1.bf16.msra.mxu0 %v5561
  %6272 = vmatprep.subr.bf16.mxu0 %v5558
  %6273 = vmatpush1.bf16.msra.mxu0 %v5557
  %6274 = vmatprep.subr.bf16.mxu0 %v5554
  %6275 = vmatpush1.bf16.msra.mxu0 %v5553
  %6276 = vmatprep.subr.bf16.mxu0 %v5550
  %6277 = vmatpush1.bf16.msra.mxu0 %v5549
  %6278 = vmatprep.subr.bf16.mxu0 %v5610
  %6279 = vmatpush2.bf16.msra.mxu0 %v5609
  %6280 = vmatprep.subr.bf16.mxu0 %v5606
  %6281 = vmatpush2.bf16.msra.mxu0 %v5605
  %6282 = vmatprep.subr.bf16.mxu0 %v5602
  %6283 = vmatpush2.bf16.msra.mxu0 %v5601
  %6284 = vmatprep.subr.bf16.mxu0 %v5598
  %6285 = vmatpush2.bf16.msra.mxu0 %v5597
  %6286 = vmatprep.subr.bf16.mxu0 %v5594
  %6287 = vmatpush2.bf16.msra.mxu0 %v5593
  %6288 = vmatprep.subr.bf16.mxu0 %v5590
  %6289 = vmatpush2.bf16.msra.mxu0 %v5589
  %6290 = vmatprep.subr.bf16.mxu0 %v5586
  %6291 = vmatpush2.bf16.msra.mxu0 %v5585
  %6292 = vmatprep.subr.bf16.mxu0 %v5582
  %6293 = vmatpush2.bf16.msra.mxu0 %v5581
  %6294 = vmatprep.mubr.bf16.mxu0 %v3688
  %6295 = vmatmul.mubr.bf16.gmra.mxu0 %v3687
  %v6296 = vpop.f32.mrf.mxu0
  %v6297 = vadd.f32 %v6244, %v6296
  %v6298 = vpop.f32.mrf.mxu0
  %v6299 = vadd.f32 %v6246, %v6298
  %v6300 = vpop.f32.mrf.mxu0
  %v6301 = vadd.f32 %v6248, %v6300
  %v6302 = vpop.f32.mrf.mxu0
  %v6303 = vadd.f32 %v6250, %v6302
  %6304 = vmatprep.mubr.bf16.mxu0 %v3692
  %6305 = vmatmul.mubr.bf16.gmra.mxu0 %v3691
  %v6306 = vpop.f32.mrf.mxu0
  %v6307 = vadd.f32 %v6254, %v6306
  %v6308 = vpop.f32.mrf.mxu0
  %v6309 = vadd.f32 %v6256, %v6308
  %v6310 = vpop.f32.mrf.mxu0
  %v6311 = vadd.f32 %v6258, %v6310
  %v6312 = vpop.f32.mrf.mxu0
  %v6313 = vadd.f32 %v6260, %v6312
  %6314 = vdwg.mxu0
  %6315 = vmatprep.subr.bf16.mxu0 %v5260
  %6316 = vmatpush1.bf16.msra.mxu0 %v5259
  %6317 = vmatprep.subr.bf16.mxu0 %v5256
  %6318 = vmatpush1.bf16.msra.mxu0 %v5255
  %6319 = vmatprep.subr.bf16.mxu0 %v5252
  %6320 = vmatpush1.bf16.msra.mxu0 %v5251
  %6321 = vmatprep.subr.bf16.mxu0 %v5248
  %6322 = vmatpush1.bf16.msra.mxu0 %v5247
  %6323 = vmatprep.subr.bf16.mxu0 %v5244
  %6324 = vmatpush1.bf16.msra.mxu0 %v5243
  %6325 = vmatprep.subr.bf16.mxu0 %v5240
  %6326 = vmatpush1.bf16.msra.mxu0 %v5239
  %6327 = vmatprep.subr.bf16.mxu0 %v5236
  %6328 = vmatpush1.bf16.msra.mxu0 %v5235
  %6329 = vmatprep.subr.bf16.mxu0 %v5232
  %6330 = vmatpush1.bf16.msra.mxu0 %v5231
  %6331 = vmatprep.subr.bf16.mxu0 %v5292
  %6332 = vmatpush2.bf16.msra.mxu0 %v5291
  %6333 = vmatprep.subr.bf16.mxu0 %v5288
  %6334 = vmatpush2.bf16.msra.mxu0 %v5287
  %6335 = vmatprep.subr.bf16.mxu0 %v5284
  %6336 = vmatpush2.bf16.msra.mxu0 %v5283
  %6337 = vmatprep.subr.bf16.mxu0 %v5280
  %6338 = vmatpush2.bf16.msra.mxu0 %v5279
  %6339 = vmatprep.subr.bf16.mxu0 %v5276
  %6340 = vmatpush2.bf16.msra.mxu0 %v5275
  %6341 = vmatprep.subr.bf16.mxu0 %v5272
  %6342 = vmatpush2.bf16.msra.mxu0 %v5271
  %6343 = vmatprep.subr.bf16.mxu0 %v5268
  %6344 = vmatpush2.bf16.msra.mxu0 %v5267
  %6345 = vmatprep.subr.bf16.mxu0 %v5264
  %6346 = vmatpush2.bf16.msra.mxu0 %v5263
  %6347 = vmatprep.mubr.bf16.mxu0 %v3670
  %6348 = vmatmul.mubr.bf16.gmra.mxu0 %v3669
  %v6349 = vpop.f32.mrf.mxu0
  %v6350 = vadd.f32 0.0, %v6349
  %v6351 = vpop.f32.mrf.mxu0
  %v6352 = vadd.f32 0.0, %v6351
  %v6353 = vpop.f32.mrf.mxu0
  %v6354 = vadd.f32 0.0, %v6353
  %v6355 = vpop.f32.mrf.mxu0
  %v6356 = vadd.f32 0.0, %v6355
  %6357 = vmatprep.mubr.bf16.mxu0 %v3674
  %6358 = vmatmul.mubr.bf16.gmra.mxu0 %v3673
  %v6359 = vpop.f32.mrf.mxu0
  %v6360 = vadd.f32 0.0, %v6359
  %v6361 = vpop.f32.mrf.mxu0
  %v6362 = vadd.f32 0.0, %v6361
  %v6363 = vpop.f32.mrf.mxu0
  %v6364 = vadd.f32 0.0, %v6363
  %v6365 = vpop.f32.mrf.mxu0
  %v6366 = vadd.f32 0.0, %v6365
  %6367 = vdwg.mxu0
  %6368 = vmatprep.subr.bf16.mxu0 %v5324
  %6369 = vmatpush1.bf16.msra.mxu0 %v5323
  %6370 = vmatprep.subr.bf16.mxu0 %v5320
  %6371 = vmatpush1.bf16.msra.mxu0 %v5319
  %6372 = vmatprep.subr.bf16.mxu0 %v5316
  %6373 = vmatpush1.bf16.msra.mxu0 %v5315
  %6374 = vmatprep.subr.bf16.mxu0 %v5312
  %6375 = vmatpush1.bf16.msra.mxu0 %v5311
  %6376 = vmatprep.subr.bf16.mxu0 %v5308
  %6377 = vmatpush1.bf16.msra.mxu0 %v5307
  %6378 = vmatprep.subr.bf16.mxu0 %v5304
  %6379 = vmatpush1.bf16.msra.mxu0 %v5303
  %6380 = vmatprep.subr.bf16.mxu0 %v5300
  %6381 = vmatpush1.bf16.msra.mxu0 %v5299
  %6382 = vmatprep.subr.bf16.mxu0 %v5296
  %6383 = vmatpush1.bf16.msra.mxu0 %v5295
  %6384 = vmatprep.subr.bf16.mxu0 %v5356
  %6385 = vmatpush2.bf16.msra.mxu0 %v5355
  %6386 = vmatprep.subr.bf16.mxu0 %v5352
  %6387 = vmatpush2.bf16.msra.mxu0 %v5351
  %6388 = vmatprep.subr.bf16.mxu0 %v5348
  %6389 = vmatpush2.bf16.msra.mxu0 %v5347
  %6390 = vmatprep.subr.bf16.mxu0 %v5344
  %6391 = vmatpush2.bf16.msra.mxu0 %v5343
  %6392 = vmatprep.subr.bf16.mxu0 %v5340
  %6393 = vmatpush2.bf16.msra.mxu0 %v5339
  %6394 = vmatprep.subr.bf16.mxu0 %v5336
  %6395 = vmatpush2.bf16.msra.mxu0 %v5335
  %6396 = vmatprep.subr.bf16.mxu0 %v5332
  %6397 = vmatpush2.bf16.msra.mxu0 %v5331
  %6398 = vmatprep.subr.bf16.mxu0 %v5328
  %6399 = vmatpush2.bf16.msra.mxu0 %v5327
  %6400 = vmatprep.mubr.bf16.mxu0 %v3672
  %6401 = vmatmul.mubr.bf16.gmra.mxu0 %v3671
  %v6402 = vpop.f32.mrf.mxu0
  %v6403 = vadd.f32 %v6350, %v6402
  %v6404 = vpop.f32.mrf.mxu0
  %v6405 = vadd.f32 %v6352, %v6404
  %v6406 = vpop.f32.mrf.mxu0
  %v6407 = vadd.f32 %v6354, %v6406
  %v6408 = vpop.f32.mrf.mxu0
  %v6409 = vadd.f32 %v6356, %v6408
  %6410 = vmatprep.mubr.bf16.mxu0 %v3676
  %6411 = vmatmul.mubr.bf16.gmra.mxu0 %v3675
  %v6412 = vpop.f32.mrf.mxu0
  %v6413 = vadd.f32 %v6360, %v6412
  %v6414 = vpop.f32.mrf.mxu0
  %v6415 = vadd.f32 %v6362, %v6414
  %v6416 = vpop.f32.mrf.mxu0
  %v6417 = vadd.f32 %v6364, %v6416
  %v6418 = vpop.f32.mrf.mxu0
  %v6419 = vadd.f32 %v6366, %v6418
  %6420 = vdwg.mxu0
  %6421 = vmatprep.subr.bf16.mxu0 %v5388
  %6422 = vmatpush1.bf16.msra.mxu0 %v5387
  %6423 = vmatprep.subr.bf16.mxu0 %v5384
  %6424 = vmatpush1.bf16.msra.mxu0 %v5383
  %6425 = vmatprep.subr.bf16.mxu0 %v5380
  %6426 = vmatpush1.bf16.msra.mxu0 %v5379
  %6427 = vmatprep.subr.bf16.mxu0 %v5376
  %6428 = vmatpush1.bf16.msra.mxu0 %v5375
  %6429 = vmatprep.subr.bf16.mxu0 %v5372
  %6430 = vmatpush1.bf16.msra.mxu0 %v5371
  %6431 = vmatprep.subr.bf16.mxu0 %v5368
  %6432 = vmatpush1.bf16.msra.mxu0 %v5367
  %6433 = vmatprep.subr.bf16.mxu0 %v5364
  %6434 = vmatpush1.bf16.msra.mxu0 %v5363
  %6435 = vmatprep.subr.bf16.mxu0 %v5360
  %6436 = vmatpush1.bf16.msra.mxu0 %v5359
  %6437 = vmatprep.subr.bf16.mxu0 %v5420
  %6438 = vmatpush2.bf16.msra.mxu0 %v5419
  %6439 = vmatprep.subr.bf16.mxu0 %v5416
  %6440 = vmatpush2.bf16.msra.mxu0 %v5415
  %6441 = vmatprep.subr.bf16.mxu0 %v5412
  %6442 = vmatpush2.bf16.msra.mxu0 %v5411
  %6443 = vmatprep.subr.bf16.mxu0 %v5408
  %6444 = vmatpush2.bf16.msra.mxu0 %v5407
  %6445 = vmatprep.subr.bf16.mxu0 %v5404
  %6446 = vmatpush2.bf16.msra.mxu0 %v5403
  %6447 = vmatprep.subr.bf16.mxu0 %v5400
  %6448 = vmatpush2.bf16.msra.mxu0 %v5399
  %6449 = vmatprep.subr.bf16.mxu0 %v5396
  %6450 = vmatpush2.bf16.msra.mxu0 %v5395
  %6451 = vmatprep.subr.bf16.mxu0 %v5392
  %6452 = vmatpush2.bf16.msra.mxu0 %v5391
  %6453 = vmatprep.mubr.bf16.mxu0 %v3678
  %6454 = vmatmul.mubr.bf16.gmra.mxu0 %v3677
  %v6455 = vpop.f32.mrf.mxu0
  %v6456 = vadd.f32 %v6403, %v6455
  %v6457 = vpop.f32.mrf.mxu0
  %v6458 = vadd.f32 %v6405, %v6457
  %v6459 = vpop.f32.mrf.mxu0
  %v6460 = vadd.f32 %v6407, %v6459
  %v6461 = vpop.f32.mrf.mxu0
  %v6462 = vadd.f32 %v6409, %v6461
  %6463 = vmatprep.mubr.bf16.mxu0 %v3682
  %6464 = vmatmul.mubr.bf16.gmra.mxu0 %v3681
  %v6465 = vpop.f32.mrf.mxu0
  %v6466 = vadd.f32 %v6413, %v6465
  %v6467 = vpop.f32.mrf.mxu0
  %v6468 = vadd.f32 %v6415, %v6467
  %v6469 = vpop.f32.mrf.mxu0
  %v6470 = vadd.f32 %v6417, %v6469
  %v6471 = vpop.f32.mrf.mxu0
  %v6472 = vadd.f32 %v6419, %v6471
  %6473 = vdwg.mxu0
  %6474 = vmatprep.subr.bf16.mxu0 %v5452
  %6475 = vmatpush1.bf16.msra.mxu0 %v5451
  %6476 = vmatprep.subr.bf16.mxu0 %v5448
  %6477 = vmatpush1.bf16.msra.mxu0 %v5447
  %6478 = vmatprep.subr.bf16.mxu0 %v5444
  %6479 = vmatpush1.bf16.msra.mxu0 %v5443
  %6480 = vmatprep.subr.bf16.mxu0 %v5440
  %6481 = vmatpush1.bf16.msra.mxu0 %v5439
  %6482 = vmatprep.subr.bf16.mxu0 %v5436
  %6483 = vmatpush1.bf16.msra.mxu0 %v5435
  %6484 = vmatprep.subr.bf16.mxu0 %v5432
  %6485 = vmatpush1.bf16.msra.mxu0 %v5431
  %6486 = vmatprep.subr.bf16.mxu0 %v5428
  %6487 = vmatpush1.bf16.msra.mxu0 %v5427
  %6488 = vmatprep.subr.bf16.mxu0 %v5424
  %6489 = vmatpush1.bf16.msra.mxu0 %v5423
  %6490 = vmatprep.subr.bf16.mxu0 %v5484
  %6491 = vmatpush2.bf16.msra.mxu0 %v5483
  %6492 = vmatprep.subr.bf16.mxu0 %v5480
  %6493 = vmatpush2.bf16.msra.mxu0 %v5479
  %6494 = vmatprep.subr.bf16.mxu0 %v5476
  %6495 = vmatpush2.bf16.msra.mxu0 %v5475
  %6496 = vmatprep.subr.bf16.mxu0 %v5472
  %6497 = vmatpush2.bf16.msra.mxu0 %v5471
  %6498 = vmatprep.subr.bf16.mxu0 %v5468
  %6499 = vmatpush2.bf16.msra.mxu0 %v5467
  %6500 = vmatprep.subr.bf16.mxu0 %v5464
  %6501 = vmatpush2.bf16.msra.mxu0 %v5463
  %6502 = vmatprep.subr.bf16.mxu0 %v5460
  %6503 = vmatpush2.bf16.msra.mxu0 %v5459
  %6504 = vmatprep.subr.bf16.mxu0 %v5456
  %6505 = vmatpush2.bf16.msra.mxu0 %v5455
  %6506 = vmatprep.mubr.bf16.mxu0 %v3680
  %6507 = vmatmul.mubr.bf16.gmra.mxu0 %v3679
  %v6508 = vpop.f32.mrf.mxu0
  %v6509 = vadd.f32 %v6456, %v6508
  %v6510 = vpop.f32.mrf.mxu0
  %v6511 = vadd.f32 %v6458, %v6510
  %v6512 = vpop.f32.mrf.mxu0
  %v6513 = vadd.f32 %v6460, %v6512
  %v6514 = vpop.f32.mrf.mxu0
  %v6515 = vadd.f32 %v6462, %v6514
  %6516 = vmatprep.mubr.bf16.mxu0 %v3684
  %6517 = vmatmul.mubr.bf16.gmra.mxu0 %v3683
  %v6518 = vpop.f32.mrf.mxu0
  %v6519 = vadd.f32 %v6466, %v6518
  %v6520 = vpop.f32.mrf.mxu0
  %v6521 = vadd.f32 %v6468, %v6520
  %v6522 = vpop.f32.mrf.mxu0
  %v6523 = vadd.f32 %v6470, %v6522
  %v6524 = vpop.f32.mrf.mxu0
  %v6525 = vadd.f32 %v6472, %v6524
  %6526 = vdwg.mxu0
  %6527 = vmatprep.subr.bf16.mxu0 %v5516
  %6528 = vmatpush1.bf16.msra.mxu0 %v5515
  %6529 = vmatprep.subr.bf16.mxu0 %v5512
  %6530 = vmatpush1.bf16.msra.mxu0 %v5511
  %6531 = vmatprep.subr.bf16.mxu0 %v5508
  %6532 = vmatpush1.bf16.msra.mxu0 %v5507
  %6533 = vmatprep.subr.bf16.mxu0 %v5504
  %6534 = vmatpush1.bf16.msra.mxu0 %v5503
  %6535 = vmatprep.subr.bf16.mxu0 %v5500
  %6536 = vmatpush1.bf16.msra.mxu0 %v5499
  %6537 = vmatprep.subr.bf16.mxu0 %v5496
  %6538 = vmatpush1.bf16.msra.mxu0 %v5495
  %6539 = vmatprep.subr.bf16.mxu0 %v5492
  %6540 = vmatpush1.bf16.msra.mxu0 %v5491
  %6541 = vmatprep.subr.bf16.mxu0 %v5488
  %6542 = vmatpush1.bf16.msra.mxu0 %v5487
  %6543 = vmatprep.subr.bf16.mxu0 %v5548
  %6544 = vmatpush2.bf16.msra.mxu0 %v5547
  %6545 = vmatprep.subr.bf16.mxu0 %v5544
  %6546 = vmatpush2.bf16.msra.mxu0 %v5543
  %6547 = vmatprep.subr.bf16.mxu0 %v5540
  %6548 = vmatpush2.bf16.msra.mxu0 %v5539
  %6549 = vmatprep.subr.bf16.mxu0 %v5536
  %6550 = vmatpush2.bf16.msra.mxu0 %v5535
  %6551 = vmatprep.subr.bf16.mxu0 %v5532
  %6552 = vmatpush2.bf16.msra.mxu0 %v5531
  %6553 = vmatprep.subr.bf16.mxu0 %v5528
  %6554 = vmatpush2.bf16.msra.mxu0 %v5527
  %6555 = vmatprep.subr.bf16.mxu0 %v5524
  %6556 = vmatpush2.bf16.msra.mxu0 %v5523
  %6557 = vmatprep.subr.bf16.mxu0 %v5520
  %6558 = vmatpush2.bf16.msra.mxu0 %v5519
  %6559 = vmatprep.mubr.bf16.mxu0 %v3686
  %6560 = vmatmul.mubr.bf16.gmra.mxu0 %v3685
  %v6561 = vpop.f32.mrf.mxu0
  %v6562 = vadd.f32 %v6509, %v6561
  %v6563 = vpop.f32.mrf.mxu0
  %v6564 = vadd.f32 %v6511, %v6563
  %v6565 = vpop.f32.mrf.mxu0
  %v6566 = vadd.f32 %v6513, %v6565
  %v6567 = vpop.f32.mrf.mxu0
  %v6568 = vadd.f32 %v6515, %v6567
  %6569 = vmatprep.mubr.bf16.mxu0 %v3690
  %6570 = vmatmul.mubr.bf16.gmra.mxu0 %v3689
  %v6571 = vpop.f32.mrf.mxu0
  %v6572 = vadd.f32 %v6519, %v6571
  %v6573 = vpop.f32.mrf.mxu0
  %v6574 = vadd.f32 %v6521, %v6573
  %v6575 = vpop.f32.mrf.mxu0
  %v6576 = vadd.f32 %v6523, %v6575
  %v6577 = vpop.f32.mrf.mxu0
  %v6578 = vadd.f32 %v6525, %v6577
  %6579 = vdwg.mxu0
  %6580 = vmatprep.subr.bf16.mxu0 %v5580
  %6581 = vmatpush1.bf16.msra.mxu0 %v5579
  %6582 = vmatprep.subr.bf16.mxu0 %v5576
  %6583 = vmatpush1.bf16.msra.mxu0 %v5575
  %6584 = vmatprep.subr.bf16.mxu0 %v5572
  %6585 = vmatpush1.bf16.msra.mxu0 %v5571
  %6586 = vmatprep.subr.bf16.mxu0 %v5568
  %6587 = vmatpush1.bf16.msra.mxu0 %v5567
  %6588 = vmatprep.subr.bf16.mxu0 %v5564
  %6589 = vmatpush1.bf16.msra.mxu0 %v5563
  %6590 = vmatprep.subr.bf16.mxu0 %v5560
  %6591 = vmatpush1.bf16.msra.mxu0 %v5559
  %6592 = vmatprep.subr.bf16.mxu0 %v5556
  %6593 = vmatpush1.bf16.msra.mxu0 %v5555
  %6594 = vmatprep.subr.bf16.mxu0 %v5552
  %6595 = vmatpush1.bf16.msra.mxu0 %v5551
  %6596 = vmatprep.subr.bf16.mxu0 %v5612
  %6597 = vmatpush2.bf16.msra.mxu0 %v5611
  %6598 = vmatprep.subr.bf16.mxu0 %v5608
  %6599 = vmatpush2.bf16.msra.mxu0 %v5607
  %6600 = vmatprep.subr.bf16.mxu0 %v5604
  %6601 = vmatpush2.bf16.msra.mxu0 %v5603
  %6602 = vmatprep.subr.bf16.mxu0 %v5600
  %6603 = vmatpush2.bf16.msra.mxu0 %v5599
  %6604 = vmatprep.subr.bf16.mxu0 %v5596
  %6605 = vmatpush2.bf16.msra.mxu0 %v5595
  %6606 = vmatprep.subr.bf16.mxu0 %v5592
  %6607 = vmatpush2.bf16.msra.mxu0 %v5591
  %6608 = vmatprep.subr.bf16.mxu0 %v5588
  %6609 = vmatpush2.bf16.msra.mxu0 %v5587
  %6610 = vmatprep.subr.bf16.mxu0 %v5584
  %6611 = vmatpush2.bf16.msra.mxu0 %v5583
  %6612 = vmatprep.mubr.bf16.mxu0 %v3688
  %6613 = vmatmul.mubr.bf16.gmra.mxu0 %v3687
  %v6614 = vpop.f32.mrf.mxu0
  %v6615 = vadd.f32 %v6562, %v6614
  %v6616 = vpop.f32.mrf.mxu0
  %v6617 = vadd.f32 %v6564, %v6616
  %v6618 = vpop.f32.mrf.mxu0
  %v6619 = vadd.f32 %v6566, %v6618
  %v6620 = vpop.f32.mrf.mxu0
  %v6621 = vadd.f32 %v6568, %v6620
  %6622 = vmatprep.mubr.bf16.mxu0 %v3692
  %6623 = vmatmul.mubr.bf16.gmra.mxu0 %v3691
  %v6624 = vpop.f32.mrf.mxu0
  %v6625 = vadd.f32 %v6572, %v6624
  %v6626 = vpop.f32.mrf.mxu0
  %v6627 = vadd.f32 %v6574, %v6626
  %v6628 = vpop.f32.mrf.mxu0
  %v6629 = vadd.f32 %v6576, %v6628
  %v6630 = vpop.f32.mrf.mxu0
  %v6631 = vadd.f32 %v6578, %v6630
  %6632 = vdwg.mxu0
  %v6633 = vadd.f32 %v6297, %v6301
  %v6634 = vadd.f32 %v6633, %v6307
  %v6635 = vadd.f32 %v6634, %v6311
  %v6636 = vrot.slane %v6635, 4
  %v6637 = vadd.f32 %v6635, %v6636
  %v6638 = vrot.slane %v6637, 2
  %v6639 = vadd.f32 %v6637, %v6638
  %v6640 = vrot.slane %v6639, 1
  %v6641 = vadd.f32 %v6639, %v6640
  %v6642 = vadd.f32 %v6299, %v6303
  %v6643 = vadd.f32 %v6642, %v6309
  %v6644 = vadd.f32 %v6643, %v6313
  %v6645 = vrot.slane %v6644, 4
  %v6646 = vadd.f32 %v6644, %v6645
  %v6647 = vrot.slane %v6646, 2
  %v6648 = vadd.f32 %v6646, %v6647
  %v6649 = vrot.slane %v6648, 1
  %v6650 = vadd.f32 %v6648, %v6649
  %v6651 = vadd.f32 %v6615, %v6619
  %v6652 = vadd.f32 %v6651, %v6625
  %v6653 = vadd.f32 %v6652, %v6629
  %v6654 = vrot.slane %v6653, 4
  %v6655 = vadd.f32 %v6653, %v6654
  %v6656 = vrot.slane %v6655, 2
  %v6657 = vadd.f32 %v6655, %v6656
  %v6658 = vrot.slane %v6657, 1
  %v6659 = vadd.f32 %v6657, %v6658
  %v6660 = vadd.f32 %v6617, %v6621
  %v6661 = vadd.f32 %v6660, %v6627
  %v6662 = vadd.f32 %v6661, %v6631
  %v6663 = vrot.slane %v6662, 4
  %v6664 = vadd.f32 %v6662, %v6663
  %v6665 = vrot.slane %v6664, 2
  %v6666 = vadd.f32 %v6664, %v6665
  %v6667 = vrot.slane %v6666, 1
  %v6668 = vadd.f32 %v6666, %v6667
  %v6669 = vmul.f32 %v6297, %v6297
  %v6670 = vmul.f32 %v6299, %v6299
  %v6671 = vmul.f32 %v6615, %v6615
  %v6672 = vmul.f32 %v6617, %v6617
  %v6673 = vmul.f32 %v6301, %v6301
  %v6674 = vmul.f32 %v6303, %v6303
  %v6675 = vmul.f32 %v6619, %v6619
  %v6676 = vmul.f32 %v6621, %v6621
  %v6677 = vmul.f32 %v6307, %v6307
  %v6678 = vmul.f32 %v6309, %v6309
  %v6679 = vmul.f32 %v6625, %v6625
  %v6680 = vmul.f32 %v6627, %v6627
  %v6681 = vmul.f32 %v6311, %v6311
  %v6682 = vmul.f32 %v6313, %v6313
  %v6683 = vmul.f32 %v6629, %v6629
  %v6684 = vmul.f32 %v6631, %v6631
  %v6685 = vadd.f32 %v6669, %v6673
  %v6686 = vadd.f32 %v6685, %v6677
  %v6687 = vadd.f32 %v6686, %v6681
  %v6688 = vrot.slane %v6687, 4
  %v6689 = vadd.f32 %v6687, %v6688
  %v6690 = vrot.slane %v6689, 2
  %v6691 = vadd.f32 %v6689, %v6690
  %v6692 = vrot.slane %v6691, 1
  %v6693 = vadd.f32 %v6691, %v6692
  %v6694 = vadd.f32 %v6670, %v6674
  %v6695 = vadd.f32 %v6694, %v6678
  %v6696 = vadd.f32 %v6695, %v6682
  %v6697 = vrot.slane %v6696, 4
  %v6698 = vadd.f32 %v6696, %v6697
  %v6699 = vrot.slane %v6698, 2
  %v6700 = vadd.f32 %v6698, %v6699
  %v6701 = vrot.slane %v6700, 1
  %v6702 = vadd.f32 %v6700, %v6701
  %v6703 = vadd.f32 %v6671, %v6675
  %v6704 = vadd.f32 %v6703, %v6679
  %v6705 = vadd.f32 %v6704, %v6683
  %v6706 = vrot.slane %v6705, 4
  %v6707 = vadd.f32 %v6705, %v6706
  %v6708 = vrot.slane %v6707, 2
  %v6709 = vadd.f32 %v6707, %v6708
  %v6710 = vrot.slane %v6709, 1
  %v6711 = vadd.f32 %v6709, %v6710
  %v6712 = vadd.f32 %v6672, %v6676
  %v6713 = vadd.f32 %v6712, %v6680
  %v6714 = vadd.f32 %v6713, %v6684
  %v6715 = vrot.slane %v6714, 4
  %v6716 = vadd.f32 %v6714, %v6715
  %v6717 = vrot.slane %v6716, 2
  %v6718 = vadd.f32 %v6716, %v6717
  %v6719 = vrot.slane %v6718, 1
  %v6720 = vadd.f32 %v6718, %v6719
  %v6721 = vsel %vm119, %v6641, %v6693
  %v6722 = vsel %vm119, %v6650, %v6702
  %v6723 = vsel %vm119, %v6659, %v6711
  %v6724 = vsel %vm119, %v6668, %v6720
  %6725 = vrot.lane.b32.xlu0 %v6721, 32
  %v6726 = vpop.permute.xlu0 %6725
  %6727 = vrot.lane.b32.xlu0 %v6722, 32
  %v6728 = vpop.permute.xlu0 %6727
  %6729 = vrot.lane.b32.xlu0 %v6723, 32
  %v6730 = vpop.permute.xlu0 %6729
  %6731 = vrot.lane.b32.xlu0 %v6724, 32
  %v6732 = vpop.permute.xlu0 %6731
  %v6733 = vsel %vm3331, %v6730, %v6732
  %v6734 = vsel %vm3331, %v6728, %v6730
  %v6735 = vsel %vm3331, %v6726, %v6728
  %v6736 = vsel %vm3331, %v6732, %v6726
  %v6737 = vadd.f32 %v6721, %v6736
  %v6738 = vadd.f32 %v6722, %v6735
  %v6739 = vadd.f32 %v6723, %v6734
  %v6740 = vadd.f32 %v6724, %v6733
  %6741 = vrot.lane.b32.xlu0 %v6737, 64
  %v6742 = vpop.permute.xlu0 %6741
  %6743 = vrot.lane.b32.xlu0 %v6738, 64
  %v6744 = vpop.permute.xlu0 %6743
  %6745 = vrot.lane.b32.xlu0 %v6739, 64
  %v6746 = vpop.permute.xlu0 %6745
  %6747 = vrot.lane.b32.xlu0 %v6740, 64
  %v6748 = vpop.permute.xlu0 %6747
  %v6749 = vsel %vm3348, %v6746, %v6748
  %v6750 = vsel %vm3348, %v6744, %v6746
  %v6751 = vsel %vm3348, %v6742, %v6744
  %v6752 = vsel %vm3348, %v6748, %v6742
  %v6753 = vadd.f32 %v6737, %v6752
  %v6754 = vadd.f32 %v6738, %v6751
  %v6755 = vadd.f32 %v6739, %v6750
  %v6756 = vadd.f32 %v6740, %v6749
  %v6757 = vadd.f32 %v6753, %v6756
  %v6758 = vadd.f32 %v6754, %v6753
  %v6759 = vadd.f32 %v6755, %v6754
  %v6760 = vadd.f32 %v6756, %v6755
  %v6761 = vadd.f32 %v6757, %v6759
  %v6762 = vadd.f32 %v6758, %v6760
  %v6763 = vmul.f32 %v6761, 0.001953125
  %v6764 = vmul.f32 %v6762, 0.001953125
  %v6765 = vmul.f32 %v6763, %v6763
  %v6766 = vmul.f32 %v6764, %v6764
  %v6769 = vrot.slane %v6765, 7
  %v6770 = vrot.slane %v6766, 7
  %v6773 = vsub.f32 %v6763, %v6769
  %v6774 = vsub.f32 %v6764, %v6770
  %v6775 = vld [vmem:[%s5] sm:$0xf]
  %v6776 = vadd.f32 %v6773, 1e-05
  %v6777 = vadd.f32 %v6774, 1e-05
  %v6778 = vrsqrt.pop %v6776
  %v6779 = vrsqrt.pop %v6777
  %v6782 = vcombine.low %v6778, %v6779
  %v6784 = vunpack.c.l.s4 1966171168
  %v6785 = vunpack.c.0.s8 %v6784
  %v6786 = vlaneseq
  %v6787 = vshrl.u32 %v6786, 7
  %v6788 = vsub.s32 %v6785, %v6787
  %v6789 = vrot.slane %v6782, %v6788
  %v6790 = vcombine.high %v6789, %v6789
  %v6792 = vunpack.c.l.s4 1966171168
  %v6793 = vunpack.c.0.s8 %v6792
  %v6794 = vlaneseq
  %v6795 = vshrl.u32 %v6794, 7
  %v6796 = vsub.s32 %v6793, %v6795
  %v6797 = vrot.slane %v6790, %v6796
  %v6799 = vmul.f32 %v6775, %v6797
  %v6800 = vld [vmem:[%s6] sm:$0xf]
  %v6802 = vlaneseq
  %v6803 = vshrl.u32 %v6802, 7
  %v6804 = vsub.s32 0, %v6803
  %v6805 = vrot.slane %v6799, %v6804
  %v6806 = vlaneseq
  %v6807 = vshrl.u32 %v6806, 7
  %v6808 = vsub.s32 1, %v6807
  %v6809 = vrot.slane %v6799, %v6808
  %v6810 = vlaneseq
  %v6811 = vshrl.u32 %v6810, 7
  %v6812 = vsub.s32 2, %v6811
  %v6813 = vrot.slane %v6799, %v6812
  %v6814 = vlaneseq
  %v6815 = vshrl.u32 %v6814, 7
  %v6816 = vsub.s32 3, %v6815
  %v6817 = vrot.slane %v6799, %v6816
  %v6822 = vmul.f32 %v6763, %v6805
  %v6823 = vmul.f32 %v6764, %v6809
  %v6824 = vmul.f32 %v6763, %v6813
  %v6825 = vmul.f32 %v6764, %v6817
  %v6830 = vcombine.low %v6822, %v6823
  %v6831 = vcombine.low %v6824, %v6825
  %v6833 = vunpack.c.l.s4 1966171168
  %v6834 = vunpack.c.0.s8 %v6833
  %v6835 = vlaneseq
  %v6836 = vshrl.u32 %v6835, 7
  %v6837 = vsub.s32 %v6834, %v6836
  %v6838 = vrot.slane %v6830, %v6837
  %v6840 = vunpack.c.l.s4 1966171168
  %v6841 = vunpack.c.0.s8 %v6840
  %v6842 = vlaneseq
  %v6843 = vshrl.u32 %v6842, 7
  %v6844 = vsub.s32 %v6841, %v6843
  %v6845 = vrot.slane %v6831, %v6844
  %v6846 = vcombine.low %v6838, %v6845
  %v6848 = vunpack.c.l.s4 1966171168
  %v6849 = vunpack.c.0.s8 %v6848
  %v6850 = vlaneseq
  %v6851 = vshrl.u32 %v6850, 7
  %v6852 = vsub.s32 %v6849, %v6851
  %v6853 = vrot.slane %v6846, %v6852
  %v6855 = vsub.f32 %v6800, %v6853
  %v6856 = vmul.f32 %v6297, %v6805
  %v6857 = vmul.f32 %v6299, %v6809
  %v6858 = vmul.f32 %v6615, %v6813
  %v6859 = vmul.f32 %v6617, %v6817
  %v6860 = vmul.f32 %v6301, %v6805
  %v6861 = vmul.f32 %v6303, %v6809
  %v6862 = vmul.f32 %v6619, %v6813
  %v6863 = vmul.f32 %v6621, %v6817
  %v6864 = vmul.f32 %v6307, %v6805
  %v6865 = vmul.f32 %v6309, %v6809
  %v6866 = vmul.f32 %v6625, %v6813
  %v6867 = vmul.f32 %v6627, %v6817
  %v6868 = vmul.f32 %v6311, %v6805
  %v6869 = vmul.f32 %v6313, %v6809
  %v6870 = vmul.f32 %v6629, %v6813
  %v6871 = vmul.f32 %v6631, %v6817
  %v6873 = vlaneseq
  %v6874 = vshrl.u32 %v6873, 7
  %v6875 = vsub.s32 0, %v6874
  %v6876 = vrot.slane %v6855, %v6875
  %v6877 = vlaneseq
  %v6878 = vshrl.u32 %v6877, 7
  %v6879 = vsub.s32 1, %v6878
  %v6880 = vrot.slane %v6855, %v6879
  %v6881 = vlaneseq
  %v6882 = vshrl.u32 %v6881, 7
  %v6883 = vsub.s32 2, %v6882
  %v6884 = vrot.slane %v6855, %v6883
  %v6885 = vlaneseq
  %v6886 = vshrl.u32 %v6885, 7
  %v6887 = vsub.s32 3, %v6886
  %v6888 = vrot.slane %v6855, %v6887
  %v6893 = vadd.f32 %v6856, %v6876
  %v6894 = vadd.f32 %v6857, %v6880
  %v6895 = vadd.f32 %v6858, %v6884
  %v6896 = vadd.f32 %v6859, %v6888
  %v6897 = vadd.f32 %v6860, %v6876
  %v6898 = vadd.f32 %v6861, %v6880
  %v6899 = vadd.f32 %v6862, %v6884
  %v6900 = vadd.f32 %v6863, %v6888
  %v6901 = vadd.f32 %v6864, %v6876
  %v6902 = vadd.f32 %v6865, %v6880
  %v6903 = vadd.f32 %v6866, %v6884
  %v6904 = vadd.f32 %v6867, %v6888
  %v6905 = vadd.f32 %v6868, %v6876
  %v6906 = vadd.f32 %v6869, %v6880
  %v6907 = vadd.f32 %v6870, %v6884
  %v6908 = vadd.f32 %v6871, %v6888
  %v6909 = vadd.f32 %v6893, %v26
  %v6910 = vadd.f32 %v6894, %v27
  %v6911 = vadd.f32 %v6895, %v28
  %v6912 = vadd.f32 %v6896, %v29
  %v6913 = vadd.f32 %v6897, %v30
  %v6914 = vadd.f32 %v6898, %v31
  %v6915 = vadd.f32 %v6899, %v32
  %v6916 = vadd.f32 %v6900, %v33
  %v6917 = vadd.f32 %v6901, %v34
  %v6918 = vadd.f32 %v6902, %v35
  %v6919 = vadd.f32 %v6903, %v36
  %v6920 = vadd.f32 %v6904, %v37
  %v6921 = vadd.f32 %v6905, %v38
  %v6922 = vadd.f32 %v6906, %v39
  %v6923 = vadd.f32 %v6907, %v40
  %v6924 = vadd.f32 %v6908, %v41
  %6925 = vst [vmem:[%s7] sm:$0xff] %v6909
  %6926 = vst [vmem:[%s7 + $0x8] sm:$0xff] %v6910
  %6927 = vst [vmem:[%s7 + $0x10] sm:$0xff] %v6911
  %6928 = vst [vmem:[%s7 + $0x18] sm:$0xff] %v6912
  %6929 = vst [vmem:[%s7 + $0x20] sm:$0xff] %v6913
  %6930 = vst [vmem:[%s7 + $0x28] sm:$0xff] %v6914
  %6931 = vst [vmem:[%s7 + $0x30] sm:$0xff] %v6915
  %6932 = vst [vmem:[%s7 + $0x38] sm:$0xff] %v6916
  %6933 = vst [vmem:[%s7 + $0x40] sm:$0xff] %v6917
  %6934 = vst [vmem:[%s7 + $0x48] sm:$0xff] %v6918
  %6935 = vst [vmem:[%s7 + $0x50] sm:$0xff] %v6919
  %6936 = vst [vmem:[%s7 + $0x58] sm:$0xff] %v6920
  %6937 = vst [vmem:[%s7 + $0x60] sm:$0xff] %v6921
  %6938 = vst [vmem:[%s7 + $0x68] sm:$0xff] %v6922
  %6939 = vst [vmem:[%s7 + $0x70] sm:$0xff] %v6923
  %6940 = vst [vmem:[%s7 + $0x78] sm:$0xff] %v6924
  // Predicated region
  $region30: #{residual_block.1} parent=0 // pred_check
    _
  $region31: #{residual_block.1} parent=0 // pred_check_branch
    %6942 = sbr.rel (0) target = $region33
  $region32: #{residual_block.1} parent=0 // pred_region
    _
  $region33: #{residual_block.1} parent=0 // pred_fallthru
    _
  // Predicated region
  $region34: #{residual_block.1} parent=0 // pred_check
    _
  $region35: #{residual_block.1} parent=0 // pred_check_branch
    %6944 = sbr.rel (0) target = $region37
  $region36: #{residual_block.1} parent=0 // pred_region
    _
  $region37: #{residual_block.1} parent=0 // pred_fallthru
    _

</llo_original>
